<compile_context>
chip_gen: v7x
topology: tpu7x:2x2x1
jax: 0.10.0
libtpu: 0.0.40
codegen_flags: <defaults>
</compile_context>

<pallas_src>
import functools

import jax
import jax.numpy as jnp
from jax.experimental import pallas as pl
from jax.experimental.pallas import tpu as pltpu

HP = 128    # padded hidden width (lane-dense)
IP = 128    # padded FFN intermediate width
CP = 128    # padded classifier width (real labels = 18)
HDP = 128   # padded per-head width (real head dim = 8)


# --------------------------------------------------------------------------
# Fused encoder kernel: one invocation == whole batch, whole network.
# --------------------------------------------------------------------------

def _bert_encoder_kernel(x_ref, mask_ref,
                         emb_g_ref, emb_b_ref,
                         wqkv_ref, bqkv_ref, wo_ref, bo_ref,
                         ln1g_ref, ln1b_ref,
                         w1_ref, b1_ref, w2_ref, b2_ref,
                         ln2g_ref, ln2b_ref,
                         wcls_ref, bcls_ref,
                         o_ref,
                         qkv_scr, ctx_scr,
                         *, n_layers, n_heads, hidden, eps):
    R = x_ref.shape[0]          # flattened batch*seq rows
    NH = n_heads

    # Lane mask over the real hidden width (hoisted; used by every LayerNorm).
    lane = jax.lax.broadcasted_iota(jnp.int32, (1, HP), 1)
    lane_valid = lane < hidden

    def layernorm(y, g, b):
        # y: [R, HP] f32 with zeros in padded lanes. Centered two-pass variance,
        # masked so padded lanes stay exactly zero (g, b are zero-padded too).
        mean = jnp.sum(y, axis=-1, keepdims=True) / hidden
        diff = jnp.where(lane_valid, y - mean, 0.0)
        var = jnp.sum(diff * diff, axis=-1, keepdims=True) / hidden
        inv = jax.lax.rsqrt(var + eps)
        return diff * inv * g + b

    def mm(y, w, b):
        # bf16 operands on the MXU, f32 accumulation, f32 bias add.
        return jnp.dot(y.astype(jnp.bfloat16), w,
                       preferred_element_type=jnp.float32) + b

    # Embedding LayerNorm.
    x = layernorm(x_ref[...], emb_g_ref[...], emb_b_ref[...])          # [R, HP] f32

    # Block-diagonal additive mask, tiled across heads ONCE (hoisted out of loops).
    mask_all = jnp.concatenate([mask_ref[...]] * NH, axis=0)           # [NH*R, R]

    for l in range(n_layers):
        # ---------------- self-attention ----------------
        # Fused head-padded QKV projection (1/sqrt(dh) folded into Q weights);
        # cast to bf16 once at write.
        qkv_scr[...] = mm(x, wqkv_ref[l], bqkv_ref[l]).astype(jnp.bfloat16)

        # Per-head scores from 128-lane-aligned slices; single batched softmax.
        scores = []
        for h in range(NH):
            q_h = qkv_scr[:, h * HDP:(h + 1) * HDP]                    # [R, HDP] bf16
            k_h = qkv_scr[:, (NH + h) * HDP:(NH + h + 1) * HDP]
            scores.append(jax.lax.dot_general(
                q_h, k_h, (((1,), (1,)), ((), ())),
                preferred_element_type=jnp.float32))                   # [R, R]
        s = jnp.concatenate(scores, axis=0) + mask_all                 # [NH*R, R]
        s = s - jnp.max(s, axis=-1, keepdims=True)
        p = jnp.exp(s)
        p = (p / jnp.sum(p, axis=-1, keepdims=True)).astype(jnp.bfloat16)

        # Per-head context, written to 128-lane-aligned blocks (no masked stores).
        for h in range(NH):
            v_h = qkv_scr[:, (2 * NH + h) * HDP:(2 * NH + h + 1) * HDP]
            ctx_scr[:, h * HDP:(h + 1) * HDP] = jnp.dot(
                p[h * R:(h + 1) * R], v_h,
                preferred_element_type=jnp.float32).astype(jnp.bfloat16)

        # Output projection: the head reduction is folded into w_o ([NH*HDP, HP]).
        attn_out = mm(ctx_scr[...], wo_ref[l], bo_ref[l])              # [R, HP]
        x = layernorm(attn_out + x, ln1g_ref[l], ln1b_ref[l])

        # ---------------- feed-forward ----------------
        h1 = mm(x, w1_ref[l], b1_ref[l])
        # TODO(synk): HF BERT uses exact erf-GELU; tanh approximation differs ~1e-3.
        h1 = jax.nn.gelu(h1, approximate=True)
        h2 = mm(h1, w2_ref[l], b2_ref[l])
        x = layernorm(h2 + x, ln2g_ref[l], ln2b_ref[l])

    # ---------------- token-classification head ----------------
    o_ref[...] = mm(x, wcls_ref[...], bcls_ref[...]).astype(o_ref.dtype)


# --------------------------------------------------------------------------
# Synthetic BERT-for-token-classification parameters (deterministic),
# pre-padded / pre-fused / head-major for the kernel.
# --------------------------------------------------------------------------

def init_params(key, *, vocab=100, max_pos=64, type_vocab=2,
                hidden=32, heads=4, inter=64, n_layers=2, num_labels=18):
    assert hidden % heads == 0
    dh = hidden // heads
    scale = 1.0 / (dh ** 0.5)
    ks = iter(jax.random.split(key, 8 + 8 * n_layers))
    std = 0.02
    NHW = heads * HDP

    def nrm(shape):
        return std * jax.random.normal(next(ks), shape, dtype=jnp.float32)

    def pad2(a, r, c):
        return jnp.zeros((r, c), jnp.float32).at[:a.shape[0], :a.shape[1]].set(a)

    def pad_row(a, c):
        return jnp.zeros((1, c), jnp.float32).at[0, :a.shape[0]].set(a)

    word_emb = nrm((vocab, hidden))
    pos_emb = nrm((max_pos, hidden))
    type_emb = nrm((type_vocab, hidden))

    w_qkv, b_qkv, w_o, b_o = [], [], [], []
    ln1_g, ln1_b, w1, b1, w2, b2, ln2_g, ln2_b = [], [], [], [], [], [], [], []
    for _ in range(n_layers):
        wq, wk, wv = nrm((hidden, hidden)), nrm((hidden, hidden)), nrm((hidden, hidden))
        wo = nrm((hidden, hidden))
        w1_raw = nrm((hidden, inter))
        w2_raw = nrm((inter, hidden))

        # Head-major, lane-padded fused QKV weight [HP, 3*NH*HDP]:
        #   cols [h*HDP : h*HDP+dh]           -> Q head h (scaled by 1/sqrt(dh))
        #   cols [(NH+h)*HDP : ...+dh]        -> K head h
        #   cols [(2*NH+h)*HDP : ...+dh]      -> V head h
        fw = jnp.zeros((HP, 3 * NHW), jnp.float32)
        for h in range(heads):
            fw = fw.at[:hidden, h * HDP:h * HDP + dh].set(
                wq[:, h * dh:(h + 1) * dh] * scale)
            fw = fw.at[:hidden, (heads + h) * HDP:(heads + h) * HDP + dh].set(
                wk[:, h * dh:(h + 1) * dh])
            fw = fw.at[:hidden, (2 * heads + h) * HDP:(2 * heads + h) * HDP + dh].set(
                wv[:, h * dh:(h + 1) * dh])
        w_qkv.append(fw)
        b_qkv.append(jnp.zeros((1, 3 * NHW), jnp.float32))   # HF bias init == 0
                                                             # (Q bias would be scaled too)

        # W_O with the head reduction folded in: rows follow the same head-major
        # padded layout as the attention context.
        wo_p = jnp.zeros((NHW, HP), jnp.float32)
        for h in range(heads):
            wo_p = wo_p.at[h * HDP:h * HDP + dh, :hidden].set(wo[h * dh:(h + 1) * dh, :])
        w_o.append(wo_p)
        b_o.append(jnp.zeros((1, HP), jnp.float32))

        ln1_g.append(pad_row(jnp.ones((hidden,), jnp.float32), HP))   # zero-padded gamma
        ln1_b.append(jnp.zeros((1, HP), jnp.float32))
        w1.append(pad2(w1_raw, HP, IP))
        b1.append(jnp.zeros((1, IP), jnp.float32))
        w2.append(pad2(w2_raw, IP, HP))
        b2.append(jnp.zeros((1, HP), jnp.float32))
        ln2_g.append(pad_row(jnp.ones((hidden,), jnp.float32), HP))
        ln2_b.append(jnp.zeros((1, HP), jnp.float32))

    params = {
        "num_heads": heads, "head_dim": dh, "hidden": hidden, "num_labels": num_labels,
        "word_emb": word_emb, "pos_emb": pos_emb, "type_emb": type_emb,
        "emb_ln_g": pad_row(jnp.ones((hidden,), jnp.float32), HP),
        "emb_ln_b": jnp.zeros((1, HP), jnp.float32),
        # weights in bf16 (MXU operands), biases / LN params in f32
        "w_qkv": jnp.stack(w_qkv).astype(jnp.bfloat16), "b_qkv": jnp.stack(b_qkv),
        "w_o": jnp.stack(w_o).astype(jnp.bfloat16), "b_o": jnp.stack(b_o),
        "ln1_g": jnp.stack(ln1_g), "ln1_b": jnp.stack(ln1_b),
        "w1": jnp.stack(w1).astype(jnp.bfloat16), "b1": jnp.stack(b1),
        "w2": jnp.stack(w2).astype(jnp.bfloat16), "b2": jnp.stack(b2),
        "ln2_g": jnp.stack(ln2_g), "ln2_b": jnp.stack(ln2_b),
        "w_cls": pad2(nrm((hidden, num_labels)), HP, CP).astype(jnp.bfloat16),
        "b_cls": jnp.zeros((1, CP), jnp.float32),
    }
    return params


# --------------------------------------------------------------------------
# Forward pass (== BERTClass.forward(ids, mask, labels=None))
# --------------------------------------------------------------------------

def bert_token_classifier(params, ids, mask, labels=None):
    B, S = ids.shape
    H = params["hidden"]
    L = params["w_qkv"].shape[0]
    heads = params["num_heads"]
    num_labels = params["num_labels"]
    R = B * S   # batch folded into rows (R=16 here; fine for toy sizes)

    # Embeddings: word + position + token_type(=0) -- gathers stay in JAX glue.
    x = (params["word_emb"][ids]
         + params["pos_emb"][:S][None, :, :]
         + params["type_emb"][0][None, None, :])                       # [B, S, H]
    x_flat = x.reshape(R, H)
    x_p = jnp.zeros((R, HP), jnp.float32).at[:, :H].set(x_flat)        # lane-pad to 128

    # Block-diagonal additive attention mask over flattened tokens:
    # allowed iff same example AND key not padding; -10000 matches HF semantics
    # (cross-example / masked keys underflow to exactly 0 after softmax).
    batch_ids = jnp.repeat(jnp.arange(B), S)
    same_example = batch_ids[:, None] == batch_ids[None, :]
    key_ok = (mask.reshape(R).astype(jnp.float32) > 0.5)[None, :]
    add_mask = jnp.where(same_example & key_ok, 0.0, -10000.0).astype(jnp.float32)  # [R, R]

    kernel = functools.partial(
        _bert_encoder_kernel,
        n_layers=L, n_heads=heads, hidden=H, eps=1e-12)

    # Grid-less call: whole batch in one step, all weights resident in VMEM once
    # (no double-buffering of constant operands).
    vmem_spec = pl.BlockSpec(memory_space=pltpu.MemorySpace.VMEM)

    logits_p = pl.pallas_call(
        kernel,
        out_shape=jax.ShapeDtypeStruct((R, CP), jnp.float32),
        in_specs=[vmem_spec] * 18,
        out_specs=vmem_spec,
        scratch_shapes=[
            pltpu.VMEM((R, 3 * heads * HDP), jnp.bfloat16),   # fused head-padded QKV
            pltpu.VMEM((R, heads * HDP), jnp.bfloat16),       # attention context
        ],
    )(x_p, add_mask,
      params["emb_ln_g"], params["emb_ln_b"],
      params["w_qkv"], params["b_qkv"], params["w_o"], params["b_o"],
      params["ln1_g"], params["ln1_b"], params["w1"], params["b1"],
      params["w2"], params["b2"], params["ln2_g"], params["ln2_b"],
      params["w_cls"], params["b_cls"])

    logits = logits_p.reshape(B, S, CP)[:, :, :num_labels]             # [B, S, 18]

    if labels is not None:
        # HF token-classification loss: CE over active (mask==1, label!=-100) tokens.
        lp = jax.nn.log_softmax(logits, axis=-1)
        active = (mask.astype(jnp.float32) > 0.5) & (labels != -100)
        safe_labels = jnp.where(active, labels, 0)
        picked = jnp.take_along_axis(lp, safe_labels[..., None], axis=-1)[..., 0]
        loss = -jnp.sum(jnp.where(active, picked, 0.0)) / jnp.maximum(
            jnp.sum(active.astype(jnp.float32)), 1.0)
        return loss, logits
    return logits


# --------------------------------------------------------------------------

if __name__ == "__main__":
    key = jax.random.PRNGKey(0)
    pkey, ikey = jax.random.split(key)

    B, S, VOCAB, NUM_LABELS = 2, 8, 100, 18
    params = init_params(pkey, vocab=VOCAB, hidden=32, heads=4, inter=64,
                         n_layers=2, num_labels=NUM_LABELS)

    ids = jax.random.randint(ikey, (B, S), 0, VOCAB, dtype=jnp.int32)
    # mask: last two tokens of batch element 1 are padding.
    mask = jnp.ones((B, S), dtype=jnp.int32).at[1, -2:].set(0)

    logits = bert_token_classifier(params, ids, mask)
    logits = jax.block_until_ready(logits)

    assert logits.shape == (B, S, NUM_LABELS), logits.shape
    assert bool(jnp.all(jnp.isfinite(logits)))
    print("KERNEL_OK")
</pallas_src>

<mosaic_0001>
module attributes {stable_mosaic.version = 11 : i64} {
  func.func @_bert_encoder_kernel(%arg0: memref<16x128xf32, #tpu.memory_space<vmem>>, %arg1: memref<16x16xf32, #tpu.memory_space<vmem>>, %arg2: memref<1x128xf32, #tpu.memory_space<vmem>>, %arg3: memref<1x128xf32, #tpu.memory_space<vmem>>, %arg4: memref<2x128x1536xbf16, #tpu.memory_space<vmem>>, %arg5: memref<2x1x1536xf32, #tpu.memory_space<vmem>>, %arg6: memref<2x512x128xbf16, #tpu.memory_space<vmem>>, %arg7: memref<2x1x128xf32, #tpu.memory_space<vmem>>, %arg8: memref<2x1x128xf32, #tpu.memory_space<vmem>>, %arg9: memref<2x1x128xf32, #tpu.memory_space<vmem>>, %arg10: memref<2x128x128xbf16, #tpu.memory_space<vmem>>, %arg11: memref<2x1x128xf32, #tpu.memory_space<vmem>>, %arg12: memref<2x128x128xbf16, #tpu.memory_space<vmem>>, %arg13: memref<2x1x128xf32, #tpu.memory_space<vmem>>, %arg14: memref<2x1x128xf32, #tpu.memory_space<vmem>>, %arg15: memref<2x1x128xf32, #tpu.memory_space<vmem>>, %arg16: memref<128x128xbf16, #tpu.memory_space<vmem>>, %arg17: memref<1x128xf32, #tpu.memory_space<vmem>>, %arg18: memref<16x128xf32, #tpu.memory_space<vmem>>, %arg19: memref<16x1536xbf16, #tpu.memory_space<vmem>>, %arg20: memref<16x512xbf16, #tpu.memory_space<vmem>>) attributes {dimension_semantics = [], scalar_prefetch = 0 : i64, scratch_operands = 2 : i64, tpu.core_type = #tpu.core_type<tc>} {
    %0 = tpu.iota {dimensions = array<i32: 1>} : vector<1x128xi32>
    %c32_i32 = arith.constant 32 : i32
    %1 = vector.broadcast %c32_i32 : i32 to vector<1x128xi32>
    %2 = arith.cmpi slt, %0, %1 : vector<1x128xi32>
    %c0 = arith.constant 0 : index
    %c0_0 = arith.constant 0 : index
    %3 = vector.load %arg0[%c0, %c0_0] : memref<16x128xf32, #tpu.memory_space<vmem>>, vector<16x128xf32>
    %c0_1 = arith.constant 0 : index
    %c0_2 = arith.constant 0 : index
    %4 = vector.load %arg2[%c0_1, %c0_2] : memref<1x128xf32, #tpu.memory_space<vmem>>, vector<1x128xf32>
    %c0_3 = arith.constant 0 : index
    %c0_4 = arith.constant 0 : index
    %5 = vector.load %arg3[%c0_3, %c0_4] : memref<1x128xf32, #tpu.memory_space<vmem>>, vector<1x128xf32>
    %cst = arith.constant dense<0.000000e+00> : vector<16xf32>
    %6 = vector.multi_reduction <add>, %3, %cst [1] : vector<16x128xf32> to vector<16xf32>
    %7 = vector.shape_cast %6 : vector<16xf32> to vector<16x1xf32>
    %cst_5 = arith.constant 3.200000e+01 : f32
    %8 = vector.broadcast %cst_5 : f32 to vector<16x1xf32>
    %9 = arith.divf %7, %8 : vector<16x1xf32>
    %10 = vector.broadcast %9 : vector<16x1xf32> to vector<16x128xf32>
    %11 = arith.subf %3, %10 : vector<16x128xf32>
    %cst_6 = arith.constant 0.000000e+00 : f32
    %12 = vector.shape_cast %2 : vector<1x128xi1> to vector<1x128xi1>
    %13 = vector.broadcast %12 : vector<1x128xi1> to vector<16x128xi1>
    %14 = vector.broadcast %cst_6 : f32 to vector<16x128xf32>
    %15 = arith.select %13, %11, %14 : vector<16x128xi1>, vector<16x128xf32>
    %16 = arith.mulf %15, %15 : vector<16x128xf32>
    %cst_7 = arith.constant dense<0.000000e+00> : vector<16xf32>
    %17 = vector.multi_reduction <add>, %16, %cst_7 [1] : vector<16x128xf32> to vector<16xf32>
    %18 = vector.shape_cast %17 : vector<16xf32> to vector<16x1xf32>
    %cst_8 = arith.constant 3.200000e+01 : f32
    %19 = vector.broadcast %cst_8 : f32 to vector<16x1xf32>
    %20 = arith.divf %18, %19 : vector<16x1xf32>
    %cst_9 = arith.constant 9.99999996E-13 : f32
    %21 = vector.broadcast %cst_9 : f32 to vector<16x1xf32>
    %22 = arith.addf %20, %21 : vector<16x1xf32>
    %23 = math.rsqrt %22 : vector<16x1xf32>
    %24 = vector.broadcast %23 : vector<16x1xf32> to vector<16x128xf32>
    %25 = arith.mulf %15, %24 : vector<16x128xf32>
    %26 = vector.broadcast %4 : vector<1x128xf32> to vector<16x128xf32>
    %27 = arith.mulf %25, %26 : vector<16x128xf32>
    %28 = vector.broadcast %5 : vector<1x128xf32> to vector<16x128xf32>
    %29 = arith.addf %27, %28 : vector<16x128xf32>
    %c0_10 = arith.constant 0 : index
    %c0_11 = arith.constant 0 : index
    %30 = vector.load %arg1[%c0_10, %c0_11] : memref<16x16xf32, #tpu.memory_space<vmem>>, vector<16x16xf32>
    %31 = tpu.concatenate %30, %30, %30, %30 in 0 : vector<16x16xf32>, vector<16x16xf32>, vector<16x16xf32>, vector<16x16xf32> -> vector<64x16xf32>
    %c0_12 = arith.constant 0 : index
    %c0_13 = arith.constant 0 : index
    %c0_14 = arith.constant 0 : index
    %32 = vector.load %arg4[%c0_12, %c0_13, %c0_14] : memref<2x128x1536xbf16, #tpu.memory_space<vmem>>, vector<1x128x1536xbf16>
    %33 = vector.shape_cast %32 : vector<1x128x1536xbf16> to vector<128x1536xbf16>
    %c0_15 = arith.constant 0 : index
    %c0_16 = arith.constant 0 : index
    %c0_17 = arith.constant 0 : index
    %34 = vector.load %arg5[%c0_15, %c0_16, %c0_17] : memref<2x1x1536xf32, #tpu.memory_space<vmem>>, vector<1x1x1536xf32>
    %35 = vector.shape_cast %34 : vector<1x1x1536xf32> to vector<1x1536xf32>
    %36 = arith.truncf %29 : vector<16x128xf32> to vector<16x128xbf16>
    %cst_18 = arith.constant dense<0.000000e+00> : vector<16x1536xf32>
    %37 = tpu.matmul %36, %33, %cst_18 {dimension_numbers = #tpu.dot_dimension_numbers<[1], [0], [0], [1], [0, 0, 1, 1], [], []>} : vector<16x128xbf16>, vector<128x1536xbf16>, vector<16x1536xf32> -> vector<16x1536xf32>
    %38 = vector.broadcast %35 : vector<1x1536xf32> to vector<16x1536xf32>
    %39 = arith.addf %37, %38 : vector<16x1536xf32>
    %40 = arith.truncf %39 : vector<16x1536xf32> to vector<16x1536xbf16>
    %c0_19 = arith.constant 0 : index
    %c0_20 = arith.constant 0 : index
    %41 = vector.load %arg19[%c0_19, %c0_20] : memref<16x1536xbf16, #tpu.memory_space<vmem>>, vector<16x1536xbf16>
    tpu.vector_store %arg19[%c0_19, %c0_20], %40 {strides = array<i32>} : memref<16x1536xbf16, #tpu.memory_space<vmem>>, vector<16x1536xbf16>,
    %c0_21 = arith.constant 0 : index
    %c0_22 = arith.constant 0 : index
    %42 = vector.load %arg19[%c0_21, %c0_22] : memref<16x1536xbf16, #tpu.memory_space<vmem>>, vector<16x128xbf16>
    %c0_23 = arith.constant 0 : index
    %c512 = arith.constant 512 : index
    %43 = vector.load %arg19[%c0_23, %c512] : memref<16x1536xbf16, #tpu.memory_space<vmem>>, vector<16x128xbf16>
    %cst_24 = arith.constant dense<0.000000e+00> : vector<16x16xf32>
    %44 = tpu.matmul %42, %43, %cst_24 {dimension_numbers = #tpu.dot_dimension_numbers<[1], [1], [0], [0], [0, 0, 1, 0], [], []>} : vector<16x128xbf16>, vector<16x128xbf16>, vector<16x16xf32> -> vector<16x16xf32>
    %c0_25 = arith.constant 0 : index
    %c128 = arith.constant 128 : index
    %45 = vector.load %arg19[%c0_25, %c128] : memref<16x1536xbf16, #tpu.memory_space<vmem>>, vector<16x128xbf16>
    %c0_26 = arith.constant 0 : index
    %c640 = arith.constant 640 : index
    %46 = vector.load %arg19[%c0_26, %c640] : memref<16x1536xbf16, #tpu.memory_space<vmem>>, vector<16x128xbf16>
    %cst_27 = arith.constant dense<0.000000e+00> : vector<16x16xf32>
    %47 = tpu.matmul %45, %46, %cst_27 {dimension_numbers = #tpu.dot_dimension_numbers<[1], [1], [0], [0], [0, 0, 1, 0], [], []>} : vector<16x128xbf16>, vector<16x128xbf16>, vector<16x16xf32> -> vector<16x16xf32>
    %c0_28 = arith.constant 0 : index
    %c256 = arith.constant 256 : index
    %48 = vector.load %arg19[%c0_28, %c256] : memref<16x1536xbf16, #tpu.memory_space<vmem>>, vector<16x128xbf16>
    %c0_29 = arith.constant 0 : index
    %c768 = arith.constant 768 : index
    %49 = vector.load %arg19[%c0_29, %c768] : memref<16x1536xbf16, #tpu.memory_space<vmem>>, vector<16x128xbf16>
    %cst_30 = arith.constant dense<0.000000e+00> : vector<16x16xf32>
    %50 = tpu.matmul %48, %49, %cst_30 {dimension_numbers = #tpu.dot_dimension_numbers<[1], [1], [0], [0], [0, 0, 1, 0], [], []>} : vector<16x128xbf16>, vector<16x128xbf16>, vector<16x16xf32> -> vector<16x16xf32>
    %c0_31 = arith.constant 0 : index
    %c384 = arith.constant 384 : index
    %51 = vector.load %arg19[%c0_31, %c384] : memref<16x1536xbf16, #tpu.memory_space<vmem>>, vector<16x128xbf16>
    %c0_32 = arith.constant 0 : index
    %c896 = arith.constant 896 : index
    %52 = vector.load %arg19[%c0_32, %c896] : memref<16x1536xbf16, #tpu.memory_space<vmem>>, vector<16x128xbf16>
    %cst_33 = arith.constant dense<0.000000e+00> : vector<16x16xf32>
    %53 = tpu.matmul %51, %52, %cst_33 {dimension_numbers = #tpu.dot_dimension_numbers<[1], [1], [0], [0], [0, 0, 1, 0], [], []>} : vector<16x128xbf16>, vector<16x128xbf16>, vector<16x16xf32> -> vector<16x16xf32>
    %54 = tpu.concatenate %44, %47, %50, %53 in 0 : vector<16x16xf32>, vector<16x16xf32>, vector<16x16xf32>, vector<16x16xf32> -> vector<64x16xf32>
    %55 = arith.addf %54, %31 : vector<64x16xf32>
    %cst_34 = arith.constant dense<0xFF800000> : vector<64xf32>
    %56 = vector.multi_reduction <maximumf>, %55, %cst_34 [1] : vector<64x16xf32> to vector<64xf32>
    %57 = vector.shape_cast %56 : vector<64xf32> to vector<64x1xf32>
    %58 = vector.broadcast %57 : vector<64x1xf32> to vector<64x16xf32>
    %59 = arith.subf %55, %58 : vector<64x16xf32>
    %60 = math.exp %59 : vector<64x16xf32>
    %cst_35 = arith.constant dense<0.000000e+00> : vector<64xf32>
    %61 = vector.multi_reduction <add>, %60, %cst_35 [1] : vector<64x16xf32> to vector<64xf32>
    %62 = vector.shape_cast %61 : vector<64xf32> to vector<64x1xf32>
    %63 = vector.broadcast %62 : vector<64x1xf32> to vector<64x16xf32>
    %64 = arith.divf %60, %63 : vector<64x16xf32>
    %65 = arith.truncf %64 : vector<64x16xf32> to vector<64x16xbf16>
    %c0_36 = arith.constant 0 : index
    %c1024 = arith.constant 1024 : index
    %66 = vector.load %arg19[%c0_36, %c1024] : memref<16x1536xbf16, #tpu.memory_space<vmem>>, vector<16x128xbf16>
    %67 = vector.extract_strided_slice %65 {offsets = [0, 0], sizes = [16, 16], strides = [1, 1]} : vector<64x16xbf16> to vector<16x16xbf16>
    %cst_37 = arith.constant dense<0.000000e+00> : vector<16x128xf32>
    %68 = tpu.matmul %67, %66, %cst_37 {dimension_numbers = #tpu.dot_dimension_numbers<[1], [0], [0], [1], [0, 0, 1, 1], [], []>} : vector<16x16xbf16>, vector<16x128xbf16>, vector<16x128xf32> -> vector<16x128xf32>
    %69 = arith.truncf %68 : vector<16x128xf32> to vector<16x128xbf16>
    %c0_38 = arith.constant 0 : index
    %c0_39 = arith.constant 0 : index
    %70 = vector.load %arg20[%c0_38, %c0_39] : memref<16x512xbf16, #tpu.memory_space<vmem>>, vector<16x128xbf16>
    tpu.vector_store %arg20[%c0_38, %c0_39], %69 {strides = array<i32>} : memref<16x512xbf16, #tpu.memory_space<vmem>>, vector<16x128xbf16>,
    %c0_40 = arith.constant 0 : index
    %c1152 = arith.constant 1152 : index
    %71 = vector.load %arg19[%c0_40, %c1152] : memref<16x1536xbf16, #tpu.memory_space<vmem>>, vector<16x128xbf16>
    %72 = vector.extract_strided_slice %65 {offsets = [16, 0], sizes = [16, 16], strides = [1, 1]} : vector<64x16xbf16> to vector<16x16xbf16>
    %cst_41 = arith.constant dense<0.000000e+00> : vector<16x128xf32>
    %73 = tpu.matmul %72, %71, %cst_41 {dimension_numbers = #tpu.dot_dimension_numbers<[1], [0], [0], [1], [0, 0, 1, 1], [], []>} : vector<16x16xbf16>, vector<16x128xbf16>, vector<16x128xf32> -> vector<16x128xf32>
    %74 = arith.truncf %73 : vector<16x128xf32> to vector<16x128xbf16>
    %c0_42 = arith.constant 0 : index
    %c128_43 = arith.constant 128 : index
    %75 = vector.load %arg20[%c0_42, %c128_43] : memref<16x512xbf16, #tpu.memory_space<vmem>>, vector<16x128xbf16>
    tpu.vector_store %arg20[%c0_42, %c128_43], %74 {strides = array<i32>} : memref<16x512xbf16, #tpu.memory_space<vmem>>, vector<16x128xbf16>,
    %c0_44 = arith.constant 0 : index
    %c1280 = arith.constant 1280 : index
    %76 = vector.load %arg19[%c0_44, %c1280] : memref<16x1536xbf16, #tpu.memory_space<vmem>>, vector<16x128xbf16>
    %77 = vector.extract_strided_slice %65 {offsets = [32, 0], sizes = [16, 16], strides = [1, 1]} : vector<64x16xbf16> to vector<16x16xbf16>
    %cst_45 = arith.constant dense<0.000000e+00> : vector<16x128xf32>
    %78 = tpu.matmul %77, %76, %cst_45 {dimension_numbers = #tpu.dot_dimension_numbers<[1], [0], [0], [1], [0, 0, 1, 1], [], []>} : vector<16x16xbf16>, vector<16x128xbf16>, vector<16x128xf32> -> vector<16x128xf32>
    %79 = arith.truncf %78 : vector<16x128xf32> to vector<16x128xbf16>
    %c0_46 = arith.constant 0 : index
    %c256_47 = arith.constant 256 : index
    %80 = vector.load %arg20[%c0_46, %c256_47] : memref<16x512xbf16, #tpu.memory_space<vmem>>, vector<16x128xbf16>
    tpu.vector_store %arg20[%c0_46, %c256_47], %79 {strides = array<i32>} : memref<16x512xbf16, #tpu.memory_space<vmem>>, vector<16x128xbf16>,
    %c0_48 = arith.constant 0 : index
    %c1408 = arith.constant 1408 : index
    %81 = vector.load %arg19[%c0_48, %c1408] : memref<16x1536xbf16, #tpu.memory_space<vmem>>, vector<16x128xbf16>
    %82 = vector.extract_strided_slice %65 {offsets = [48, 0], sizes = [16, 16], strides = [1, 1]} : vector<64x16xbf16> to vector<16x16xbf16>
    %cst_49 = arith.constant dense<0.000000e+00> : vector<16x128xf32>
    %83 = tpu.matmul %82, %81, %cst_49 {dimension_numbers = #tpu.dot_dimension_numbers<[1], [0], [0], [1], [0, 0, 1, 1], [], []>} : vector<16x16xbf16>, vector<16x128xbf16>, vector<16x128xf32> -> vector<16x128xf32>
    %84 = arith.truncf %83 : vector<16x128xf32> to vector<16x128xbf16>
    %c0_50 = arith.constant 0 : index
    %c384_51 = arith.constant 384 : index
    %85 = vector.load %arg20[%c0_50, %c384_51] : memref<16x512xbf16, #tpu.memory_space<vmem>>, vector<16x128xbf16>
    tpu.vector_store %arg20[%c0_50, %c384_51], %84 {strides = array<i32>} : memref<16x512xbf16, #tpu.memory_space<vmem>>, vector<16x128xbf16>,
    %c0_52 = arith.constant 0 : index
    %c0_53 = arith.constant 0 : index
    %86 = vector.load %arg20[%c0_52, %c0_53] : memref<16x512xbf16, #tpu.memory_space<vmem>>, vector<16x512xbf16>
    %c0_54 = arith.constant 0 : index
    %c0_55 = arith.constant 0 : index
    %c0_56 = arith.constant 0 : index
    %87 = vector.load %arg6[%c0_54, %c0_55, %c0_56] : memref<2x512x128xbf16, #tpu.memory_space<vmem>>, vector<1x512x128xbf16>
    %88 = vector.shape_cast %87 : vector<1x512x128xbf16> to vector<512x128xbf16>
    %c0_57 = arith.constant 0 : index
    %c0_58 = arith.constant 0 : index
    %c0_59 = arith.constant 0 : index
    %89 = vector.load %arg7[%c0_57, %c0_58, %c0_59] : memref<2x1x128xf32, #tpu.memory_space<vmem>>, vector<1x1x128xf32>
    %90 = vector.shape_cast %89 : vector<1x1x128xf32> to vector<1x128xf32>
    %cst_60 = arith.constant dense<0.000000e+00> : vector<16x128xf32>
    %91 = tpu.matmul %86, %88, %cst_60 {dimension_numbers = #tpu.dot_dimension_numbers<[1], [0], [0], [1], [0, 0, 1, 1], [], []>} : vector<16x512xbf16>, vector<512x128xbf16>, vector<16x128xf32> -> vector<16x128xf32>
    %92 = vector.broadcast %90 : vector<1x128xf32> to vector<16x128xf32>
    %93 = arith.addf %91, %92 : vector<16x128xf32>
    %94 = arith.addf %93, %29 : vector<16x128xf32>
    %c0_61 = arith.constant 0 : index
    %c0_62 = arith.constant 0 : index
    %c0_63 = arith.constant 0 : index
    %95 = vector.load %arg8[%c0_61, %c0_62, %c0_63] : memref<2x1x128xf32, #tpu.memory_space<vmem>>, vector<1x1x128xf32>
    %96 = vector.shape_cast %95 : vector<1x1x128xf32> to vector<1x128xf32>
    %c0_64 = arith.constant 0 : index
    %c0_65 = arith.constant 0 : index
    %c0_66 = arith.constant 0 : index
    %97 = vector.load %arg9[%c0_64, %c0_65, %c0_66] : memref<2x1x128xf32, #tpu.memory_space<vmem>>, vector<1x1x128xf32>
    %98 = vector.shape_cast %97 : vector<1x1x128xf32> to vector<1x128xf32>
    %cst_67 = arith.constant dense<0.000000e+00> : vector<16xf32>
    %99 = vector.multi_reduction <add>, %94, %cst_67 [1] : vector<16x128xf32> to vector<16xf32>
    %100 = vector.shape_cast %99 : vector<16xf32> to vector<16x1xf32>
    %cst_68 = arith.constant 3.200000e+01 : f32
    %101 = vector.broadcast %cst_68 : f32 to vector<16x1xf32>
    %102 = arith.divf %100, %101 : vector<16x1xf32>
    %103 = vector.broadcast %102 : vector<16x1xf32> to vector<16x128xf32>
    %104 = arith.subf %94, %103 : vector<16x128xf32>
    %cst_69 = arith.constant 0.000000e+00 : f32
    %105 = vector.shape_cast %2 : vector<1x128xi1> to vector<1x128xi1>
    %106 = vector.broadcast %105 : vector<1x128xi1> to vector<16x128xi1>
    %107 = vector.broadcast %cst_69 : f32 to vector<16x128xf32>
    %108 = arith.select %106, %104, %107 : vector<16x128xi1>, vector<16x128xf32>
    %109 = arith.mulf %108, %108 : vector<16x128xf32>
    %cst_70 = arith.constant dense<0.000000e+00> : vector<16xf32>
    %110 = vector.multi_reduction <add>, %109, %cst_70 [1] : vector<16x128xf32> to vector<16xf32>
    %111 = vector.shape_cast %110 : vector<16xf32> to vector<16x1xf32>
    %cst_71 = arith.constant 3.200000e+01 : f32
    %112 = vector.broadcast %cst_71 : f32 to vector<16x1xf32>
    %113 = arith.divf %111, %112 : vector<16x1xf32>
    %cst_72 = arith.constant 9.99999996E-13 : f32
    %114 = vector.broadcast %cst_72 : f32 to vector<16x1xf32>
    %115 = arith.addf %113, %114 : vector<16x1xf32>
    %116 = math.rsqrt %115 : vector<16x1xf32>
    %117 = vector.broadcast %116 : vector<16x1xf32> to vector<16x128xf32>
    %118 = arith.mulf %108, %117 : vector<16x128xf32>
    %119 = vector.broadcast %96 : vector<1x128xf32> to vector<16x128xf32>
    %120 = arith.mulf %118, %119 : vector<16x128xf32>
    %121 = vector.broadcast %98 : vector<1x128xf32> to vector<16x128xf32>
    %122 = arith.addf %120, %121 : vector<16x128xf32>
    %c0_73 = arith.constant 0 : index
    %c0_74 = arith.constant 0 : index
    %c0_75 = arith.constant 0 : index
    %123 = vector.load %arg10[%c0_73, %c0_74, %c0_75] : memref<2x128x128xbf16, #tpu.memory_space<vmem>>, vector<1x128x128xbf16>
    %124 = vector.shape_cast %123 : vector<1x128x128xbf16> to vector<128x128xbf16>
    %c0_76 = arith.constant 0 : index
    %c0_77 = arith.constant 0 : index
    %c0_78 = arith.constant 0 : index
    %125 = vector.load %arg11[%c0_76, %c0_77, %c0_78] : memref<2x1x128xf32, #tpu.memory_space<vmem>>, vector<1x1x128xf32>
    %126 = vector.shape_cast %125 : vector<1x1x128xf32> to vector<1x128xf32>
    %127 = arith.truncf %122 : vector<16x128xf32> to vector<16x128xbf16>
    %cst_79 = arith.constant dense<0.000000e+00> : vector<16x128xf32>
    %128 = tpu.matmul %127, %124, %cst_79 {dimension_numbers = #tpu.dot_dimension_numbers<[1], [0], [0], [1], [0, 0, 1, 1], [], []>} : vector<16x128xbf16>, vector<128x128xbf16>, vector<16x128xf32> -> vector<16x128xf32>
    %129 = vector.broadcast %126 : vector<1x128xf32> to vector<16x128xf32>
    %130 = arith.addf %128, %129 : vector<16x128xf32>
    %131 = arith.mulf %130, %130 : vector<16x128xf32>
    %132 = arith.mulf %130, %131 : vector<16x128xf32>
    %cst_80 = arith.constant 4.471500e-02 : f32
    %133 = vector.broadcast %cst_80 : f32 to vector<16x128xf32>
    %134 = arith.mulf %133, %132 : vector<16x128xf32>
    %135 = arith.addf %130, %134 : vector<16x128xf32>
    %cst_81 = arith.constant 0.797884583 : f32
    %136 = vector.broadcast %cst_81 : f32 to vector<16x128xf32>
    %137 = arith.mulf %136, %135 : vector<16x128xf32>
    %138 = math.tanh %137 : vector<16x128xf32>
    %cst_82 = arith.constant 1.000000e+00 : f32
    %139 = vector.broadcast %cst_82 : f32 to vector<16x128xf32>
    %140 = arith.addf %139, %138 : vector<16x128xf32>
    %cst_83 = arith.constant 5.000000e-01 : f32
    %141 = vector.broadcast %cst_83 : f32 to vector<16x128xf32>
    %142 = arith.mulf %141, %140 : vector<16x128xf32>
    %143 = arith.mulf %130, %142 : vector<16x128xf32>
    %c0_84 = arith.constant 0 : index
    %c0_85 = arith.constant 0 : index
    %c0_86 = arith.constant 0 : index
    %144 = vector.load %arg12[%c0_84, %c0_85, %c0_86] : memref<2x128x128xbf16, #tpu.memory_space<vmem>>, vector<1x128x128xbf16>
    %145 = vector.shape_cast %144 : vector<1x128x128xbf16> to vector<128x128xbf16>
    %c0_87 = arith.constant 0 : index
    %c0_88 = arith.constant 0 : index
    %c0_89 = arith.constant 0 : index
    %146 = vector.load %arg13[%c0_87, %c0_88, %c0_89] : memref<2x1x128xf32, #tpu.memory_space<vmem>>, vector<1x1x128xf32>
    %147 = vector.shape_cast %146 : vector<1x1x128xf32> to vector<1x128xf32>
    %148 = arith.truncf %143 : vector<16x128xf32> to vector<16x128xbf16>
    %cst_90 = arith.constant dense<0.000000e+00> : vector<16x128xf32>
    %149 = tpu.matmul %148, %145, %cst_90 {dimension_numbers = #tpu.dot_dimension_numbers<[1], [0], [0], [1], [0, 0, 1, 1], [], []>} : vector<16x128xbf16>, vector<128x128xbf16>, vector<16x128xf32> -> vector<16x128xf32>
    %150 = vector.broadcast %147 : vector<1x128xf32> to vector<16x128xf32>
    %151 = arith.addf %149, %150 : vector<16x128xf32>
    %152 = arith.addf %151, %122 : vector<16x128xf32>
    %c0_91 = arith.constant 0 : index
    %c0_92 = arith.constant 0 : index
    %c0_93 = arith.constant 0 : index
    %153 = vector.load %arg14[%c0_91, %c0_92, %c0_93] : memref<2x1x128xf32, #tpu.memory_space<vmem>>, vector<1x1x128xf32>
    %154 = vector.shape_cast %153 : vector<1x1x128xf32> to vector<1x128xf32>
    %c0_94 = arith.constant 0 : index
    %c0_95 = arith.constant 0 : index
    %c0_96 = arith.constant 0 : index
    %155 = vector.load %arg15[%c0_94, %c0_95, %c0_96] : memref<2x1x128xf32, #tpu.memory_space<vmem>>, vector<1x1x128xf32>
    %156 = vector.shape_cast %155 : vector<1x1x128xf32> to vector<1x128xf32>
    %cst_97 = arith.constant dense<0.000000e+00> : vector<16xf32>
    %157 = vector.multi_reduction <add>, %152, %cst_97 [1] : vector<16x128xf32> to vector<16xf32>
    %158 = vector.shape_cast %157 : vector<16xf32> to vector<16x1xf32>
    %cst_98 = arith.constant 3.200000e+01 : f32
    %159 = vector.broadcast %cst_98 : f32 to vector<16x1xf32>
    %160 = arith.divf %158, %159 : vector<16x1xf32>
    %161 = vector.broadcast %160 : vector<16x1xf32> to vector<16x128xf32>
    %162 = arith.subf %152, %161 : vector<16x128xf32>
    %cst_99 = arith.constant 0.000000e+00 : f32
    %163 = vector.shape_cast %2 : vector<1x128xi1> to vector<1x128xi1>
    %164 = vector.broadcast %163 : vector<1x128xi1> to vector<16x128xi1>
    %165 = vector.broadcast %cst_99 : f32 to vector<16x128xf32>
    %166 = arith.select %164, %162, %165 : vector<16x128xi1>, vector<16x128xf32>
    %167 = arith.mulf %166, %166 : vector<16x128xf32>
    %cst_100 = arith.constant dense<0.000000e+00> : vector<16xf32>
    %168 = vector.multi_reduction <add>, %167, %cst_100 [1] : vector<16x128xf32> to vector<16xf32>
    %169 = vector.shape_cast %168 : vector<16xf32> to vector<16x1xf32>
    %cst_101 = arith.constant 3.200000e+01 : f32
    %170 = vector.broadcast %cst_101 : f32 to vector<16x1xf32>
    %171 = arith.divf %169, %170 : vector<16x1xf32>
    %cst_102 = arith.constant 9.99999996E-13 : f32
    %172 = vector.broadcast %cst_102 : f32 to vector<16x1xf32>
    %173 = arith.addf %171, %172 : vector<16x1xf32>
    %174 = math.rsqrt %173 : vector<16x1xf32>
    %175 = vector.broadcast %174 : vector<16x1xf32> to vector<16x128xf32>
    %176 = arith.mulf %166, %175 : vector<16x128xf32>
    %177 = vector.broadcast %154 : vector<1x128xf32> to vector<16x128xf32>
    %178 = arith.mulf %176, %177 : vector<16x128xf32>
    %179 = vector.broadcast %156 : vector<1x128xf32> to vector<16x128xf32>
    %180 = arith.addf %178, %179 : vector<16x128xf32>
    %c1 = arith.constant 1 : index
    %c0_103 = arith.constant 0 : index
    %c0_104 = arith.constant 0 : index
    %181 = vector.load %arg4[%c1, %c0_103, %c0_104] : memref<2x128x1536xbf16, #tpu.memory_space<vmem>>, vector<1x128x1536xbf16>
    %182 = vector.shape_cast %181 : vector<1x128x1536xbf16> to vector<128x1536xbf16>
    %c1_105 = arith.constant 1 : index
    %c0_106 = arith.constant 0 : index
    %c0_107 = arith.constant 0 : index
    %183 = vector.load %arg5[%c1_105, %c0_106, %c0_107] : memref<2x1x1536xf32, #tpu.memory_space<vmem>>, vector<1x1x1536xf32>
    %184 = vector.shape_cast %183 : vector<1x1x1536xf32> to vector<1x1536xf32>
    %185 = arith.truncf %180 : vector<16x128xf32> to vector<16x128xbf16>
    %cst_108 = arith.constant dense<0.000000e+00> : vector<16x1536xf32>
    %186 = tpu.matmul %185, %182, %cst_108 {dimension_numbers = #tpu.dot_dimension_numbers<[1], [0], [0], [1], [0, 0, 1, 1], [], []>} : vector<16x128xbf16>, vector<128x1536xbf16>, vector<16x1536xf32> -> vector<16x1536xf32>
    %187 = vector.broadcast %184 : vector<1x1536xf32> to vector<16x1536xf32>
    %188 = arith.addf %186, %187 : vector<16x1536xf32>
    %189 = arith.truncf %188 : vector<16x1536xf32> to vector<16x1536xbf16>
    %c0_109 = arith.constant 0 : index
    %c0_110 = arith.constant 0 : index
    %190 = vector.load %arg19[%c0_109, %c0_110] : memref<16x1536xbf16, #tpu.memory_space<vmem>>, vector<16x1536xbf16>
    tpu.vector_store %arg19[%c0_109, %c0_110], %189 {strides = array<i32>} : memref<16x1536xbf16, #tpu.memory_space<vmem>>, vector<16x1536xbf16>,
    %c0_111 = arith.constant 0 : index
    %c0_112 = arith.constant 0 : index
    %191 = vector.load %arg19[%c0_111, %c0_112] : memref<16x1536xbf16, #tpu.memory_space<vmem>>, vector<16x128xbf16>
    %c0_113 = arith.constant 0 : index
    %c512_114 = arith.constant 512 : index
    %192 = vector.load %arg19[%c0_113, %c512_114] : memref<16x1536xbf16, #tpu.memory_space<vmem>>, vector<16x128xbf16>
    %cst_115 = arith.constant dense<0.000000e+00> : vector<16x16xf32>
    %193 = tpu.matmul %191, %192, %cst_115 {dimension_numbers = #tpu.dot_dimension_numbers<[1], [1], [0], [0], [0, 0, 1, 0], [], []>} : vector<16x128xbf16>, vector<16x128xbf16>, vector<16x16xf32> -> vector<16x16xf32>
    %c0_116 = arith.constant 0 : index
    %c128_117 = arith.constant 128 : index
    %194 = vector.load %arg19[%c0_116, %c128_117] : memref<16x1536xbf16, #tpu.memory_space<vmem>>, vector<16x128xbf16>
    %c0_118 = arith.constant 0 : index
    %c640_119 = arith.constant 640 : index
    %195 = vector.load %arg19[%c0_118, %c640_119] : memref<16x1536xbf16, #tpu.memory_space<vmem>>, vector<16x128xbf16>
    %cst_120 = arith.constant dense<0.000000e+00> : vector<16x16xf32>
    %196 = tpu.matmul %194, %195, %cst_120 {dimension_numbers = #tpu.dot_dimension_numbers<[1], [1], [0], [0], [0, 0, 1, 0], [], []>} : vector<16x128xbf16>, vector<16x128xbf16>, vector<16x16xf32> -> vector<16x16xf32>
    %c0_121 = arith.constant 0 : index
    %c256_122 = arith.constant 256 : index
    %197 = vector.load %arg19[%c0_121, %c256_122] : memref<16x1536xbf16, #tpu.memory_space<vmem>>, vector<16x128xbf16>
    %c0_123 = arith.constant 0 : index
    %c768_124 = arith.constant 768 : index
    %198 = vector.load %arg19[%c0_123, %c768_124] : memref<16x1536xbf16, #tpu.memory_space<vmem>>, vector<16x128xbf16>
    %cst_125 = arith.constant dense<0.000000e+00> : vector<16x16xf32>
    %199 = tpu.matmul %197, %198, %cst_125 {dimension_numbers = #tpu.dot_dimension_numbers<[1], [1], [0], [0], [0, 0, 1, 0], [], []>} : vector<16x128xbf16>, vector<16x128xbf16>, vector<16x16xf32> -> vector<16x16xf32>
    %c0_126 = arith.constant 0 : index
    %c384_127 = arith.constant 384 : index
    %200 = vector.load %arg19[%c0_126, %c384_127] : memref<16x1536xbf16, #tpu.memory_space<vmem>>, vector<16x128xbf16>
    %c0_128 = arith.constant 0 : index
    %c896_129 = arith.constant 896 : index
    %201 = vector.load %arg19[%c0_128, %c896_129] : memref<16x1536xbf16, #tpu.memory_space<vmem>>, vector<16x128xbf16>
    %cst_130 = arith.constant dense<0.000000e+00> : vector<16x16xf32>
    %202 = tpu.matmul %200, %201, %cst_130 {dimension_numbers = #tpu.dot_dimension_numbers<[1], [1], [0], [0], [0, 0, 1, 0], [], []>} : vector<16x128xbf16>, vector<16x128xbf16>, vector<16x16xf32> -> vector<16x16xf32>
    %203 = tpu.concatenate %193, %196, %199, %202 in 0 : vector<16x16xf32>, vector<16x16xf32>, vector<16x16xf32>, vector<16x16xf32> -> vector<64x16xf32>
    %204 = arith.addf %203, %31 : vector<64x16xf32>
    %cst_131 = arith.constant dense<0xFF800000> : vector<64xf32>
    %205 = vector.multi_reduction <maximumf>, %204, %cst_131 [1] : vector<64x16xf32> to vector<64xf32>
    %206 = vector.shape_cast %205 : vector<64xf32> to vector<64x1xf32>
    %207 = vector.broadcast %206 : vector<64x1xf32> to vector<64x16xf32>
    %208 = arith.subf %204, %207 : vector<64x16xf32>
    %209 = math.exp %208 : vector<64x16xf32>
    %cst_132 = arith.constant dense<0.000000e+00> : vector<64xf32>
    %210 = vector.multi_reduction <add>, %209, %cst_132 [1] : vector<64x16xf32> to vector<64xf32>
    %211 = vector.shape_cast %210 : vector<64xf32> to vector<64x1xf32>
    %212 = vector.broadcast %211 : vector<64x1xf32> to vector<64x16xf32>
    %213 = arith.divf %209, %212 : vector<64x16xf32>
    %214 = arith.truncf %213 : vector<64x16xf32> to vector<64x16xbf16>
    %c0_133 = arith.constant 0 : index
    %c1024_134 = arith.constant 1024 : index
    %215 = vector.load %arg19[%c0_133, %c1024_134] : memref<16x1536xbf16, #tpu.memory_space<vmem>>, vector<16x128xbf16>
    %216 = vector.extract_strided_slice %214 {offsets = [0, 0], sizes = [16, 16], strides = [1, 1]} : vector<64x16xbf16> to vector<16x16xbf16>
    %cst_135 = arith.constant dense<0.000000e+00> : vector<16x128xf32>
    %217 = tpu.matmul %216, %215, %cst_135 {dimension_numbers = #tpu.dot_dimension_numbers<[1], [0], [0], [1], [0, 0, 1, 1], [], []>} : vector<16x16xbf16>, vector<16x128xbf16>, vector<16x128xf32> -> vector<16x128xf32>
    %218 = arith.truncf %217 : vector<16x128xf32> to vector<16x128xbf16>
    %c0_136 = arith.constant 0 : index
    %c0_137 = arith.constant 0 : index
    %219 = vector.load %arg20[%c0_136, %c0_137] : memref<16x512xbf16, #tpu.memory_space<vmem>>, vector<16x128xbf16>
    tpu.vector_store %arg20[%c0_136, %c0_137], %218 {strides = array<i32>} : memref<16x512xbf16, #tpu.memory_space<vmem>>, vector<16x128xbf16>,
    %c0_138 = arith.constant 0 : index
    %c1152_139 = arith.constant 1152 : index
    %220 = vector.load %arg19[%c0_138, %c1152_139] : memref<16x1536xbf16, #tpu.memory_space<vmem>>, vector<16x128xbf16>
    %221 = vector.extract_strided_slice %214 {offsets = [16, 0], sizes = [16, 16], strides = [1, 1]} : vector<64x16xbf16> to vector<16x16xbf16>
    %cst_140 = arith.constant dense<0.000000e+00> : vector<16x128xf32>
    %222 = tpu.matmul %221, %220, %cst_140 {dimension_numbers = #tpu.dot_dimension_numbers<[1], [0], [0], [1], [0, 0, 1, 1], [], []>} : vector<16x16xbf16>, vector<16x128xbf16>, vector<16x128xf32> -> vector<16x128xf32>
    %223 = arith.truncf %222 : vector<16x128xf32> to vector<16x128xbf16>
    %c0_141 = arith.constant 0 : index
    %c128_142 = arith.constant 128 : index
    %224 = vector.load %arg20[%c0_141, %c128_142] : memref<16x512xbf16, #tpu.memory_space<vmem>>, vector<16x128xbf16>
    tpu.vector_store %arg20[%c0_141, %c128_142], %223 {strides = array<i32>} : memref<16x512xbf16, #tpu.memory_space<vmem>>, vector<16x128xbf16>,
    %c0_143 = arith.constant 0 : index
    %c1280_144 = arith.constant 1280 : index
    %225 = vector.load %arg19[%c0_143, %c1280_144] : memref<16x1536xbf16, #tpu.memory_space<vmem>>, vector<16x128xbf16>
    %226 = vector.extract_strided_slice %214 {offsets = [32, 0], sizes = [16, 16], strides = [1, 1]} : vector<64x16xbf16> to vector<16x16xbf16>
    %cst_145 = arith.constant dense<0.000000e+00> : vector<16x128xf32>
    %227 = tpu.matmul %226, %225, %cst_145 {dimension_numbers = #tpu.dot_dimension_numbers<[1], [0], [0], [1], [0, 0, 1, 1], [], []>} : vector<16x16xbf16>, vector<16x128xbf16>, vector<16x128xf32> -> vector<16x128xf32>
    %228 = arith.truncf %227 : vector<16x128xf32> to vector<16x128xbf16>
    %c0_146 = arith.constant 0 : index
    %c256_147 = arith.constant 256 : index
    %229 = vector.load %arg20[%c0_146, %c256_147] : memref<16x512xbf16, #tpu.memory_space<vmem>>, vector<16x128xbf16>
    tpu.vector_store %arg20[%c0_146, %c256_147], %228 {strides = array<i32>} : memref<16x512xbf16, #tpu.memory_space<vmem>>, vector<16x128xbf16>,
    %c0_148 = arith.constant 0 : index
    %c1408_149 = arith.constant 1408 : index
    %230 = vector.load %arg19[%c0_148, %c1408_149] : memref<16x1536xbf16, #tpu.memory_space<vmem>>, vector<16x128xbf16>
    %231 = vector.extract_strided_slice %214 {offsets = [48, 0], sizes = [16, 16], strides = [1, 1]} : vector<64x16xbf16> to vector<16x16xbf16>
    %cst_150 = arith.constant dense<0.000000e+00> : vector<16x128xf32>
    %232 = tpu.matmul %231, %230, %cst_150 {dimension_numbers = #tpu.dot_dimension_numbers<[1], [0], [0], [1], [0, 0, 1, 1], [], []>} : vector<16x16xbf16>, vector<16x128xbf16>, vector<16x128xf32> -> vector<16x128xf32>
    %233 = arith.truncf %232 : vector<16x128xf32> to vector<16x128xbf16>
    %c0_151 = arith.constant 0 : index
    %c384_152 = arith.constant 384 : index
    %234 = vector.load %arg20[%c0_151, %c384_152] : memref<16x512xbf16, #tpu.memory_space<vmem>>, vector<16x128xbf16>
    tpu.vector_store %arg20[%c0_151, %c384_152], %233 {strides = array<i32>} : memref<16x512xbf16, #tpu.memory_space<vmem>>, vector<16x128xbf16>,
    %c0_153 = arith.constant 0 : index
    %c0_154 = arith.constant 0 : index
    %235 = vector.load %arg20[%c0_153, %c0_154] : memref<16x512xbf16, #tpu.memory_space<vmem>>, vector<16x512xbf16>
    %c1_155 = arith.constant 1 : index
    %c0_156 = arith.constant 0 : index
    %c0_157 = arith.constant 0 : index
    %236 = vector.load %arg6[%c1_155, %c0_156, %c0_157] : memref<2x512x128xbf16, #tpu.memory_space<vmem>>, vector<1x512x128xbf16>
    %237 = vector.shape_cast %236 : vector<1x512x128xbf16> to vector<512x128xbf16>
    %c1_158 = arith.constant 1 : index
    %c0_159 = arith.constant 0 : index
    %c0_160 = arith.constant 0 : index
    %238 = vector.load %arg7[%c1_158, %c0_159, %c0_160] : memref<2x1x128xf32, #tpu.memory_space<vmem>>, vector<1x1x128xf32>
    %239 = vector.shape_cast %238 : vector<1x1x128xf32> to vector<1x128xf32>
    %cst_161 = arith.constant dense<0.000000e+00> : vector<16x128xf32>
    %240 = tpu.matmul %235, %237, %cst_161 {dimension_numbers = #tpu.dot_dimension_numbers<[1], [0], [0], [1], [0, 0, 1, 1], [], []>} : vector<16x512xbf16>, vector<512x128xbf16>, vector<16x128xf32> -> vector<16x128xf32>
    %241 = vector.broadcast %239 : vector<1x128xf32> to vector<16x128xf32>
    %242 = arith.addf %240, %241 : vector<16x128xf32>
    %243 = arith.addf %242, %180 : vector<16x128xf32>
    %c1_162 = arith.constant 1 : index
    %c0_163 = arith.constant 0 : index
    %c0_164 = arith.constant 0 : index
    %244 = vector.load %arg8[%c1_162, %c0_163, %c0_164] : memref<2x1x128xf32, #tpu.memory_space<vmem>>, vector<1x1x128xf32>
    %245 = vector.shape_cast %244 : vector<1x1x128xf32> to vector<1x128xf32>
    %c1_165 = arith.constant 1 : index
    %c0_166 = arith.constant 0 : index
    %c0_167 = arith.constant 0 : index
    %246 = vector.load %arg9[%c1_165, %c0_166, %c0_167] : memref<2x1x128xf32, #tpu.memory_space<vmem>>, vector<1x1x128xf32>
    %247 = vector.shape_cast %246 : vector<1x1x128xf32> to vector<1x128xf32>
    %cst_168 = arith.constant dense<0.000000e+00> : vector<16xf32>
    %248 = vector.multi_reduction <add>, %243, %cst_168 [1] : vector<16x128xf32> to vector<16xf32>
    %249 = vector.shape_cast %248 : vector<16xf32> to vector<16x1xf32>
    %cst_169 = arith.constant 3.200000e+01 : f32
    %250 = vector.broadcast %cst_169 : f32 to vector<16x1xf32>
    %251 = arith.divf %249, %250 : vector<16x1xf32>
    %252 = vector.broadcast %251 : vector<16x1xf32> to vector<16x128xf32>
    %253 = arith.subf %243, %252 : vector<16x128xf32>
    %cst_170 = arith.constant 0.000000e+00 : f32
    %254 = vector.shape_cast %2 : vector<1x128xi1> to vector<1x128xi1>
    %255 = vector.broadcast %254 : vector<1x128xi1> to vector<16x128xi1>
    %256 = vector.broadcast %cst_170 : f32 to vector<16x128xf32>
    %257 = arith.select %255, %253, %256 : vector<16x128xi1>, vector<16x128xf32>
    %258 = arith.mulf %257, %257 : vector<16x128xf32>
    %cst_171 = arith.constant dense<0.000000e+00> : vector<16xf32>
    %259 = vector.multi_reduction <add>, %258, %cst_171 [1] : vector<16x128xf32> to vector<16xf32>
    %260 = vector.shape_cast %259 : vector<16xf32> to vector<16x1xf32>
    %cst_172 = arith.constant 3.200000e+01 : f32
    %261 = vector.broadcast %cst_172 : f32 to vector<16x1xf32>
    %262 = arith.divf %260, %261 : vector<16x1xf32>
    %cst_173 = arith.constant 9.99999996E-13 : f32
    %263 = vector.broadcast %cst_173 : f32 to vector<16x1xf32>
    %264 = arith.addf %262, %263 : vector<16x1xf32>
    %265 = math.rsqrt %264 : vector<16x1xf32>
    %266 = vector.broadcast %265 : vector<16x1xf32> to vector<16x128xf32>
    %267 = arith.mulf %257, %266 : vector<16x128xf32>
    %268 = vector.broadcast %245 : vector<1x128xf32> to vector<16x128xf32>
    %269 = arith.mulf %267, %268 : vector<16x128xf32>
    %270 = vector.broadcast %247 : vector<1x128xf32> to vector<16x128xf32>
    %271 = arith.addf %269, %270 : vector<16x128xf32>
    %c1_174 = arith.constant 1 : index
    %c0_175 = arith.constant 0 : index
    %c0_176 = arith.constant 0 : index
    %272 = vector.load %arg10[%c1_174, %c0_175, %c0_176] : memref<2x128x128xbf16, #tpu.memory_space<vmem>>, vector<1x128x128xbf16>
    %273 = vector.shape_cast %272 : vector<1x128x128xbf16> to vector<128x128xbf16>
    %c1_177 = arith.constant 1 : index
    %c0_178 = arith.constant 0 : index
    %c0_179 = arith.constant 0 : index
    %274 = vector.load %arg11[%c1_177, %c0_178, %c0_179] : memref<2x1x128xf32, #tpu.memory_space<vmem>>, vector<1x1x128xf32>
    %275 = vector.shape_cast %274 : vector<1x1x128xf32> to vector<1x128xf32>
    %276 = arith.truncf %271 : vector<16x128xf32> to vector<16x128xbf16>
    %cst_180 = arith.constant dense<0.000000e+00> : vector<16x128xf32>
    %277 = tpu.matmul %276, %273, %cst_180 {dimension_numbers = #tpu.dot_dimension_numbers<[1], [0], [0], [1], [0, 0, 1, 1], [], []>} : vector<16x128xbf16>, vector<128x128xbf16>, vector<16x128xf32> -> vector<16x128xf32>
    %278 = vector.broadcast %275 : vector<1x128xf32> to vector<16x128xf32>
    %279 = arith.addf %277, %278 : vector<16x128xf32>
    %280 = arith.mulf %279, %279 : vector<16x128xf32>
    %281 = arith.mulf %279, %280 : vector<16x128xf32>
    %cst_181 = arith.constant 4.471500e-02 : f32
    %282 = vector.broadcast %cst_181 : f32 to vector<16x128xf32>
    %283 = arith.mulf %282, %281 : vector<16x128xf32>
    %284 = arith.addf %279, %283 : vector<16x128xf32>
    %cst_182 = arith.constant 0.797884583 : f32
    %285 = vector.broadcast %cst_182 : f32 to vector<16x128xf32>
    %286 = arith.mulf %285, %284 : vector<16x128xf32>
    %287 = math.tanh %286 : vector<16x128xf32>
    %cst_183 = arith.constant 1.000000e+00 : f32
    %288 = vector.broadcast %cst_183 : f32 to vector<16x128xf32>
    %289 = arith.addf %288, %287 : vector<16x128xf32>
    %cst_184 = arith.constant 5.000000e-01 : f32
    %290 = vector.broadcast %cst_184 : f32 to vector<16x128xf32>
    %291 = arith.mulf %290, %289 : vector<16x128xf32>
    %292 = arith.mulf %279, %291 : vector<16x128xf32>
    %c1_185 = arith.constant 1 : index
    %c0_186 = arith.constant 0 : index
    %c0_187 = arith.constant 0 : index
    %293 = vector.load %arg12[%c1_185, %c0_186, %c0_187] : memref<2x128x128xbf16, #tpu.memory_space<vmem>>, vector<1x128x128xbf16>
    %294 = vector.shape_cast %293 : vector<1x128x128xbf16> to vector<128x128xbf16>
    %c1_188 = arith.constant 1 : index
    %c0_189 = arith.constant 0 : index
    %c0_190 = arith.constant 0 : index
    %295 = vector.load %arg13[%c1_188, %c0_189, %c0_190] : memref<2x1x128xf32, #tpu.memory_space<vmem>>, vector<1x1x128xf32>
    %296 = vector.shape_cast %295 : vector<1x1x128xf32> to vector<1x128xf32>
    %297 = arith.truncf %292 : vector<16x128xf32> to vector<16x128xbf16>
    %cst_191 = arith.constant dense<0.000000e+00> : vector<16x128xf32>
    %298 = tpu.matmul %297, %294, %cst_191 {dimension_numbers = #tpu.dot_dimension_numbers<[1], [0], [0], [1], [0, 0, 1, 1], [], []>} : vector<16x128xbf16>, vector<128x128xbf16>, vector<16x128xf32> -> vector<16x128xf32>
    %299 = vector.broadcast %296 : vector<1x128xf32> to vector<16x128xf32>
    %300 = arith.addf %298, %299 : vector<16x128xf32>
    %301 = arith.addf %300, %271 : vector<16x128xf32>
    %c1_192 = arith.constant 1 : index
    %c0_193 = arith.constant 0 : index
    %c0_194 = arith.constant 0 : index
    %302 = vector.load %arg14[%c1_192, %c0_193, %c0_194] : memref<2x1x128xf32, #tpu.memory_space<vmem>>, vector<1x1x128xf32>
    %303 = vector.shape_cast %302 : vector<1x1x128xf32> to vector<1x128xf32>
    %c1_195 = arith.constant 1 : index
    %c0_196 = arith.constant 0 : index
    %c0_197 = arith.constant 0 : index
    %304 = vector.load %arg15[%c1_195, %c0_196, %c0_197] : memref<2x1x128xf32, #tpu.memory_space<vmem>>, vector<1x1x128xf32>
    %305 = vector.shape_cast %304 : vector<1x1x128xf32> to vector<1x128xf32>
    %cst_198 = arith.constant dense<0.000000e+00> : vector<16xf32>
    %306 = vector.multi_reduction <add>, %301, %cst_198 [1] : vector<16x128xf32> to vector<16xf32>
    %307 = vector.shape_cast %306 : vector<16xf32> to vector<16x1xf32>
    %cst_199 = arith.constant 3.200000e+01 : f32
    %308 = vector.broadcast %cst_199 : f32 to vector<16x1xf32>
    %309 = arith.divf %307, %308 : vector<16x1xf32>
    %310 = vector.broadcast %309 : vector<16x1xf32> to vector<16x128xf32>
    %311 = arith.subf %301, %310 : vector<16x128xf32>
    %cst_200 = arith.constant 0.000000e+00 : f32
    %312 = vector.shape_cast %2 : vector<1x128xi1> to vector<1x128xi1>
    %313 = vector.broadcast %312 : vector<1x128xi1> to vector<16x128xi1>
    %314 = vector.broadcast %cst_200 : f32 to vector<16x128xf32>
    %315 = arith.select %313, %311, %314 : vector<16x128xi1>, vector<16x128xf32>
    %316 = arith.mulf %315, %315 : vector<16x128xf32>
    %cst_201 = arith.constant dense<0.000000e+00> : vector<16xf32>
    %317 = vector.multi_reduction <add>, %316, %cst_201 [1] : vector<16x128xf32> to vector<16xf32>
    %318 = vector.shape_cast %317 : vector<16xf32> to vector<16x1xf32>
    %cst_202 = arith.constant 3.200000e+01 : f32
    %319 = vector.broadcast %cst_202 : f32 to vector<16x1xf32>
    %320 = arith.divf %318, %319 : vector<16x1xf32>
    %cst_203 = arith.constant 9.99999996E-13 : f32
    %321 = vector.broadcast %cst_203 : f32 to vector<16x1xf32>
    %322 = arith.addf %320, %321 : vector<16x1xf32>
    %323 = math.rsqrt %322 : vector<16x1xf32>
    %324 = vector.broadcast %323 : vector<16x1xf32> to vector<16x128xf32>
    %325 = arith.mulf %315, %324 : vector<16x128xf32>
    %326 = vector.broadcast %303 : vector<1x128xf32> to vector<16x128xf32>
    %327 = arith.mulf %325, %326 : vector<16x128xf32>
    %328 = vector.broadcast %305 : vector<1x128xf32> to vector<16x128xf32>
    %329 = arith.addf %327, %328 : vector<16x128xf32>
    %c0_204 = arith.constant 0 : index
    %c0_205 = arith.constant 0 : index
    %330 = vector.load %arg16[%c0_204, %c0_205] : memref<128x128xbf16, #tpu.memory_space<vmem>>, vector<128x128xbf16>
    %c0_206 = arith.constant 0 : index
    %c0_207 = arith.constant 0 : index
    %331 = vector.load %arg17[%c0_206, %c0_207] : memref<1x128xf32, #tpu.memory_space<vmem>>, vector<1x128xf32>
    %332 = arith.truncf %329 : vector<16x128xf32> to vector<16x128xbf16>
    %cst_208 = arith.constant dense<0.000000e+00> : vector<16x128xf32>
    %333 = tpu.matmul %332, %330, %cst_208 {dimension_numbers = #tpu.dot_dimension_numbers<[1], [0], [0], [1], [0, 0, 1, 1], [], []>} : vector<16x128xbf16>, vector<128x128xbf16>, vector<16x128xf32> -> vector<16x128xf32>
    %334 = vector.broadcast %331 : vector<1x128xf32> to vector<16x128xf32>
    %335 = arith.addf %333, %334 : vector<16x128xf32>
    %c0_209 = arith.constant 0 : index
    %c0_210 = arith.constant 0 : index
    %336 = vector.load %arg18[%c0_209, %c0_210] : memref<16x128xf32, #tpu.memory_space<vmem>>, vector<16x128xf32>
    tpu.vector_store %arg18[%c0_209, %c0_210], %335 {strides = array<i32>} : memref<16x128xf32, #tpu.memory_space<vmem>>, vector<16x128xf32>,
    return
  }
}

</mosaic_0001>

<llo_original>
// kernel: tpu_custom_call.1
$region0: #{tpu_custom_call.1}
  #allocation0 [shape = 'u32[]', space=smem, size = 0x4, offset = 0x4, fixed_abs, tag = 'smem constant byte address 0x4 - core index']
  #allocation1 [shape = 'u32[144,128]{1,0:T(1,128)}', space=vmem, size = 0x12000, scoped, tag = 'internal scratch']
  #allocation2 [shape = 'bf16[16,1536]{1,0:T(16,128)(2,1)}', space=vmem, size = 0xc000, scoped, tag = 'scratch operand']
  #allocation3 [shape = 'bf16[16,512]{1,0:T(16,128)(2,1)}', space=vmem, size = 0x4000, scoped, tag = 'scratch operand']
  %s0 = inlined_call_operand.hbm [shape: f32[16,128], index: 0, kind: input, shape index: {}]
  %s1 = inlined_call_operand.hbm [shape: f32[16,16], index: 1, kind: input, shape index: {}]
  %s2 = inlined_call_operand.vmem [shape: f32[1,128], index: 2, kind: input, shape index: {}]
  %s3 = inlined_call_operand.hbm [shape: f32[1,128], index: 3, kind: input, shape index: {}]
  %s4 = inlined_call_operand.hbm [shape: bf16[2,128,1536], index: 4, kind: input, shape index: {}]
  %s5 = inlined_call_operand.hbm [shape: f32[2,1,1536], index: 5, kind: input, shape index: {}]
  %s6 = inlined_call_operand.hbm [shape: bf16[2,512,128], index: 6, kind: input, shape index: {}]
  %s7 = inlined_call_operand.vmem [shape: f32[2,1,128], index: 7, kind: input, shape index: {}]
  %s8 = inlined_call_operand.vmem [shape: f32[2,1,128], index: 8, kind: input, shape index: {}]
  %s9 = inlined_call_operand.vmem [shape: f32[2,1,128], index: 9, kind: input, shape index: {}]
  %s10 = inlined_call_operand.hbm [shape: bf16[2,128,128], index: 10, kind: input, shape index: {}]
  %s11 = inlined_call_operand.vmem [shape: f32[2,1,128], index: 11, kind: input, shape index: {}]
  %s12 = inlined_call_operand.hbm [shape: bf16[2,128,128], index: 12, kind: input, shape index: {}]
  %s13 = inlined_call_operand.vmem [shape: f32[2,1,128], index: 13, kind: input, shape index: {}]
  %s14 = inlined_call_operand.vmem [shape: f32[2,1,128], index: 14, kind: input, shape index: {}]
  %s15 = inlined_call_operand.vmem [shape: f32[2,1,128], index: 15, kind: input, shape index: {}]
  %s16 = inlined_call_operand.hbm [shape: bf16[128,128], index: 16, kind: input, shape index: {}]
  %s17 = inlined_call_operand.vmem [shape: f32[1,128], index: 17, kind: input, shape index: {}]
  %s18 = inlined_call_operand.hbm [shape: f32[16,128], index: 18, kind: output, shape index: {}]
  %s19 = sld [smem:[#allocation0]]
  $region118: #{tpu_custom_call.1} parent=0
    _
  %s21 = ssub.s32 1, %s19
  %s22 = scalar_select 0, %s21, %s19
  $region1: #{tpu_custom_call.1} parent=0
    #allocation4 [shape = 'u8[8192]{0}', space=vmem, size = 0x2000, scoped, tag = 'input window, operand 0, single buffered']
    #allocation5 [shape = 's32[1]{0}', space=sflag, size = 0x4, scoped, tag = 'scoped memory for tpu_custom_call.1']
    #allocation6 [shape = 's32[1]{0}', space=sflag, size = 0x4, scoped, tag = 'scoped memory for tpu_custom_call.1']
    #allocation7 [shape = 'u8[8192]{0}', space=vmem, size = 0x2000, scoped, tag = 'input window, operand 1, single buffered']
    #allocation8 [shape = 's32[1]{0}', space=sflag, size = 0x4, scoped, tag = 'scoped memory for tpu_custom_call.1']
    #allocation9 [shape = 'u8[512]{0}', space=vmem, size = 0x400, scoped, tag = 'input window, operand 3, single buffered']
    #allocation10 [shape = 'u8[786432]{0}', space=vmem, size = 0xc0000, scoped, tag = 'input window, operand 4, single buffered']
    #allocation11 [shape = 's32[1]{0}', space=sflag, size = 0x4, scoped, tag = 'scoped memory for tpu_custom_call.1']
    #allocation12 [shape = 'u8[12288]{0}', space=vmem, size = 0x3000, scoped, tag = 'input window, operand 5, single buffered']
    #allocation13 [shape = 'u8[262144]{0}', space=vmem, size = 0x40000, scoped, tag = 'input window, operand 6, single buffered']
    #allocation14 [shape = 's32[1]{0}', space=sflag, size = 0x4, scoped, tag = 'scoped memory for tpu_custom_call.1']
    #allocation15 [shape = 'u8[65536]{0}', space=vmem, size = 0x10000, scoped, tag = 'input window, operand 10, single buffered']
    #allocation16 [shape = 'u8[65536]{0}', space=vmem, size = 0x10000, scoped, tag = 'input window, operand 12, single buffered']
    #allocation17 [shape = 's32[1]{0}', space=sflag, size = 0x4, scoped, tag = 'scoped memory for tpu_custom_call.1']
    #allocation18 [shape = 'u8[32768]{0}', space=vmem, size = 0x8000, scoped, tag = 'input window, operand 16, single buffered']
    #allocation19 [shape = 'u8[8192]{0}', space=vmem, size = 0x2000, scoped, tag = 'output window, operand 0, single buffered']
    %23 = vsyncpa [#allocation5], 0
    %24 = vsyncpa [#allocation8], 0
    %25 = vsyncpa [#allocation11], 0
    %26 = vsyncpa [#allocation14], 0
    %27 = vsyncpa [#allocation17], 0
    %28 = vsyncpa [#allocation6], 0
    // Predicated region
    $region2: #{tpu_custom_call.1} parent=1 // pred_check
      _
    $region3: #{tpu_custom_call.1} parent=1 // pred_check_branch
      %30 = sbr.rel (0) target = $region5
    $region4: #{tpu_custom_call.1} parent=1 // pred_region
      %s32 = ssub.s32 256, 256
      %33 = vsyncadd [#allocation5], %s32
      %s34 = sshll.u32 [#allocation4], 4
      %s35 = int_to_ptr.vmem [resolvable:$true] %s34
      %40 = dma.hbm_to_vmem [thread:$0]  %s0, 256, %s35, [#allocation5], 128, 128, 8
    $region5: #{tpu_custom_call.1} parent=1 // pred_fallthru
      _
    // Predicated region
    $region6: #{tpu_custom_call.1} parent=1 // pred_check
      _
    $region7: #{tpu_custom_call.1} parent=1 // pred_check_branch
      %42 = sbr.rel (0) target = $region9
    $region8: #{tpu_custom_call.1} parent=1 // pred_region
      %s44 = ssub.s32 256, 256
      %45 = vsyncadd [#allocation8], %s44
      %s46 = sshll.u32 [#allocation7], 4
      %s47 = int_to_ptr.vmem [resolvable:$true] %s46
      %52 = dma.hbm_to_vmem [thread:$0]  %s1, 256, %s47, [#allocation8], 128, 128, 8
    $region9: #{tpu_custom_call.1} parent=1 // pred_fallthru
      _
    // Predicated region
    $region10: #{tpu_custom_call.1} parent=1 // pred_check
      _
    $region11: #{tpu_custom_call.1} parent=1 // pred_check_branch
      %54 = sbr.rel (0) target = $region13
    $region12: #{tpu_custom_call.1} parent=1 // pred_region
      _
    $region13: #{tpu_custom_call.1} parent=1 // pred_fallthru
      _
    // Predicated region
    $region14: #{tpu_custom_call.1} parent=1 // pred_check
      _
    $region15: #{tpu_custom_call.1} parent=1 // pred_check_branch
      %56 = sbr.rel (0) target = $region17
    $region16: #{tpu_custom_call.1} parent=1 // pred_region
      %s58 = ssub.s32 16, 16
      %59 = vsyncadd [#allocation8], %s58
      %s61 = sshll.u32 [#allocation9], 4
      %s62 = int_to_ptr.vmem [resolvable:$true] %s61
      %64 = dma.hbm_to_vmem [thread:$0]  %s3, 16, %s62, [#allocation8]
    $region17: #{tpu_custom_call.1} parent=1 // pred_fallthru
      _
    // Predicated region
    $region18: #{tpu_custom_call.1} parent=1 // pred_check
      _
    $region19: #{tpu_custom_call.1} parent=1 // pred_check_branch
      %66 = sbr.rel (0) target = $region21
    $region20: #{tpu_custom_call.1} parent=1 // pred_region
      %s68 = ssub.s32 24576, 24576
      %69 = vsyncadd [#allocation11], %s68
      %s70 = sshll.u32 [#allocation10], 4
      %s71 = int_to_ptr.vmem [resolvable:$true] %s70
      %76 = dma.hbm_to_vmem [thread:$0]  %s4, 24576, %s71, [#allocation11], 768, 768, 48
    $region21: #{tpu_custom_call.1} parent=1 // pred_fallthru
      _
    // Predicated region
    $region22: #{tpu_custom_call.1} parent=1 // pred_check
      _
    $region23: #{tpu_custom_call.1} parent=1 // pred_check_branch
      %78 = sbr.rel (0) target = $region25
    $region24: #{tpu_custom_call.1} parent=1 // pred_region
      %s80 = ssub.s32 384, 384
      %81 = vsyncadd [#allocation11], %s80
      %s82 = sshll.u32 [#allocation12], 4
      %s83 = int_to_ptr.vmem [resolvable:$true] %s82
      %88 = dma.hbm_to_vmem [thread:$0]  %s5, 384, %s83, [#allocation11], 192, 192, 12
    $region25: #{tpu_custom_call.1} parent=1 // pred_fallthru
      _
    // Predicated region
    $region26: #{tpu_custom_call.1} parent=1 // pred_check
      _
    $region27: #{tpu_custom_call.1} parent=1 // pred_check_branch
      %90 = sbr.rel (0) target = $region29
    $region28: #{tpu_custom_call.1} parent=1 // pred_region
      %s92 = ssub.s32 8192, 8192
      %93 = vsyncadd [#allocation14], %s92
      %s94 = sshll.u32 [#allocation13], 4
      %s95 = int_to_ptr.vmem [resolvable:$true] %s94
      %100 = dma.hbm_to_vmem [thread:$0]  %s6, 8192, %s95, [#allocation14], 64, 64, 4
    $region29: #{tpu_custom_call.1} parent=1 // pred_fallthru
      _
    // Predicated region
    $region30: #{tpu_custom_call.1} parent=1 // pred_check
      _
    $region31: #{tpu_custom_call.1} parent=1 // pred_check_branch
      %102 = sbr.rel (0) target = $region33
    $region32: #{tpu_custom_call.1} parent=1 // pred_region
      _
    $region33: #{tpu_custom_call.1} parent=1 // pred_fallthru
      _
    // Predicated region
    $region34: #{tpu_custom_call.1} parent=1 // pred_check
      _
    $region35: #{tpu_custom_call.1} parent=1 // pred_check_branch
      %104 = sbr.rel (0) target = $region37
    $region36: #{tpu_custom_call.1} parent=1 // pred_region
      _
    $region37: #{tpu_custom_call.1} parent=1 // pred_fallthru
      _
    // Predicated region
    $region38: #{tpu_custom_call.1} parent=1 // pred_check
      _
    $region39: #{tpu_custom_call.1} parent=1 // pred_check_branch
      %106 = sbr.rel (0) target = $region41
    $region40: #{tpu_custom_call.1} parent=1 // pred_region
      _
    $region41: #{tpu_custom_call.1} parent=1 // pred_fallthru
      _
    // Predicated region
    $region42: #{tpu_custom_call.1} parent=1 // pred_check
      _
    $region43: #{tpu_custom_call.1} parent=1 // pred_check_branch
      %108 = sbr.rel (0) target = $region45
    $region44: #{tpu_custom_call.1} parent=1 // pred_region
      %s110 = ssub.s32 2048, 2048
      %111 = vsyncadd [#allocation14], %s110
      %s112 = sshll.u32 [#allocation15], 4
      %s113 = int_to_ptr.vmem [resolvable:$true] %s112
      %118 = dma.hbm_to_vmem [thread:$0]  %s10, 2048, %s113, [#allocation14], 64, 64, 4
    $region45: #{tpu_custom_call.1} parent=1 // pred_fallthru
      _
    // Predicated region
    $region46: #{tpu_custom_call.1} parent=1 // pred_check
      _
    $region47: #{tpu_custom_call.1} parent=1 // pred_check_branch
      %120 = sbr.rel (0) target = $region49
    $region48: #{tpu_custom_call.1} parent=1 // pred_region
      _
    $region49: #{tpu_custom_call.1} parent=1 // pred_fallthru
      _
    // Predicated region
    $region50: #{tpu_custom_call.1} parent=1 // pred_check
      _
    $region51: #{tpu_custom_call.1} parent=1 // pred_check_branch
      %122 = sbr.rel (0) target = $region53
    $region52: #{tpu_custom_call.1} parent=1 // pred_region
      %s124 = ssub.s32 2048, 2048
      %125 = vsyncadd [#allocation17], %s124
      %s126 = sshll.u32 [#allocation16], 4
      %s127 = int_to_ptr.vmem [resolvable:$true] %s126
      %132 = dma.hbm_to_vmem [thread:$0]  %s12, 2048, %s127, [#allocation17], 64, 64, 4
    $region53: #{tpu_custom_call.1} parent=1 // pred_fallthru
      _
    // Predicated region
    $region54: #{tpu_custom_call.1} parent=1 // pred_check
      _
    $region55: #{tpu_custom_call.1} parent=1 // pred_check_branch
      %134 = sbr.rel (0) target = $region57
    $region56: #{tpu_custom_call.1} parent=1 // pred_region
      _
    $region57: #{tpu_custom_call.1} parent=1 // pred_fallthru
      _
    // Predicated region
    $region58: #{tpu_custom_call.1} parent=1 // pred_check
      _
    $region59: #{tpu_custom_call.1} parent=1 // pred_check_branch
      %136 = sbr.rel (0) target = $region61
    $region60: #{tpu_custom_call.1} parent=1 // pred_region
      _
    $region61: #{tpu_custom_call.1} parent=1 // pred_fallthru
      _
    // Predicated region
    $region62: #{tpu_custom_call.1} parent=1 // pred_check
      _
    $region63: #{tpu_custom_call.1} parent=1 // pred_check_branch
      %138 = sbr.rel (0) target = $region65
    $region64: #{tpu_custom_call.1} parent=1 // pred_region
      _
    $region65: #{tpu_custom_call.1} parent=1 // pred_fallthru
      _
    // Predicated region
    $region66: #{tpu_custom_call.1} parent=1 // pred_check
      _
    $region67: #{tpu_custom_call.1} parent=1 // pred_check_branch
      %140 = sbr.rel (0) target = $region69
    $region68: #{tpu_custom_call.1} parent=1 // pred_region
      %s142 = ssub.s32 1024, 1024
      %143 = vsyncadd [#allocation17], %s142
      %s144 = sshll.u32 [#allocation18], 4
      %s145 = int_to_ptr.vmem [resolvable:$true] %s144
      %150 = dma.hbm_to_vmem [thread:$0]  %s16, 1024, %s145, [#allocation17], 64, 64, 4
    $region69: #{tpu_custom_call.1} parent=1 // pred_fallthru
      _
    // Predicated region
    $region70: #{tpu_custom_call.1} parent=1 // pred_check
      _
    $region71: #{tpu_custom_call.1} parent=1 // pred_check_branch
      %152 = sbr.rel (0) target = $region73
    $region72: #{tpu_custom_call.1} parent=1 // pred_region
      _
    $region73: #{tpu_custom_call.1} parent=1 // pred_fallthru
      _
    // Predicated region
    $region74: #{tpu_custom_call.1} parent=1 // pred_check
      _
    $region75: #{tpu_custom_call.1} parent=1 // pred_check_branch
      %154 = sbr.rel (0) target = $region77
    $region76: #{tpu_custom_call.1} parent=1 // pred_region
      %155 = dma.done [#allocation5], 256
    $region77: #{tpu_custom_call.1} parent=1 // pred_fallthru
      _
    // Predicated region
    $region78: #{tpu_custom_call.1} parent=1 // pred_check
      _
    $region79: #{tpu_custom_call.1} parent=1 // pred_check_branch
      %157 = sbr.rel (0) target = $region81
    $region80: #{tpu_custom_call.1} parent=1 // pred_region
      %158 = dma.done [#allocation8], 256
    $region81: #{tpu_custom_call.1} parent=1 // pred_fallthru
      _
    // Predicated region
    $region82: #{tpu_custom_call.1} parent=1 // pred_check
      _
    $region83: #{tpu_custom_call.1} parent=1 // pred_check_branch
      %160 = sbr.rel (0) target = $region85
    $region84: #{tpu_custom_call.1} parent=1 // pred_region
      %161 = dma.done [#allocation8], 16
    $region85: #{tpu_custom_call.1} parent=1 // pred_fallthru
      _
    // Predicated region
    $region86: #{tpu_custom_call.1} parent=1 // pred_check
      _
    $region87: #{tpu_custom_call.1} parent=1 // pred_check_branch
      %163 = sbr.rel (0) target = $region89
    $region88: #{tpu_custom_call.1} parent=1 // pred_region
      %164 = dma.done [#allocation11], 24576
    $region89: #{tpu_custom_call.1} parent=1 // pred_fallthru
      _
    // Predicated region
    $region90: #{tpu_custom_call.1} parent=1 // pred_check
      _
    $region91: #{tpu_custom_call.1} parent=1 // pred_check_branch
      %166 = sbr.rel (0) target = $region93
    $region92: #{tpu_custom_call.1} parent=1 // pred_region
      %167 = dma.done [#allocation11], 384
    $region93: #{tpu_custom_call.1} parent=1 // pred_fallthru
      _
    // Predicated region
    $region94: #{tpu_custom_call.1} parent=1 // pred_check
      _
    $region95: #{tpu_custom_call.1} parent=1 // pred_check_branch
      %169 = sbr.rel (0) target = $region97
    $region96: #{tpu_custom_call.1} parent=1 // pred_region
      %170 = dma.done [#allocation14], 8192
    $region97: #{tpu_custom_call.1} parent=1 // pred_fallthru
      _
    // Predicated region
    $region98: #{tpu_custom_call.1} parent=1 // pred_check
      _
    $region99: #{tpu_custom_call.1} parent=1 // pred_check_branch
      %172 = sbr.rel (0) target = $region101
    $region100: #{tpu_custom_call.1} parent=1 // pred_region
      %173 = dma.done [#allocation14], 2048
    $region101: #{tpu_custom_call.1} parent=1 // pred_fallthru
      _
    // Predicated region
    $region102: #{tpu_custom_call.1} parent=1 // pred_check
      _
    $region103: #{tpu_custom_call.1} parent=1 // pred_check_branch
      %175 = sbr.rel (0) target = $region105
    $region104: #{tpu_custom_call.1} parent=1 // pred_region
      %176 = dma.done [#allocation17], 2048
    $region105: #{tpu_custom_call.1} parent=1 // pred_fallthru
      _
    // Predicated region
    $region106: #{tpu_custom_call.1} parent=1 // pred_check
      _
    $region107: #{tpu_custom_call.1} parent=1 // pred_check_branch
      %178 = sbr.rel (0) target = $region109
    $region108: #{tpu_custom_call.1} parent=1 // pred_region
      %179 = dma.done [#allocation17], 1024
    $region109: #{tpu_custom_call.1} parent=1 // pred_fallthru
      _
    %v181 = vlaneseq
    %v182 = vand.u32 %v181, 127
    %vm183 = vcmp.lt.s32.totalorder %v182, 32
    %v184 = vld [vmem:[#allocation4] sm:$0xff]
    %v185 = vld [vmem:[#allocation4 + $0x8] sm:$0xff]
    %v186 = vld [vmem:[%s2] sm:$0x1]
    %v187 = vld [vmem:[#allocation9] sm:$0x1]
    %188 = vadd.xlane.f32.xlu0 %v184
    %v189 = vpop.xlane.xlu0 %188
    %190 = vadd.xlane.f32.xlu0 %v185
    %v191 = vpop.xlane.xlu0 %190
    %v192 = vrcp.pop 32.0
    %v193 = vmul.f32 %v189, %v192
    %v194 = vmul.f32 %v191, %v192
    %v195 = vsub.f32 %v184, %v193
    %v196 = vsub.f32 %v185, %v194
    %v197 = vsel %vm183, 1, 0
    %vm198 = vcmp.eq.s32.totalorder %v197, 1
    %v199 = vsel %vm198, %v195, 0.0
    %v200 = vsel %vm198, %v196, 0.0
    %v201 = vmul.f32 %v199, %v199
    %v202 = vmul.f32 %v200, %v200
    %203 = vadd.xlane.f32.xlu0 %v201
    %v204 = vpop.xlane.xlu0 %203
    %205 = vadd.xlane.f32.xlu0 %v202
    %v206 = vpop.xlane.xlu0 %205
    %v207 = vmul.f32 %v204, %v192
    %v208 = vmul.f32 %v206, %v192
    %v209 = vadd.f32 %v207, 1e-12
    %v210 = vadd.f32 %v208, 1e-12
    %v211 = vrsqrt.pop %v209
    %v212 = vrsqrt.pop %v210
    %v213 = vmul.f32 %v199, %v211
    %v214 = vmul.f32 %v200, %v212
    %v216 = vlaneseq
    %v217 = vshrl.u32 %v216, 7
    %v218 = vsub.s32 0, %v217
    %v219 = vrot.slane %v186, %v218
    %v221 = vmul.f32 %v213, %v219
    %v222 = vmul.f32 %v214, %v219
    %v224 = vlaneseq
    %v225 = vshrl.u32 %v224, 7
    %v226 = vsub.s32 0, %v225
    %v227 = vrot.slane %v187, %v226
    %v229 = vadd.f32 %v221, %v227
    %v230 = vadd.f32 %v222, %v227
    %v231 = vld [vmem:[#allocation7] sm:$0xff]
    %v232 = vld [vmem:[#allocation7 + $0x8] sm:$0xff]
    %v233 = vld [vmem:[#allocation10] sm:$0xff]
    %v234 = vld [vmem:[#allocation10 + $0x8] sm:$0xff]
    %v235 = vld [vmem:[#allocation10 + $0x10] sm:$0xff]
    %v236 = vld [vmem:[#allocation10 + $0x18] sm:$0xff]
    %v237 = vld [vmem:[#allocation10 + $0x20] sm:$0xff]
    %v238 = vld [vmem:[#allocation10 + $0x28] sm:$0xff]
    %v239 = vld [vmem:[#allocation10 + $0x30] sm:$0xff]
    %v240 = vld [vmem:[#allocation10 + $0x38] sm:$0xff]
    %v241 = vld [vmem:[#allocation10 + $0x40] sm:$0xff]
    %v242 = vld [vmem:[#allocation10 + $0x48] sm:$0xff]
    %v243 = vld [vmem:[#allocation10 + $0x50] sm:$0xff]
    %v244 = vld [vmem:[#allocation10 + $0x58] sm:$0xff]
    %v245 = vld [vmem:[#allocation10 + $0x60] sm:$0xff]
    %v246 = vld [vmem:[#allocation10 + $0x68] sm:$0xff]
    %v247 = vld [vmem:[#allocation10 + $0x70] sm:$0xff]
    %v248 = vld [vmem:[#allocation10 + $0x78] sm:$0xff]
    %v249 = vld [vmem:[#allocation10 + $0x80] sm:$0xff]
    %v250 = vld [vmem:[#allocation10 + $0x88] sm:$0xff]
    %v251 = vld [vmem:[#allocation10 + $0x90] sm:$0xff]
    %v252 = vld [vmem:[#allocation10 + $0x98] sm:$0xff]
    %v253 = vld [vmem:[#allocation10 + $0xa0] sm:$0xff]
    %v254 = vld [vmem:[#allocation10 + $0xa8] sm:$0xff]
    %v255 = vld [vmem:[#allocation10 + $0xb0] sm:$0xff]
    %v256 = vld [vmem:[#allocation10 + $0xb8] sm:$0xff]
    %v257 = vld [vmem:[#allocation10 + $0xc0] sm:$0xff]
    %v258 = vld [vmem:[#allocation10 + $0xc8] sm:$0xff]
    %v259 = vld [vmem:[#allocation10 + $0xd0] sm:$0xff]
    %v260 = vld [vmem:[#allocation10 + $0xd8] sm:$0xff]
    %v261 = vld [vmem:[#allocation10 + $0xe0] sm:$0xff]
    %v262 = vld [vmem:[#allocation10 + $0xe8] sm:$0xff]
    %v263 = vld [vmem:[#allocation10 + $0xf0] sm:$0xff]
    %v264 = vld [vmem:[#allocation10 + $0xf8] sm:$0xff]
    %v265 = vld [vmem:[#allocation10 + $0x100] sm:$0xff]
    %v266 = vld [vmem:[#allocation10 + $0x108] sm:$0xff]
    %v267 = vld [vmem:[#allocation10 + $0x110] sm:$0xff]
    %v268 = vld [vmem:[#allocation10 + $0x118] sm:$0xff]
    %v269 = vld [vmem:[#allocation10 + $0x120] sm:$0xff]
    %v270 = vld [vmem:[#allocation10 + $0x128] sm:$0xff]
    %v271 = vld [vmem:[#allocation10 + $0x130] sm:$0xff]
    %v272 = vld [vmem:[#allocation10 + $0x138] sm:$0xff]
    %v273 = vld [vmem:[#allocation10 + $0x140] sm:$0xff]
    %v274 = vld [vmem:[#allocation10 + $0x148] sm:$0xff]
    %v275 = vld [vmem:[#allocation10 + $0x150] sm:$0xff]
    %v276 = vld [vmem:[#allocation10 + $0x158] sm:$0xff]
    %v277 = vld [vmem:[#allocation10 + $0x160] sm:$0xff]
    %v278 = vld [vmem:[#allocation10 + $0x168] sm:$0xff]
    %v279 = vld [vmem:[#allocation10 + $0x170] sm:$0xff]
    %v280 = vld [vmem:[#allocation10 + $0x178] sm:$0xff]
    %v281 = vld [vmem:[#allocation10 + $0x180] sm:$0xff]
    %v282 = vld [vmem:[#allocation10 + $0x188] sm:$0xff]
    %v283 = vld [vmem:[#allocation10 + $0x190] sm:$0xff]
    %v284 = vld [vmem:[#allocation10 + $0x198] sm:$0xff]
    %v285 = vld [vmem:[#allocation10 + $0x1a0] sm:$0xff]
    %v286 = vld [vmem:[#allocation10 + $0x1a8] sm:$0xff]
    %v287 = vld [vmem:[#allocation10 + $0x1b0] sm:$0xff]
    %v288 = vld [vmem:[#allocation10 + $0x1b8] sm:$0xff]
    %v289 = vld [vmem:[#allocation10 + $0x1c0] sm:$0xff]
    %v290 = vld [vmem:[#allocation10 + $0x1c8] sm:$0xff]
    %v291 = vld [vmem:[#allocation10 + $0x1d0] sm:$0xff]
    %v292 = vld [vmem:[#allocation10 + $0x1d8] sm:$0xff]
    %v293 = vld [vmem:[#allocation10 + $0x1e0] sm:$0xff]
    %v294 = vld [vmem:[#allocation10 + $0x1e8] sm:$0xff]
    %v295 = vld [vmem:[#allocation10 + $0x1f0] sm:$0xff]
    %v296 = vld [vmem:[#allocation10 + $0x1f8] sm:$0xff]
    %v297 = vld [vmem:[#allocation10 + $0x200] sm:$0xff]
    %v298 = vld [vmem:[#allocation10 + $0x208] sm:$0xff]
    %v299 = vld [vmem:[#allocation10 + $0x210] sm:$0xff]
    %v300 = vld [vmem:[#allocation10 + $0x218] sm:$0xff]
    %v301 = vld [vmem:[#allocation10 + $0x220] sm:$0xff]
    %v302 = vld [vmem:[#allocation10 + $0x228] sm:$0xff]
    %v303 = vld [vmem:[#allocation10 + $0x230] sm:$0xff]
    %v304 = vld [vmem:[#allocation10 + $0x238] sm:$0xff]
    %v305 = vld [vmem:[#allocation10 + $0x240] sm:$0xff]
    %v306 = vld [vmem:[#allocation10 + $0x248] sm:$0xff]
    %v307 = vld [vmem:[#allocation10 + $0x250] sm:$0xff]
    %v308 = vld [vmem:[#allocation10 + $0x258] sm:$0xff]
    %v309 = vld [vmem:[#allocation10 + $0x260] sm:$0xff]
    %v310 = vld [vmem:[#allocation10 + $0x268] sm:$0xff]
    %v311 = vld [vmem:[#allocation10 + $0x270] sm:$0xff]
    %v312 = vld [vmem:[#allocation10 + $0x278] sm:$0xff]
    %v313 = vld [vmem:[#allocation10 + $0x280] sm:$0xff]
    %v314 = vld [vmem:[#allocation10 + $0x288] sm:$0xff]
    %v315 = vld [vmem:[#allocation10 + $0x290] sm:$0xff]
    %v316 = vld [vmem:[#allocation10 + $0x298] sm:$0xff]
    %v317 = vld [vmem:[#allocation10 + $0x2a0] sm:$0xff]
    %v318 = vld [vmem:[#allocation10 + $0x2a8] sm:$0xff]
    %v319 = vld [vmem:[#allocation10 + $0x2b0] sm:$0xff]
    %v320 = vld [vmem:[#allocation10 + $0x2b8] sm:$0xff]
    %v321 = vld [vmem:[#allocation10 + $0x2c0] sm:$0xff]
    %v322 = vld [vmem:[#allocation10 + $0x2c8] sm:$0xff]
    %v323 = vld [vmem:[#allocation10 + $0x2d0] sm:$0xff]
    %v324 = vld [vmem:[#allocation10 + $0x2d8] sm:$0xff]
    %v325 = vld [vmem:[#allocation10 + $0x2e0] sm:$0xff]
    %v326 = vld [vmem:[#allocation10 + $0x2e8] sm:$0xff]
    %v327 = vld [vmem:[#allocation10 + $0x2f0] sm:$0xff]
    %v328 = vld [vmem:[#allocation10 + $0x2f8] sm:$0xff]
    %v329 = vld [vmem:[#allocation12] sm:$0xff]
    %v330 = vld [vmem:[#allocation12 + $0x8] sm:$0xf]
    %v331 = vpack.c.bf16 %v230, %v229
    %v334 = vlaneseq
    %v335 = vshrl.u32 %v334, 7
    %v336 = vsub.s32 0, %v335
    %v337 = vrot.slane %v329, %v336
    %v338 = vlaneseq
    %v339 = vshrl.u32 %v338, 7
    %v340 = vsub.s32 1, %v339
    %v341 = vrot.slane %v329, %v340
    %v342 = vlaneseq
    %v343 = vshrl.u32 %v342, 7
    %v344 = vsub.s32 2, %v343
    %v345 = vrot.slane %v329, %v344
    %v346 = vlaneseq
    %v347 = vshrl.u32 %v346, 7
    %v348 = vsub.s32 3, %v347
    %v349 = vrot.slane %v329, %v348
    %v350 = vlaneseq
    %v351 = vshrl.u32 %v350, 7
    %v352 = vsub.s32 4, %v351
    %v353 = vrot.slane %v329, %v352
    %v354 = vlaneseq
    %v355 = vshrl.u32 %v354, 7
    %v356 = vsub.s32 5, %v355
    %v357 = vrot.slane %v329, %v356
    %v358 = vlaneseq
    %v359 = vshrl.u32 %v358, 7
    %v360 = vsub.s32 6, %v359
    %v361 = vrot.slane %v329, %v360
    %v362 = vlaneseq
    %v363 = vshrl.u32 %v362, 7
    %v364 = vsub.s32 7, %v363
    %v365 = vrot.slane %v329, %v364
    %v366 = vlaneseq
    %v367 = vshrl.u32 %v366, 7
    %v368 = vsub.s32 0, %v367
    %v369 = vrot.slane %v330, %v368
    %v370 = vlaneseq
    %v371 = vshrl.u32 %v370, 7
    %v372 = vsub.s32 1, %v371
    %v373 = vrot.slane %v330, %v372
    %v374 = vlaneseq
    %v375 = vshrl.u32 %v374, 7
    %v376 = vsub.s32 2, %v375
    %v377 = vrot.slane %v330, %v376
    %v378 = vlaneseq
    %v379 = vshrl.u32 %v378, 7
    %v380 = vsub.s32 3, %v379
    %v381 = vrot.slane %v330, %v380
    %v490 = vunpack.c.l.b16 %v233
    %v491 = vunpack.c.h.b16 %v233
    %v492 = vunpack.c.l.b16 %v234
    %v493 = vunpack.c.h.b16 %v234
    %v494 = vunpack.c.l.b16 %v235
    %v495 = vunpack.c.h.b16 %v235
    %v496 = vunpack.c.l.b16 %v236
    %v497 = vunpack.c.h.b16 %v236
    %v498 = vunpack.c.l.b16 %v237
    %v499 = vunpack.c.h.b16 %v237
    %v500 = vunpack.c.l.b16 %v238
    %v501 = vunpack.c.h.b16 %v238
    %v502 = vunpack.c.l.b16 %v239
    %v503 = vunpack.c.h.b16 %v239
    %v504 = vunpack.c.l.b16 %v240
    %v505 = vunpack.c.h.b16 %v240
    %v506 = vunpack.c.l.b16 %v241
    %v507 = vunpack.c.h.b16 %v241
    %v508 = vunpack.c.l.b16 %v242
    %v509 = vunpack.c.h.b16 %v242
    %v510 = vunpack.c.l.b16 %v243
    %v511 = vunpack.c.h.b16 %v243
    %v512 = vunpack.c.l.b16 %v244
    %v513 = vunpack.c.h.b16 %v244
    %v514 = vunpack.c.l.b16 %v245
    %v515 = vunpack.c.h.b16 %v245
    %v516 = vunpack.c.l.b16 %v246
    %v517 = vunpack.c.h.b16 %v246
    %v518 = vunpack.c.l.b16 %v247
    %v519 = vunpack.c.h.b16 %v247
    %v520 = vunpack.c.l.b16 %v248
    %v521 = vunpack.c.h.b16 %v248
    %v522 = vunpack.c.l.b16 %v249
    %v523 = vunpack.c.h.b16 %v249
    %v524 = vunpack.c.l.b16 %v250
    %v525 = vunpack.c.h.b16 %v250
    %v526 = vunpack.c.l.b16 %v251
    %v527 = vunpack.c.h.b16 %v251
    %v528 = vunpack.c.l.b16 %v252
    %v529 = vunpack.c.h.b16 %v252
    %v530 = vunpack.c.l.b16 %v253
    %v531 = vunpack.c.h.b16 %v253
    %v532 = vunpack.c.l.b16 %v254
    %v533 = vunpack.c.h.b16 %v254
    %v534 = vunpack.c.l.b16 %v255
    %v535 = vunpack.c.h.b16 %v255
    %v536 = vunpack.c.l.b16 %v256
    %v537 = vunpack.c.h.b16 %v256
    %v538 = vunpack.c.l.b16 %v257
    %v539 = vunpack.c.h.b16 %v257
    %v540 = vunpack.c.l.b16 %v258
    %v541 = vunpack.c.h.b16 %v258
    %v542 = vunpack.c.l.b16 %v259
    %v543 = vunpack.c.h.b16 %v259
    %v544 = vunpack.c.l.b16 %v260
    %v545 = vunpack.c.h.b16 %v260
    %v546 = vunpack.c.l.b16 %v261
    %v547 = vunpack.c.h.b16 %v261
    %v548 = vunpack.c.l.b16 %v262
    %v549 = vunpack.c.h.b16 %v262
    %v550 = vunpack.c.l.b16 %v263
    %v551 = vunpack.c.h.b16 %v263
    %v552 = vunpack.c.l.b16 %v264
    %v553 = vunpack.c.h.b16 %v264
    %v554 = vunpack.c.l.b16 %v265
    %v555 = vunpack.c.h.b16 %v265
    %v556 = vunpack.c.l.b16 %v266
    %v557 = vunpack.c.h.b16 %v266
    %v558 = vunpack.c.l.b16 %v267
    %v559 = vunpack.c.h.b16 %v267
    %v560 = vunpack.c.l.b16 %v268
    %v561 = vunpack.c.h.b16 %v268
    %v562 = vunpack.c.l.b16 %v269
    %v563 = vunpack.c.h.b16 %v269
    %v564 = vunpack.c.l.b16 %v270
    %v565 = vunpack.c.h.b16 %v270
    %v566 = vunpack.c.l.b16 %v271
    %v567 = vunpack.c.h.b16 %v271
    %v568 = vunpack.c.l.b16 %v272
    %v569 = vunpack.c.h.b16 %v272
    %v570 = vunpack.c.l.b16 %v273
    %v571 = vunpack.c.h.b16 %v273
    %v572 = vunpack.c.l.b16 %v274
    %v573 = vunpack.c.h.b16 %v274
    %v574 = vunpack.c.l.b16 %v275
    %v575 = vunpack.c.h.b16 %v275
    %v576 = vunpack.c.l.b16 %v276
    %v577 = vunpack.c.h.b16 %v276
    %v578 = vunpack.c.l.b16 %v277
    %v579 = vunpack.c.h.b16 %v277
    %v580 = vunpack.c.l.b16 %v278
    %v581 = vunpack.c.h.b16 %v278
    %v582 = vunpack.c.l.b16 %v279
    %v583 = vunpack.c.h.b16 %v279
    %v584 = vunpack.c.l.b16 %v280
    %v585 = vunpack.c.h.b16 %v280
    %v586 = vunpack.c.l.b16 %v281
    %v587 = vunpack.c.h.b16 %v281
    %v588 = vunpack.c.l.b16 %v282
    %v589 = vunpack.c.h.b16 %v282
    %v590 = vunpack.c.l.b16 %v283
    %v591 = vunpack.c.h.b16 %v283
    %v592 = vunpack.c.l.b16 %v284
    %v593 = vunpack.c.h.b16 %v284
    %v594 = vunpack.c.l.b16 %v285
    %v595 = vunpack.c.h.b16 %v285
    %v596 = vunpack.c.l.b16 %v286
    %v597 = vunpack.c.h.b16 %v286
    %v598 = vunpack.c.l.b16 %v287
    %v599 = vunpack.c.h.b16 %v287
    %v600 = vunpack.c.l.b16 %v288
    %v601 = vunpack.c.h.b16 %v288
    %v602 = vunpack.c.l.b16 %v289
    %v603 = vunpack.c.h.b16 %v289
    %v604 = vunpack.c.l.b16 %v290
    %v605 = vunpack.c.h.b16 %v290
    %v606 = vunpack.c.l.b16 %v291
    %v607 = vunpack.c.h.b16 %v291
    %v608 = vunpack.c.l.b16 %v292
    %v609 = vunpack.c.h.b16 %v292
    %v610 = vunpack.c.l.b16 %v293
    %v611 = vunpack.c.h.b16 %v293
    %v612 = vunpack.c.l.b16 %v294
    %v613 = vunpack.c.h.b16 %v294
    %v614 = vunpack.c.l.b16 %v295
    %v615 = vunpack.c.h.b16 %v295
    %v616 = vunpack.c.l.b16 %v296
    %v617 = vunpack.c.h.b16 %v296
    %v618 = vunpack.c.l.b16 %v297
    %v619 = vunpack.c.h.b16 %v297
    %v620 = vunpack.c.l.b16 %v298
    %v621 = vunpack.c.h.b16 %v298
    %v622 = vunpack.c.l.b16 %v299
    %v623 = vunpack.c.h.b16 %v299
    %v624 = vunpack.c.l.b16 %v300
    %v625 = vunpack.c.h.b16 %v300
    %v626 = vunpack.c.l.b16 %v301
    %v627 = vunpack.c.h.b16 %v301
    %v628 = vunpack.c.l.b16 %v302
    %v629 = vunpack.c.h.b16 %v302
    %v630 = vunpack.c.l.b16 %v303
    %v631 = vunpack.c.h.b16 %v303
    %v632 = vunpack.c.l.b16 %v304
    %v633 = vunpack.c.h.b16 %v304
    %v634 = vunpack.c.l.b16 %v305
    %v635 = vunpack.c.h.b16 %v305
    %v636 = vunpack.c.l.b16 %v306
    %v637 = vunpack.c.h.b16 %v306
    %v638 = vunpack.c.l.b16 %v307
    %v639 = vunpack.c.h.b16 %v307
    %v640 = vunpack.c.l.b16 %v308
    %v641 = vunpack.c.h.b16 %v308
    %v642 = vunpack.c.l.b16 %v309
    %v643 = vunpack.c.h.b16 %v309
    %v644 = vunpack.c.l.b16 %v310
    %v645 = vunpack.c.h.b16 %v310
    %v646 = vunpack.c.l.b16 %v311
    %v647 = vunpack.c.h.b16 %v311
    %v648 = vunpack.c.l.b16 %v312
    %v649 = vunpack.c.h.b16 %v312
    %v650 = vunpack.c.l.b16 %v313
    %v651 = vunpack.c.h.b16 %v313
    %v652 = vunpack.c.l.b16 %v314
    %v653 = vunpack.c.h.b16 %v314
    %v654 = vunpack.c.l.b16 %v315
    %v655 = vunpack.c.h.b16 %v315
    %v656 = vunpack.c.l.b16 %v316
    %v657 = vunpack.c.h.b16 %v316
    %v658 = vunpack.c.l.b16 %v317
    %v659 = vunpack.c.h.b16 %v317
    %v660 = vunpack.c.l.b16 %v318
    %v661 = vunpack.c.h.b16 %v318
    %v662 = vunpack.c.l.b16 %v319
    %v663 = vunpack.c.h.b16 %v319
    %v664 = vunpack.c.l.b16 %v320
    %v665 = vunpack.c.h.b16 %v320
    %v666 = vunpack.c.l.b16 %v321
    %v667 = vunpack.c.h.b16 %v321
    %v668 = vunpack.c.l.b16 %v322
    %v669 = vunpack.c.h.b16 %v322
    %v670 = vunpack.c.l.b16 %v323
    %v671 = vunpack.c.h.b16 %v323
    %v672 = vunpack.c.l.b16 %v324
    %v673 = vunpack.c.h.b16 %v324
    %v674 = vunpack.c.l.b16 %v325
    %v675 = vunpack.c.h.b16 %v325
    %v676 = vunpack.c.l.b16 %v326
    %v677 = vunpack.c.h.b16 %v326
    %v678 = vunpack.c.l.b16 %v327
    %v679 = vunpack.c.h.b16 %v327
    %v680 = vunpack.c.l.b16 %v328
    %v681 = vunpack.c.h.b16 %v328
    %v682 = vpack.c.b16 %v502, %v490
    %v683 = vpack.c.b16 %v503, %v491
    %v684 = vpack.c.b16 %v504, %v492
    %v685 = vpack.c.b16 %v505, %v493
    %v686 = vpack.c.b16 %v506, %v494
    %v687 = vpack.c.b16 %v507, %v495
    %v688 = vpack.c.b16 %v508, %v496
    %v689 = vpack.c.b16 %v509, %v497
    %v690 = vpack.c.b16 %v510, %v498
    %v691 = vpack.c.b16 %v511, %v499
    %v692 = vpack.c.b16 %v512, %v500
    %v693 = vpack.c.b16 %v513, %v501
    %v694 = vpack.c.b16 %v526, %v514
    %v695 = vpack.c.b16 %v527, %v515
    %v696 = vpack.c.b16 %v528, %v516
    %v697 = vpack.c.b16 %v529, %v517
    %v698 = vpack.c.b16 %v530, %v518
    %v699 = vpack.c.b16 %v531, %v519
    %v700 = vpack.c.b16 %v532, %v520
    %v701 = vpack.c.b16 %v533, %v521
    %v702 = vpack.c.b16 %v534, %v522
    %v703 = vpack.c.b16 %v535, %v523
    %v704 = vpack.c.b16 %v536, %v524
    %v705 = vpack.c.b16 %v537, %v525
    %v706 = vpack.c.b16 %v550, %v538
    %v707 = vpack.c.b16 %v551, %v539
    %v708 = vpack.c.b16 %v552, %v540
    %v709 = vpack.c.b16 %v553, %v541
    %v710 = vpack.c.b16 %v554, %v542
    %v711 = vpack.c.b16 %v555, %v543
    %v712 = vpack.c.b16 %v556, %v544
    %v713 = vpack.c.b16 %v557, %v545
    %v714 = vpack.c.b16 %v558, %v546
    %v715 = vpack.c.b16 %v559, %v547
    %v716 = vpack.c.b16 %v560, %v548
    %v717 = vpack.c.b16 %v561, %v549
    %v718 = vpack.c.b16 %v574, %v562
    %v719 = vpack.c.b16 %v575, %v563
    %v720 = vpack.c.b16 %v576, %v564
    %v721 = vpack.c.b16 %v577, %v565
    %v722 = vpack.c.b16 %v578, %v566
    %v723 = vpack.c.b16 %v579, %v567
    %v724 = vpack.c.b16 %v580, %v568
    %v725 = vpack.c.b16 %v581, %v569
    %v726 = vpack.c.b16 %v582, %v570
    %v727 = vpack.c.b16 %v583, %v571
    %v728 = vpack.c.b16 %v584, %v572
    %v729 = vpack.c.b16 %v585, %v573
    %v730 = vpack.c.b16 %v598, %v586
    %v731 = vpack.c.b16 %v599, %v587
    %v732 = vpack.c.b16 %v600, %v588
    %v733 = vpack.c.b16 %v601, %v589
    %v734 = vpack.c.b16 %v602, %v590
    %v735 = vpack.c.b16 %v603, %v591
    %v736 = vpack.c.b16 %v604, %v592
    %v737 = vpack.c.b16 %v605, %v593
    %v738 = vpack.c.b16 %v606, %v594
    %v739 = vpack.c.b16 %v607, %v595
    %v740 = vpack.c.b16 %v608, %v596
    %v741 = vpack.c.b16 %v609, %v597
    %v742 = vpack.c.b16 %v622, %v610
    %v743 = vpack.c.b16 %v623, %v611
    %v744 = vpack.c.b16 %v624, %v612
    %v745 = vpack.c.b16 %v625, %v613
    %v746 = vpack.c.b16 %v626, %v614
    %v747 = vpack.c.b16 %v627, %v615
    %v748 = vpack.c.b16 %v628, %v616
    %v749 = vpack.c.b16 %v629, %v617
    %v750 = vpack.c.b16 %v630, %v618
    %v751 = vpack.c.b16 %v631, %v619
    %v752 = vpack.c.b16 %v632, %v620
    %v753 = vpack.c.b16 %v633, %v621
    %v754 = vpack.c.b16 %v646, %v634
    %v755 = vpack.c.b16 %v647, %v635
    %v756 = vpack.c.b16 %v648, %v636
    %v757 = vpack.c.b16 %v649, %v637
    %v758 = vpack.c.b16 %v650, %v638
    %v759 = vpack.c.b16 %v651, %v639
    %v760 = vpack.c.b16 %v652, %v640
    %v761 = vpack.c.b16 %v653, %v641
    %v762 = vpack.c.b16 %v654, %v642
    %v763 = vpack.c.b16 %v655, %v643
    %v764 = vpack.c.b16 %v656, %v644
    %v765 = vpack.c.b16 %v657, %v645
    %v766 = vpack.c.b16 %v670, %v658
    %v767 = vpack.c.b16 %v671, %v659
    %v768 = vpack.c.b16 %v672, %v660
    %v769 = vpack.c.b16 %v673, %v661
    %v770 = vpack.c.b16 %v674, %v662
    %v771 = vpack.c.b16 %v675, %v663
    %v772 = vpack.c.b16 %v676, %v664
    %v773 = vpack.c.b16 %v677, %v665
    %v774 = vpack.c.b16 %v678, %v666
    %v775 = vpack.c.b16 %v679, %v667
    %v776 = vpack.c.b16 %v680, %v668
    %v777 = vpack.c.b16 %v681, %v669
    %874 = vmatprep.subr.bf16.mxu0 %v683
    %875 = vmatpush1.bf16.msra.mxu0 %v682
    %876 = vmatprep.subr.bf16.mxu0 %v695
    %877 = vmatpush1.bf16.msra.mxu0 %v694
    %878 = vmatprep.subr.bf16.mxu0 %v707
    %879 = vmatpush1.bf16.msra.mxu0 %v706
    %880 = vmatprep.subr.bf16.mxu0 %v719
    %881 = vmatpush1.bf16.msra.mxu0 %v718
    %882 = vmatprep.subr.bf16.mxu0 %v731
    %883 = vmatpush1.bf16.msra.mxu0 %v730
    %884 = vmatprep.subr.bf16.mxu0 %v743
    %885 = vmatpush1.bf16.msra.mxu0 %v742
    %886 = vmatprep.subr.bf16.mxu0 %v755
    %887 = vmatpush1.bf16.msra.mxu0 %v754
    %888 = vmatprep.subr.bf16.mxu0 %v767
    %889 = vmatpush1.bf16.msra.mxu0 %v766
    %890 = vmatprep.subr.bf16.mxu0 0
    %891 = vmatpush1.bf16.msra.mxu0 0
    %892 = vmatprep.subr.bf16.mxu0 0
    %893 = vmatpush1.bf16.msra.mxu0 0
    %894 = vmatprep.subr.bf16.mxu0 0
    %895 = vmatpush1.bf16.msra.mxu0 0
    %896 = vmatprep.subr.bf16.mxu0 0
    %897 = vmatpush1.bf16.msra.mxu0 0
    %898 = vmatprep.subr.bf16.mxu0 0
    %899 = vmatpush1.bf16.msra.mxu0 0
    %900 = vmatprep.subr.bf16.mxu0 0
    %901 = vmatpush1.bf16.msra.mxu0 0
    %902 = vmatprep.subr.bf16.mxu0 0
    %903 = vmatpush1.bf16.msra.mxu0 0
    %904 = vmatprep.subr.bf16.mxu0 0
    %905 = vmatpush1.bf16.msra.mxu0 0
    %906 = vmatprep.mubr.bf16.mxu0 0
    %907 = vmatmul.mubr.bf16.gmra.mrb[0].mxu0 %v331
    %v908 = vpop.f32.mrb[0].mxu0
    %v909 = vadd.f32 %v337, %v908
    %v910 = vpop.f32.mrb[0].mxu0
    %v911 = vadd.f32 %v341, %v910
    %v912 = vpop.f32.mrb[0].mxu0
    %v913 = vadd.f32 %v337, %v912
    %v914 = vpop.f32.mrb[0].mxu0
    %v915 = vadd.f32 %v341, %v914
    %916 = vdwg.mxu0
    %917 = vmatprep.subr.bf16.mxu0 %v685
    %918 = vmatpush1.bf16.msra.mxu0 %v684
    %919 = vmatprep.subr.bf16.mxu0 %v697
    %920 = vmatpush1.bf16.msra.mxu0 %v696
    %921 = vmatprep.subr.bf16.mxu0 %v709
    %922 = vmatpush1.bf16.msra.mxu0 %v708
    %923 = vmatprep.subr.bf16.mxu0 %v721
    %924 = vmatpush1.bf16.msra.mxu0 %v720
    %925 = vmatprep.subr.bf16.mxu0 %v733
    %926 = vmatpush1.bf16.msra.mxu0 %v732
    %927 = vmatprep.subr.bf16.mxu0 %v745
    %928 = vmatpush1.bf16.msra.mxu0 %v744
    %929 = vmatprep.subr.bf16.mxu0 %v757
    %930 = vmatpush1.bf16.msra.mxu0 %v756
    %931 = vmatprep.subr.bf16.mxu0 %v769
    %932 = vmatpush1.bf16.msra.mxu0 %v768
    %933 = vmatprep.subr.bf16.mxu0 0
    %934 = vmatpush1.bf16.msra.mxu0 0
    %935 = vmatprep.subr.bf16.mxu0 0
    %936 = vmatpush1.bf16.msra.mxu0 0
    %937 = vmatprep.subr.bf16.mxu0 0
    %938 = vmatpush1.bf16.msra.mxu0 0
    %939 = vmatprep.subr.bf16.mxu0 0
    %940 = vmatpush1.bf16.msra.mxu0 0
    %941 = vmatprep.subr.bf16.mxu0 0
    %942 = vmatpush1.bf16.msra.mxu0 0
    %943 = vmatprep.subr.bf16.mxu0 0
    %944 = vmatpush1.bf16.msra.mxu0 0
    %945 = vmatprep.subr.bf16.mxu0 0
    %946 = vmatpush1.bf16.msra.mxu0 0
    %947 = vmatprep.subr.bf16.mxu0 0
    %948 = vmatpush1.bf16.msra.mxu0 0
    %949 = vmatprep.mubr.bf16.mxu0 0
    %950 = vmatmul.mubr.bf16.gmra.mrb[0].mxu0 %v331
    %v951 = vpop.f32.mrb[0].mxu0
    %v952 = vadd.f32 %v345, %v951
    %v953 = vpop.f32.mrb[0].mxu0
    %v954 = vadd.f32 %v349, %v953
    %v955 = vpop.f32.mrb[0].mxu0
    %v956 = vadd.f32 %v345, %v955
    %v957 = vpop.f32.mrb[0].mxu0
    %v958 = vadd.f32 %v349, %v957
    %959 = vdwg.mxu0
    %960 = vmatprep.subr.bf16.mxu0 %v687
    %961 = vmatpush1.bf16.msra.mxu0 %v686
    %962 = vmatprep.subr.bf16.mxu0 %v699
    %963 = vmatpush1.bf16.msra.mxu0 %v698
    %964 = vmatprep.subr.bf16.mxu0 %v711
    %965 = vmatpush1.bf16.msra.mxu0 %v710
    %966 = vmatprep.subr.bf16.mxu0 %v723
    %967 = vmatpush1.bf16.msra.mxu0 %v722
    %968 = vmatprep.subr.bf16.mxu0 %v735
    %969 = vmatpush1.bf16.msra.mxu0 %v734
    %970 = vmatprep.subr.bf16.mxu0 %v747
    %971 = vmatpush1.bf16.msra.mxu0 %v746
    %972 = vmatprep.subr.bf16.mxu0 %v759
    %973 = vmatpush1.bf16.msra.mxu0 %v758
    %974 = vmatprep.subr.bf16.mxu0 %v771
    %975 = vmatpush1.bf16.msra.mxu0 %v770
    %976 = vmatprep.subr.bf16.mxu0 0
    %977 = vmatpush1.bf16.msra.mxu0 0
    %978 = vmatprep.subr.bf16.mxu0 0
    %979 = vmatpush1.bf16.msra.mxu0 0
    %980 = vmatprep.subr.bf16.mxu0 0
    %981 = vmatpush1.bf16.msra.mxu0 0
    %982 = vmatprep.subr.bf16.mxu0 0
    %983 = vmatpush1.bf16.msra.mxu0 0
    %984 = vmatprep.subr.bf16.mxu0 0
    %985 = vmatpush1.bf16.msra.mxu0 0
    %986 = vmatprep.subr.bf16.mxu0 0
    %987 = vmatpush1.bf16.msra.mxu0 0
    %988 = vmatprep.subr.bf16.mxu0 0
    %989 = vmatpush1.bf16.msra.mxu0 0
    %990 = vmatprep.subr.bf16.mxu0 0
    %991 = vmatpush1.bf16.msra.mxu0 0
    %992 = vmatprep.mubr.bf16.mxu0 0
    %993 = vmatmul.mubr.bf16.gmra.mrb[0].mxu0 %v331
    %v994 = vpop.f32.mrb[0].mxu0
    %v995 = vadd.f32 %v353, %v994
    %v996 = vpop.f32.mrb[0].mxu0
    %v997 = vadd.f32 %v357, %v996
    %v998 = vpop.f32.mrb[0].mxu0
    %v999 = vadd.f32 %v353, %v998
    %v1000 = vpop.f32.mrb[0].mxu0
    %v1001 = vadd.f32 %v357, %v1000
    %1002 = vdwg.mxu0
    %1003 = vmatprep.subr.bf16.mxu0 %v689
    %1004 = vmatpush1.bf16.msra.mxu0 %v688
    %1005 = vmatprep.subr.bf16.mxu0 %v701
    %1006 = vmatpush1.bf16.msra.mxu0 %v700
    %1007 = vmatprep.subr.bf16.mxu0 %v713
    %1008 = vmatpush1.bf16.msra.mxu0 %v712
    %1009 = vmatprep.subr.bf16.mxu0 %v725
    %1010 = vmatpush1.bf16.msra.mxu0 %v724
    %1011 = vmatprep.subr.bf16.mxu0 %v737
    %1012 = vmatpush1.bf16.msra.mxu0 %v736
    %1013 = vmatprep.subr.bf16.mxu0 %v749
    %1014 = vmatpush1.bf16.msra.mxu0 %v748
    %1015 = vmatprep.subr.bf16.mxu0 %v761
    %1016 = vmatpush1.bf16.msra.mxu0 %v760
    %1017 = vmatprep.subr.bf16.mxu0 %v773
    %1018 = vmatpush1.bf16.msra.mxu0 %v772
    %1019 = vmatprep.subr.bf16.mxu0 0
    %1020 = vmatpush1.bf16.msra.mxu0 0
    %1021 = vmatprep.subr.bf16.mxu0 0
    %1022 = vmatpush1.bf16.msra.mxu0 0
    %1023 = vmatprep.subr.bf16.mxu0 0
    %1024 = vmatpush1.bf16.msra.mxu0 0
    %1025 = vmatprep.subr.bf16.mxu0 0
    %1026 = vmatpush1.bf16.msra.mxu0 0
    %1027 = vmatprep.subr.bf16.mxu0 0
    %1028 = vmatpush1.bf16.msra.mxu0 0
    %1029 = vmatprep.subr.bf16.mxu0 0
    %1030 = vmatpush1.bf16.msra.mxu0 0
    %1031 = vmatprep.subr.bf16.mxu0 0
    %1032 = vmatpush1.bf16.msra.mxu0 0
    %1033 = vmatprep.subr.bf16.mxu0 0
    %1034 = vmatpush1.bf16.msra.mxu0 0
    %1035 = vmatprep.mubr.bf16.mxu0 0
    %1036 = vmatmul.mubr.bf16.gmra.mrb[0].mxu0 %v331
    %v1037 = vpop.f32.mrb[0].mxu0
    %v1038 = vadd.f32 %v361, %v1037
    %v1039 = vpop.f32.mrb[0].mxu0
    %v1040 = vadd.f32 %v365, %v1039
    %v1041 = vpop.f32.mrb[0].mxu0
    %v1042 = vadd.f32 %v361, %v1041
    %v1043 = vpop.f32.mrb[0].mxu0
    %v1044 = vadd.f32 %v365, %v1043
    %1045 = vdwg.mxu0
    %1046 = vmatprep.subr.bf16.mxu0 %v691
    %1047 = vmatpush1.bf16.msra.mxu0 %v690
    %1048 = vmatprep.subr.bf16.mxu0 %v703
    %1049 = vmatpush1.bf16.msra.mxu0 %v702
    %1050 = vmatprep.subr.bf16.mxu0 %v715
    %1051 = vmatpush1.bf16.msra.mxu0 %v714
    %1052 = vmatprep.subr.bf16.mxu0 %v727
    %1053 = vmatpush1.bf16.msra.mxu0 %v726
    %1054 = vmatprep.subr.bf16.mxu0 %v739
    %1055 = vmatpush1.bf16.msra.mxu0 %v738
    %1056 = vmatprep.subr.bf16.mxu0 %v751
    %1057 = vmatpush1.bf16.msra.mxu0 %v750
    %1058 = vmatprep.subr.bf16.mxu0 %v763
    %1059 = vmatpush1.bf16.msra.mxu0 %v762
    %1060 = vmatprep.subr.bf16.mxu0 %v775
    %1061 = vmatpush1.bf16.msra.mxu0 %v774
    %1062 = vmatprep.subr.bf16.mxu0 0
    %1063 = vmatpush1.bf16.msra.mxu0 0
    %1064 = vmatprep.subr.bf16.mxu0 0
    %1065 = vmatpush1.bf16.msra.mxu0 0
    %1066 = vmatprep.subr.bf16.mxu0 0
    %1067 = vmatpush1.bf16.msra.mxu0 0
    %1068 = vmatprep.subr.bf16.mxu0 0
    %1069 = vmatpush1.bf16.msra.mxu0 0
    %1070 = vmatprep.subr.bf16.mxu0 0
    %1071 = vmatpush1.bf16.msra.mxu0 0
    %1072 = vmatprep.subr.bf16.mxu0 0
    %1073 = vmatpush1.bf16.msra.mxu0 0
    %1074 = vmatprep.subr.bf16.mxu0 0
    %1075 = vmatpush1.bf16.msra.mxu0 0
    %1076 = vmatprep.subr.bf16.mxu0 0
    %1077 = vmatpush1.bf16.msra.mxu0 0
    %1078 = vmatprep.mubr.bf16.mxu0 0
    %1079 = vmatmul.mubr.bf16.gmra.mrb[0].mxu0 %v331
    %v1080 = vpop.f32.mrb[0].mxu0
    %v1081 = vadd.f32 %v369, %v1080
    %v1082 = vpop.f32.mrb[0].mxu0
    %v1083 = vadd.f32 %v373, %v1082
    %v1084 = vpop.f32.mrb[0].mxu0
    %v1085 = vadd.f32 %v369, %v1084
    %v1086 = vpop.f32.mrb[0].mxu0
    %v1087 = vadd.f32 %v373, %v1086
    %1088 = vdwg.mxu0
    %1089 = vmatprep.subr.bf16.mxu0 %v693
    %1090 = vmatpush1.bf16.msra.mxu0 %v692
    %1091 = vmatprep.subr.bf16.mxu0 %v705
    %1092 = vmatpush1.bf16.msra.mxu0 %v704
    %1093 = vmatprep.subr.bf16.mxu0 %v717
    %1094 = vmatpush1.bf16.msra.mxu0 %v716
    %1095 = vmatprep.subr.bf16.mxu0 %v729
    %1096 = vmatpush1.bf16.msra.mxu0 %v728
    %1097 = vmatprep.subr.bf16.mxu0 %v741
    %1098 = vmatpush1.bf16.msra.mxu0 %v740
    %1099 = vmatprep.subr.bf16.mxu0 %v753
    %1100 = vmatpush1.bf16.msra.mxu0 %v752
    %1101 = vmatprep.subr.bf16.mxu0 %v765
    %1102 = vmatpush1.bf16.msra.mxu0 %v764
    %1103 = vmatprep.subr.bf16.mxu0 %v777
    %1104 = vmatpush1.bf16.msra.mxu0 %v776
    %1105 = vmatprep.subr.bf16.mxu0 0
    %1106 = vmatpush1.bf16.msra.mxu0 0
    %1107 = vmatprep.subr.bf16.mxu0 0
    %1108 = vmatpush1.bf16.msra.mxu0 0
    %1109 = vmatprep.subr.bf16.mxu0 0
    %1110 = vmatpush1.bf16.msra.mxu0 0
    %1111 = vmatprep.subr.bf16.mxu0 0
    %1112 = vmatpush1.bf16.msra.mxu0 0
    %1113 = vmatprep.subr.bf16.mxu0 0
    %1114 = vmatpush1.bf16.msra.mxu0 0
    %1115 = vmatprep.subr.bf16.mxu0 0
    %1116 = vmatpush1.bf16.msra.mxu0 0
    %1117 = vmatprep.subr.bf16.mxu0 0
    %1118 = vmatpush1.bf16.msra.mxu0 0
    %1119 = vmatprep.subr.bf16.mxu0 0
    %1120 = vmatpush1.bf16.msra.mxu0 0
    %1121 = vmatprep.mubr.bf16.mxu0 0
    %1122 = vmatmul.mubr.bf16.gmra.mrb[0].mxu0 %v331
    %v1123 = vpop.f32.mrb[0].mxu0
    %v1124 = vadd.f32 %v377, %v1123
    %v1125 = vpop.f32.mrb[0].mxu0
    %v1126 = vadd.f32 %v381, %v1125
    %v1127 = vpop.f32.mrb[0].mxu0
    %v1128 = vadd.f32 %v377, %v1127
    %v1129 = vpop.f32.mrb[0].mxu0
    %v1130 = vadd.f32 %v381, %v1129
    %1131 = vdwg.mxu0
    %v1132 = vpack.c.bf16 %v913, %v909
    %v1133 = vpack.c.bf16 %v915, %v911
    %v1134 = vpack.c.bf16 %v956, %v952
    %v1135 = vpack.c.bf16 %v958, %v954
    %v1136 = vpack.c.bf16 %v999, %v995
    %v1137 = vpack.c.bf16 %v1001, %v997
    %v1138 = vpack.c.bf16 %v1042, %v1038
    %v1139 = vpack.c.bf16 %v1044, %v1040
    %v1140 = vpack.c.bf16 %v1085, %v1081
    %v1141 = vpack.c.bf16 %v1087, %v1083
    %v1142 = vpack.c.bf16 %v1128, %v1124
    %v1143 = vpack.c.bf16 %v1130, %v1126
    %1144 = vst [vmem:[#allocation2] sm:$0xff] %v1132
    %1145 = vst [vmem:[#allocation2 + $0x8] sm:$0xff] %v1133
    %1146 = vst [vmem:[#allocation2 + $0x10] sm:$0xff] %v1134
    %1147 = vst [vmem:[#allocation2 + $0x18] sm:$0xff] %v1135
    %1148 = vst [vmem:[#allocation2 + $0x20] sm:$0xff] %v1136
    %1149 = vst [vmem:[#allocation2 + $0x28] sm:$0xff] %v1137
    %1150 = vst [vmem:[#allocation2 + $0x30] sm:$0xff] %v1138
    %1151 = vst [vmem:[#allocation2 + $0x38] sm:$0xff] %v1139
    %1152 = vst [vmem:[#allocation2 + $0x40] sm:$0xff] %v1140
    %1153 = vst [vmem:[#allocation2 + $0x48] sm:$0xff] %v1141
    %1154 = vst [vmem:[#allocation2 + $0x50] sm:$0xff] %v1142
    %1155 = vst [vmem:[#allocation2 + $0x58] sm:$0xff] %v1143
    %v1156 = vld [vmem:[#allocation2] sm:$0xff]
    %v1157 = vld [vmem:[#allocation2 + $0x20] sm:$0xff]
    %1158 = vmatprep.subr.bf16.mxu0 0
    %1159 = vmatpush1.bf16.xpose.msra.mxu0 %v1157
    %1160 = vmatprep.subr.bf16.mxu0 0
    %1161 = vmatpush1.bf16.xpose.msra.mxu0 0
    %1162 = vmatprep.subr.bf16.mxu0 0
    %1163 = vmatpush1.bf16.xpose.msra.mxu0 0
    %1164 = vmatprep.subr.bf16.mxu0 0
    %1165 = vmatpush1.bf16.xpose.msra.mxu0 0
    %1166 = vmatprep.subr.bf16.mxu0 0
    %1167 = vmatpush1.bf16.xpose.msra.mxu0 0
    %1168 = vmatprep.subr.bf16.mxu0 0
    %1169 = vmatpush1.bf16.xpose.msra.mxu0 0
    %1170 = vmatprep.subr.bf16.mxu0 0
    %1171 = vmatpush1.bf16.xpose.msra.mxu0 0
    %1172 = vmatprep.subr.bf16.mxu0 0
    %1173 = vmatpush1.bf16.xpose.msra.mxu0 0
    %1174 = vmatprep.subr.bf16.mxu0 0
    %1175 = vmatpush1.bf16.xpose.msra.mxu0 0
    %1176 = vmatprep.subr.bf16.mxu0 0
    %1177 = vmatpush1.bf16.xpose.msra.mxu0 0
    %1178 = vmatprep.subr.bf16.mxu0 0
    %1179 = vmatpush1.bf16.xpose.msra.mxu0 0
    %1180 = vmatprep.subr.bf16.mxu0 0
    %1181 = vmatpush1.bf16.xpose.msra.mxu0 0
    %1182 = vmatprep.subr.bf16.mxu0 0
    %1183 = vmatpush1.bf16.xpose.msra.mxu0 0
    %1184 = vmatprep.subr.bf16.mxu0 0
    %1185 = vmatpush1.bf16.xpose.msra.mxu0 0
    %1186 = vmatprep.subr.bf16.mxu0 0
    %1187 = vmatpush1.bf16.xpose.msra.mxu0 0
    %1188 = vmatprep.subr.bf16.mxu0 0
    %1189 = vmatpush1.bf16.xpose.msra.mxu0 0
    %1190 = vmatprep.mubr.bf16.mxu0 0
    %1191 = vmatmul.mubr.bf16.gmra.mrb[0].mxu0 %v1156
    %v1192 = vpop.f32.mrb[0].mxu0
    %v1193 = vadd.f32 0.0, %v1192
    %v1194 = vpop.f32.mrb[0].mxu0
    %v1195 = vpop.f32.mrb[0].mxu0
    %v1196 = vadd.f32 0.0, %v1195
    %v1197 = vpop.f32.mrb[0].mxu0
    %1198 = vdwg.mxu0
    %v1199 = vld [vmem:[#allocation2 + $0x8] sm:$0xff]
    %v1200 = vld [vmem:[#allocation2 + $0x28] sm:$0xff]
    %1201 = vmatprep.subr.bf16.mxu0 0
    %1202 = vmatpush1.bf16.xpose.msra.mxu0 %v1200
    %1203 = vmatprep.subr.bf16.mxu0 0
    %1204 = vmatpush1.bf16.xpose.msra.mxu0 0
    %1205 = vmatprep.subr.bf16.mxu0 0
    %1206 = vmatpush1.bf16.xpose.msra.mxu0 0
    %1207 = vmatprep.subr.bf16.mxu0 0
    %1208 = vmatpush1.bf16.xpose.msra.mxu0 0
    %1209 = vmatprep.subr.bf16.mxu0 0
    %1210 = vmatpush1.bf16.xpose.msra.mxu0 0
    %1211 = vmatprep.subr.bf16.mxu0 0
    %1212 = vmatpush1.bf16.xpose.msra.mxu0 0
    %1213 = vmatprep.subr.bf16.mxu0 0
    %1214 = vmatpush1.bf16.xpose.msra.mxu0 0
    %1215 = vmatprep.subr.bf16.mxu0 0
    %1216 = vmatpush1.bf16.xpose.msra.mxu0 0
    %1217 = vmatprep.subr.bf16.mxu0 0
    %1218 = vmatpush1.bf16.xpose.msra.mxu0 0
    %1219 = vmatprep.subr.bf16.mxu0 0
    %1220 = vmatpush1.bf16.xpose.msra.mxu0 0
    %1221 = vmatprep.subr.bf16.mxu0 0
    %1222 = vmatpush1.bf16.xpose.msra.mxu0 0
    %1223 = vmatprep.subr.bf16.mxu0 0
    %1224 = vmatpush1.bf16.xpose.msra.mxu0 0
    %1225 = vmatprep.subr.bf16.mxu0 0
    %1226 = vmatpush1.bf16.xpose.msra.mxu0 0
    %1227 = vmatprep.subr.bf16.mxu0 0
    %1228 = vmatpush1.bf16.xpose.msra.mxu0 0
    %1229 = vmatprep.subr.bf16.mxu0 0
    %1230 = vmatpush1.bf16.xpose.msra.mxu0 0
    %1231 = vmatprep.subr.bf16.mxu0 0
    %1232 = vmatpush1.bf16.xpose.msra.mxu0 0
    %1233 = vmatprep.mubr.bf16.mxu0 0
    %1234 = vmatmul.mubr.bf16.gmra.mrb[0].mxu0 %v1199
    %v1235 = vpop.f32.mrb[0].mxu0
    %v1236 = vadd.f32 0.0, %v1235
    %v1237 = vpop.f32.mrb[0].mxu0
    %v1238 = vpop.f32.mrb[0].mxu0
    %v1239 = vadd.f32 0.0, %v1238
    %v1240 = vpop.f32.mrb[0].mxu0
    %1241 = vdwg.mxu0
    %v1242 = vld [vmem:[#allocation2 + $0x10] sm:$0xff]
    %v1243 = vld [vmem:[#allocation2 + $0x30] sm:$0xff]
    %1244 = vmatprep.subr.bf16.mxu0 0
    %1245 = vmatpush1.bf16.xpose.msra.mxu0 %v1243
    %1246 = vmatprep.subr.bf16.mxu0 0
    %1247 = vmatpush1.bf16.xpose.msra.mxu0 0
    %1248 = vmatprep.subr.bf16.mxu0 0
    %1249 = vmatpush1.bf16.xpose.msra.mxu0 0
    %1250 = vmatprep.subr.bf16.mxu0 0
    %1251 = vmatpush1.bf16.xpose.msra.mxu0 0
    %1252 = vmatprep.subr.bf16.mxu0 0
    %1253 = vmatpush1.bf16.xpose.msra.mxu0 0
    %1254 = vmatprep.subr.bf16.mxu0 0
    %1255 = vmatpush1.bf16.xpose.msra.mxu0 0
    %1256 = vmatprep.subr.bf16.mxu0 0
    %1257 = vmatpush1.bf16.xpose.msra.mxu0 0
    %1258 = vmatprep.subr.bf16.mxu0 0
    %1259 = vmatpush1.bf16.xpose.msra.mxu0 0
    %1260 = vmatprep.subr.bf16.mxu0 0
    %1261 = vmatpush1.bf16.xpose.msra.mxu0 0
    %1262 = vmatprep.subr.bf16.mxu0 0
    %1263 = vmatpush1.bf16.xpose.msra.mxu0 0
    %1264 = vmatprep.subr.bf16.mxu0 0
    %1265 = vmatpush1.bf16.xpose.msra.mxu0 0
    %1266 = vmatprep.subr.bf16.mxu0 0
    %1267 = vmatpush1.bf16.xpose.msra.mxu0 0
    %1268 = vmatprep.subr.bf16.mxu0 0
    %1269 = vmatpush1.bf16.xpose.msra.mxu0 0
    %1270 = vmatprep.subr.bf16.mxu0 0
    %1271 = vmatpush1.bf16.xpose.msra.mxu0 0
    %1272 = vmatprep.subr.bf16.mxu0 0
    %1273 = vmatpush1.bf16.xpose.msra.mxu0 0
    %1274 = vmatprep.subr.bf16.mxu0 0
    %1275 = vmatpush1.bf16.xpose.msra.mxu0 0
    %1276 = vmatprep.mubr.bf16.mxu0 0
    %1277 = vmatmul.mubr.bf16.gmra.mrb[0].mxu0 %v1242
    %v1278 = vpop.f32.mrb[0].mxu0
    %v1279 = vadd.f32 0.0, %v1278
    %v1280 = vpop.f32.mrb[0].mxu0
    %v1281 = vpop.f32.mrb[0].mxu0
    %v1282 = vadd.f32 0.0, %v1281
    %v1283 = vpop.f32.mrb[0].mxu0
    %1284 = vdwg.mxu0
    %v1285 = vld [vmem:[#allocation2 + $0x18] sm:$0xff]
    %v1286 = vld [vmem:[#allocation2 + $0x38] sm:$0xff]
    %1287 = vmatprep.subr.bf16.mxu0 0
    %1288 = vmatpush1.bf16.xpose.msra.mxu0 %v1286
    %1289 = vmatprep.subr.bf16.mxu0 0
    %1290 = vmatpush1.bf16.xpose.msra.mxu0 0
    %1291 = vmatprep.subr.bf16.mxu0 0
    %1292 = vmatpush1.bf16.xpose.msra.mxu0 0
    %1293 = vmatprep.subr.bf16.mxu0 0
    %1294 = vmatpush1.bf16.xpose.msra.mxu0 0
    %1295 = vmatprep.subr.bf16.mxu0 0
    %1296 = vmatpush1.bf16.xpose.msra.mxu0 0
    %1297 = vmatprep.subr.bf16.mxu0 0
    %1298 = vmatpush1.bf16.xpose.msra.mxu0 0
    %1299 = vmatprep.subr.bf16.mxu0 0
    %1300 = vmatpush1.bf16.xpose.msra.mxu0 0
    %1301 = vmatprep.subr.bf16.mxu0 0
    %1302 = vmatpush1.bf16.xpose.msra.mxu0 0
    %1303 = vmatprep.subr.bf16.mxu0 0
    %1304 = vmatpush1.bf16.xpose.msra.mxu0 0
    %1305 = vmatprep.subr.bf16.mxu0 0
    %1306 = vmatpush1.bf16.xpose.msra.mxu0 0
    %1307 = vmatprep.subr.bf16.mxu0 0
    %1308 = vmatpush1.bf16.xpose.msra.mxu0 0
    %1309 = vmatprep.subr.bf16.mxu0 0
    %1310 = vmatpush1.bf16.xpose.msra.mxu0 0
    %1311 = vmatprep.subr.bf16.mxu0 0
    %1312 = vmatpush1.bf16.xpose.msra.mxu0 0
    %1313 = vmatprep.subr.bf16.mxu0 0
    %1314 = vmatpush1.bf16.xpose.msra.mxu0 0
    %1315 = vmatprep.subr.bf16.mxu0 0
    %1316 = vmatpush1.bf16.xpose.msra.mxu0 0
    %1317 = vmatprep.subr.bf16.mxu0 0
    %1318 = vmatpush1.bf16.xpose.msra.mxu0 0
    %1319 = vmatprep.mubr.bf16.mxu0 0
    %1320 = vmatmul.mubr.bf16.gmra.mrb[0].mxu0 %v1285
    %v1321 = vpop.f32.mrb[0].mxu0
    %v1322 = vadd.f32 0.0, %v1321
    %v1323 = vpop.f32.mrb[0].mxu0
    %v1324 = vpop.f32.mrb[0].mxu0
    %v1325 = vadd.f32 0.0, %v1324
    %v1326 = vpop.f32.mrb[0].mxu0
    %1327 = vdwg.mxu0
    %v1328 = vadd.f32 %v1193, %v231
    %v1329 = vadd.f32 %v1196, %v232
    %v1330 = vadd.f32 %v1236, %v231
    %v1331 = vadd.f32 %v1239, %v232
    %v1332 = vadd.f32 %v1279, %v231
    %v1333 = vadd.f32 %v1282, %v232
    %v1334 = vadd.f32 %v1322, %v231
    %v1335 = vadd.f32 %v1325, %v232
    %vm1336 = vcmask 130048
    %v1337 = vsel %vm1336, %v1328, -inf
    %1338 = vmax.xlane.f32.xlu0 %v1337
    %v1339 = vpop.xlane.xlu0 %1338
    %v1340 = vsel %vm1336, %v1329, -inf
    %1341 = vmax.xlane.f32.xlu0 %v1340
    %v1342 = vpop.xlane.xlu0 %1341
    %v1343 = vsel %vm1336, %v1330, -inf
    %1344 = vmax.xlane.f32.xlu0 %v1343
    %v1345 = vpop.xlane.xlu0 %1344
    %v1346 = vsel %vm1336, %v1331, -inf
    %1347 = vmax.xlane.f32.xlu0 %v1346
    %v1348 = vpop.xlane.xlu0 %1347
    %v1349 = vsel %vm1336, %v1332, -inf
    %1350 = vmax.xlane.f32.xlu0 %v1349
    %v1351 = vpop.xlane.xlu0 %1350
    %v1352 = vsel %vm1336, %v1333, -inf
    %1353 = vmax.xlane.f32.xlu0 %v1352
    %v1354 = vpop.xlane.xlu0 %1353
    %v1355 = vsel %vm1336, %v1334, -inf
    %1356 = vmax.xlane.f32.xlu0 %v1355
    %v1357 = vpop.xlane.xlu0 %1356
    %v1358 = vsel %vm1336, %v1335, -inf
    %1359 = vmax.xlane.f32.xlu0 %v1358
    %v1360 = vpop.xlane.xlu0 %1359
    %v1361 = vsub.f32 %v1328, %v1339
    %v1362 = vsub.f32 %v1329, %v1342
    %v1363 = vsub.f32 %v1330, %v1345
    %v1364 = vsub.f32 %v1331, %v1348
    %v1365 = vsub.f32 %v1332, %v1351
    %v1366 = vsub.f32 %v1333, %v1354
    %v1367 = vsub.f32 %v1334, %v1357
    %v1368 = vsub.f32 %v1335, %v1360
    %v1369 = vmul.f32 %v1361, 1.442695
    %v1370 = vpow.pop %v1369
    %v1371 = vmul.f32 %v1362, 1.442695
    %v1372 = vpow.pop %v1371
    %v1373 = vmul.f32 %v1363, 1.442695
    %v1374 = vpow.pop %v1373
    %v1375 = vmul.f32 %v1364, 1.442695
    %v1376 = vpow.pop %v1375
    %v1377 = vmul.f32 %v1365, 1.442695
    %v1378 = vpow.pop %v1377
    %v1379 = vmul.f32 %v1366, 1.442695
    %v1380 = vpow.pop %v1379
    %v1381 = vmul.f32 %v1367, 1.442695
    %v1382 = vpow.pop %v1381
    %v1383 = vmul.f32 %v1368, 1.442695
    %v1384 = vpow.pop %v1383
    %v1385 = vsel %vm1336, %v1370, 0.0
    %1386 = vadd.xlane.f32.xlu0 %v1385
    %v1387 = vpop.xlane.xlu0 %1386
    %v1388 = vsel %vm1336, %v1372, 0.0
    %1389 = vadd.xlane.f32.xlu0 %v1388
    %v1390 = vpop.xlane.xlu0 %1389
    %v1391 = vsel %vm1336, %v1374, 0.0
    %1392 = vadd.xlane.f32.xlu0 %v1391
    %v1393 = vpop.xlane.xlu0 %1392
    %v1394 = vsel %vm1336, %v1376, 0.0
    %1395 = vadd.xlane.f32.xlu0 %v1394
    %v1396 = vpop.xlane.xlu0 %1395
    %v1397 = vsel %vm1336, %v1378, 0.0
    %1398 = vadd.xlane.f32.xlu0 %v1397
    %v1399 = vpop.xlane.xlu0 %1398
    %v1400 = vsel %vm1336, %v1380, 0.0
    %1401 = vadd.xlane.f32.xlu0 %v1400
    %v1402 = vpop.xlane.xlu0 %1401
    %v1403 = vsel %vm1336, %v1382, 0.0
    %1404 = vadd.xlane.f32.xlu0 %v1403
    %v1405 = vpop.xlane.xlu0 %1404
    %v1406 = vsel %vm1336, %v1384, 0.0
    %1407 = vadd.xlane.f32.xlu0 %v1406
    %v1408 = vpop.xlane.xlu0 %1407
    %v1409 = vrcp.pop %v1387
    %v1410 = vmul.f32 %v1370, %v1409
    %v1411 = vrcp.pop %v1390
    %v1412 = vmul.f32 %v1372, %v1411
    %v1413 = vrcp.pop %v1393
    %v1414 = vmul.f32 %v1374, %v1413
    %v1415 = vrcp.pop %v1396
    %v1416 = vmul.f32 %v1376, %v1415
    %v1417 = vrcp.pop %v1399
    %v1418 = vmul.f32 %v1378, %v1417
    %v1419 = vrcp.pop %v1402
    %v1420 = vmul.f32 %v1380, %v1419
    %v1421 = vrcp.pop %v1405
    %v1422 = vmul.f32 %v1382, %v1421
    %v1423 = vrcp.pop %v1408
    %v1424 = vmul.f32 %v1384, %v1423
    %v1425 = vpack.c.bf16 %v1412, %v1410
    %v1426 = vpack.c.bf16 %v1416, %v1414
    %v1427 = vpack.c.bf16 %v1420, %v1418
    %v1428 = vpack.c.bf16 %v1424, %v1422
    %v1429 = vld [vmem:[#allocation2 + $0x40] sm:$0xff]
    %v1431 = vsel %vm1336, %v1425, 0
    %1433 = vmatprep.subr.bf16.mxu0 0
    %1434 = vmatpush1.bf16.msra.mxu0 %v1429
    %1435 = vmatprep.subr.bf16.mxu0 0
    %1436 = vmatpush1.bf16.msra.mxu0 0
    %1437 = vmatprep.subr.bf16.mxu0 0
    %1438 = vmatpush1.bf16.msra.mxu0 0
    %1439 = vmatprep.subr.bf16.mxu0 0
    %1440 = vmatpush1.bf16.msra.mxu0 0
    %1441 = vmatprep.subr.bf16.mxu0 0
    %1442 = vmatpush1.bf16.msra.mxu0 0
    %1443 = vmatprep.subr.bf16.mxu0 0
    %1444 = vmatpush1.bf16.msra.mxu0 0
    %1445 = vmatprep.subr.bf16.mxu0 0
    %1446 = vmatpush1.bf16.msra.mxu0 0
    %1447 = vmatprep.subr.bf16.mxu0 0
    %1448 = vmatpush1.bf16.msra.mxu0 0
    %1449 = vmatprep.subr.bf16.mxu0 0
    %1450 = vmatpush1.bf16.msra.mxu0 0
    %1451 = vmatprep.subr.bf16.mxu0 0
    %1452 = vmatpush1.bf16.msra.mxu0 0
    %1453 = vmatprep.subr.bf16.mxu0 0
    %1454 = vmatpush1.bf16.msra.mxu0 0
    %1455 = vmatprep.subr.bf16.mxu0 0
    %1456 = vmatpush1.bf16.msra.mxu0 0
    %1457 = vmatprep.subr.bf16.mxu0 0
    %1458 = vmatpush1.bf16.msra.mxu0 0
    %1459 = vmatprep.subr.bf16.mxu0 0
    %1460 = vmatpush1.bf16.msra.mxu0 0
    %1461 = vmatprep.subr.bf16.mxu0 0
    %1462 = vmatpush1.bf16.msra.mxu0 0
    %1463 = vmatprep.subr.bf16.mxu0 0
    %1464 = vmatpush1.bf16.msra.mxu0 0
    %1465 = vmatprep.mubr.bf16.mxu0 0
    %1466 = vmatmul.mubr.bf16.gmra.mrb[0].mxu0 %v1431
    %v1467 = vpop.f32.mrb[0].mxu0
    %v1468 = vadd.f32 0.0, %v1467
    %v1469 = vpop.f32.mrb[0].mxu0
    %v1470 = vpop.f32.mrb[0].mxu0
    %v1471 = vadd.f32 0.0, %v1470
    %v1472 = vpop.f32.mrb[0].mxu0
    %1473 = vdwg.mxu0
    %v1474 = vpack.c.bf16 %v1471, %v1468
    %1475 = vst [vmem:[#allocation3] sm:$0xff] %v1474
    %v1476 = vld [vmem:[#allocation2 + $0x48] sm:$0xff]
    %v1478 = vsel %vm1336, %v1426, 0
    %1480 = vmatprep.subr.bf16.mxu0 0
    %1481 = vmatpush1.bf16.msra.mxu0 %v1476
    %1482 = vmatprep.subr.bf16.mxu0 0
    %1483 = vmatpush1.bf16.msra.mxu0 0
    %1484 = vmatprep.subr.bf16.mxu0 0
    %1485 = vmatpush1.bf16.msra.mxu0 0
    %1486 = vmatprep.subr.bf16.mxu0 0
    %1487 = vmatpush1.bf16.msra.mxu0 0
    %1488 = vmatprep.subr.bf16.mxu0 0
    %1489 = vmatpush1.bf16.msra.mxu0 0
    %1490 = vmatprep.subr.bf16.mxu0 0
    %1491 = vmatpush1.bf16.msra.mxu0 0
    %1492 = vmatprep.subr.bf16.mxu0 0
    %1493 = vmatpush1.bf16.msra.mxu0 0
    %1494 = vmatprep.subr.bf16.mxu0 0
    %1495 = vmatpush1.bf16.msra.mxu0 0
    %1496 = vmatprep.subr.bf16.mxu0 0
    %1497 = vmatpush1.bf16.msra.mxu0 0
    %1498 = vmatprep.subr.bf16.mxu0 0
    %1499 = vmatpush1.bf16.msra.mxu0 0
    %1500 = vmatprep.subr.bf16.mxu0 0
    %1501 = vmatpush1.bf16.msra.mxu0 0
    %1502 = vmatprep.subr.bf16.mxu0 0
    %1503 = vmatpush1.bf16.msra.mxu0 0
    %1504 = vmatprep.subr.bf16.mxu0 0
    %1505 = vmatpush1.bf16.msra.mxu0 0
    %1506 = vmatprep.subr.bf16.mxu0 0
    %1507 = vmatpush1.bf16.msra.mxu0 0
    %1508 = vmatprep.subr.bf16.mxu0 0
    %1509 = vmatpush1.bf16.msra.mxu0 0
    %1510 = vmatprep.subr.bf16.mxu0 0
    %1511 = vmatpush1.bf16.msra.mxu0 0
    %1512 = vmatprep.mubr.bf16.mxu0 0
    %1513 = vmatmul.mubr.bf16.gmra.mrb[0].mxu0 %v1478
    %v1514 = vpop.f32.mrb[0].mxu0
    %v1515 = vadd.f32 0.0, %v1514
    %v1516 = vpop.f32.mrb[0].mxu0
    %v1517 = vpop.f32.mrb[0].mxu0
    %v1518 = vadd.f32 0.0, %v1517
    %v1519 = vpop.f32.mrb[0].mxu0
    %1520 = vdwg.mxu0
    %v1521 = vpack.c.bf16 %v1518, %v1515
    %1522 = vst [vmem:[#allocation3 + $0x8] sm:$0xff] %v1521
    %v1523 = vld [vmem:[#allocation2 + $0x50] sm:$0xff]
    %v1525 = vsel %vm1336, %v1427, 0
    %1527 = vmatprep.subr.bf16.mxu0 0
    %1528 = vmatpush1.bf16.msra.mxu0 %v1523
    %1529 = vmatprep.subr.bf16.mxu0 0
    %1530 = vmatpush1.bf16.msra.mxu0 0
    %1531 = vmatprep.subr.bf16.mxu0 0
    %1532 = vmatpush1.bf16.msra.mxu0 0
    %1533 = vmatprep.subr.bf16.mxu0 0
    %1534 = vmatpush1.bf16.msra.mxu0 0
    %1535 = vmatprep.subr.bf16.mxu0 0
    %1536 = vmatpush1.bf16.msra.mxu0 0
    %1537 = vmatprep.subr.bf16.mxu0 0
    %1538 = vmatpush1.bf16.msra.mxu0 0
    %1539 = vmatprep.subr.bf16.mxu0 0
    %1540 = vmatpush1.bf16.msra.mxu0 0
    %1541 = vmatprep.subr.bf16.mxu0 0
    %1542 = vmatpush1.bf16.msra.mxu0 0
    %1543 = vmatprep.subr.bf16.mxu0 0
    %1544 = vmatpush1.bf16.msra.mxu0 0
    %1545 = vmatprep.subr.bf16.mxu0 0
    %1546 = vmatpush1.bf16.msra.mxu0 0
    %1547 = vmatprep.subr.bf16.mxu0 0
    %1548 = vmatpush1.bf16.msra.mxu0 0
    %1549 = vmatprep.subr.bf16.mxu0 0
    %1550 = vmatpush1.bf16.msra.mxu0 0
    %1551 = vmatprep.subr.bf16.mxu0 0
    %1552 = vmatpush1.bf16.msra.mxu0 0
    %1553 = vmatprep.subr.bf16.mxu0 0
    %1554 = vmatpush1.bf16.msra.mxu0 0
    %1555 = vmatprep.subr.bf16.mxu0 0
    %1556 = vmatpush1.bf16.msra.mxu0 0
    %1557 = vmatprep.subr.bf16.mxu0 0
    %1558 = vmatpush1.bf16.msra.mxu0 0
    %1559 = vmatprep.mubr.bf16.mxu0 0
    %1560 = vmatmul.mubr.bf16.gmra.mrb[0].mxu0 %v1525
    %v1561 = vpop.f32.mrb[0].mxu0
    %v1562 = vadd.f32 0.0, %v1561
    %v1563 = vpop.f32.mrb[0].mxu0
    %v1564 = vpop.f32.mrb[0].mxu0
    %v1565 = vadd.f32 0.0, %v1564
    %v1566 = vpop.f32.mrb[0].mxu0
    %1567 = vdwg.mxu0
    %v1568 = vpack.c.bf16 %v1565, %v1562
    %1569 = vst [vmem:[#allocation3 + $0x10] sm:$0xff] %v1568
    %v1570 = vld [vmem:[#allocation2 + $0x58] sm:$0xff]
    %v1572 = vsel %vm1336, %v1428, 0
    %1574 = vmatprep.subr.bf16.mxu0 0
    %1575 = vmatpush1.bf16.msra.mxu0 %v1570
    %1576 = vmatprep.subr.bf16.mxu0 0
    %1577 = vmatpush1.bf16.msra.mxu0 0
    %1578 = vmatprep.subr.bf16.mxu0 0
    %1579 = vmatpush1.bf16.msra.mxu0 0
    %1580 = vmatprep.subr.bf16.mxu0 0
    %1581 = vmatpush1.bf16.msra.mxu0 0
    %1582 = vmatprep.subr.bf16.mxu0 0
    %1583 = vmatpush1.bf16.msra.mxu0 0
    %1584 = vmatprep.subr.bf16.mxu0 0
    %1585 = vmatpush1.bf16.msra.mxu0 0
    %1586 = vmatprep.subr.bf16.mxu0 0
    %1587 = vmatpush1.bf16.msra.mxu0 0
    %1588 = vmatprep.subr.bf16.mxu0 0
    %1589 = vmatpush1.bf16.msra.mxu0 0
    %1590 = vmatprep.subr.bf16.mxu0 0
    %1591 = vmatpush1.bf16.msra.mxu0 0
    %1592 = vmatprep.subr.bf16.mxu0 0
    %1593 = vmatpush1.bf16.msra.mxu0 0
    %1594 = vmatprep.subr.bf16.mxu0 0
    %1595 = vmatpush1.bf16.msra.mxu0 0
    %1596 = vmatprep.subr.bf16.mxu0 0
    %1597 = vmatpush1.bf16.msra.mxu0 0
    %1598 = vmatprep.subr.bf16.mxu0 0
    %1599 = vmatpush1.bf16.msra.mxu0 0
    %1600 = vmatprep.subr.bf16.mxu0 0
    %1601 = vmatpush1.bf16.msra.mxu0 0
    %1602 = vmatprep.subr.bf16.mxu0 0
    %1603 = vmatpush1.bf16.msra.mxu0 0
    %1604 = vmatprep.subr.bf16.mxu0 0
    %1605 = vmatpush1.bf16.msra.mxu0 0
    %1606 = vmatprep.mubr.bf16.mxu0 0
    %1607 = vmatmul.mubr.bf16.gmra.mrb[0].mxu0 %v1572
    %v1608 = vpop.f32.mrb[0].mxu0
    %v1609 = vadd.f32 0.0, %v1608
    %v1610 = vpop.f32.mrb[0].mxu0
    %v1611 = vpop.f32.mrb[0].mxu0
    %v1612 = vadd.f32 0.0, %v1611
    %v1613 = vpop.f32.mrb[0].mxu0
    %1614 = vdwg.mxu0
    %v1615 = vpack.c.bf16 %v1612, %v1609
    %1616 = vst [vmem:[#allocation3 + $0x18] sm:$0xff] %v1615
    %v1617 = vld [vmem:[#allocation3] sm:$0xff]
    %v1618 = vld [vmem:[#allocation3 + $0x8] sm:$0xff]
    %v1619 = vld [vmem:[#allocation3 + $0x10] sm:$0xff]
    %v1620 = vld [vmem:[#allocation3 + $0x18] sm:$0xff]
    %v1621 = vld [vmem:[#allocation13] sm:$0xf]
    %v1622 = vld [vmem:[#allocation13 + $0x4] sm:$0xf]
    %v1623 = vld [vmem:[#allocation13 + $0x8] sm:$0xf]
    %v1624 = vld [vmem:[#allocation13 + $0xc] sm:$0xf]
    %v1625 = vld [vmem:[#allocation13 + $0x10] sm:$0xf]
    %v1626 = vld [vmem:[#allocation13 + $0x14] sm:$0xf]
    %v1627 = vld [vmem:[#allocation13 + $0x18] sm:$0xf]
    %v1628 = vld [vmem:[#allocation13 + $0x1c] sm:$0xf]
    %v1629 = vld [vmem:[#allocation13 + $0x20] sm:$0xf]
    %v1630 = vld [vmem:[#allocation13 + $0x24] sm:$0xf]
    %v1631 = vld [vmem:[#allocation13 + $0x28] sm:$0xf]
    %v1632 = vld [vmem:[#allocation13 + $0x2c] sm:$0xf]
    %v1633 = vld [vmem:[#allocation13 + $0x30] sm:$0xf]
    %v1634 = vld [vmem:[#allocation13 + $0x34] sm:$0xf]
    %v1635 = vld [vmem:[#allocation13 + $0x38] sm:$0xf]
    %v1636 = vld [vmem:[#allocation13 + $0x3c] sm:$0xf]
    %v1637 = vld [vmem:[#allocation13 + $0x40] sm:$0xf]
    %v1638 = vld [vmem:[#allocation13 + $0x44] sm:$0xf]
    %v1639 = vld [vmem:[#allocation13 + $0x48] sm:$0xf]
    %v1640 = vld [vmem:[#allocation13 + $0x4c] sm:$0xf]
    %v1641 = vld [vmem:[#allocation13 + $0x50] sm:$0xf]
    %v1642 = vld [vmem:[#allocation13 + $0x54] sm:$0xf]
    %v1643 = vld [vmem:[#allocation13 + $0x58] sm:$0xf]
    %v1644 = vld [vmem:[#allocation13 + $0x5c] sm:$0xf]
    %v1645 = vld [vmem:[#allocation13 + $0x60] sm:$0xf]
    %v1646 = vld [vmem:[#allocation13 + $0x64] sm:$0xf]
    %v1647 = vld [vmem:[#allocation13 + $0x68] sm:$0xf]
    %v1648 = vld [vmem:[#allocation13 + $0x6c] sm:$0xf]
    %v1649 = vld [vmem:[#allocation13 + $0x70] sm:$0xf]
    %v1650 = vld [vmem:[#allocation13 + $0x74] sm:$0xf]
    %v1651 = vld [vmem:[#allocation13 + $0x78] sm:$0xf]
    %v1652 = vld [vmem:[#allocation13 + $0x7c] sm:$0xf]
    %v1653 = vld [vmem:[#allocation13 + $0x80] sm:$0xf]
    %v1654 = vld [vmem:[#allocation13 + $0x84] sm:$0xf]
    %v1655 = vld [vmem:[#allocation13 + $0x88] sm:$0xf]
    %v1656 = vld [vmem:[#allocation13 + $0x8c] sm:$0xf]
    %v1657 = vld [vmem:[#allocation13 + $0x90] sm:$0xf]
    %v1658 = vld [vmem:[#allocation13 + $0x94] sm:$0xf]
    %v1659 = vld [vmem:[#allocation13 + $0x98] sm:$0xf]
    %v1660 = vld [vmem:[#allocation13 + $0x9c] sm:$0xf]
    %v1661 = vld [vmem:[#allocation13 + $0xa0] sm:$0xf]
    %v1662 = vld [vmem:[#allocation13 + $0xa4] sm:$0xf]
    %v1663 = vld [vmem:[#allocation13 + $0xa8] sm:$0xf]
    %v1664 = vld [vmem:[#allocation13 + $0xac] sm:$0xf]
    %v1665 = vld [vmem:[#allocation13 + $0xb0] sm:$0xf]
    %v1666 = vld [vmem:[#allocation13 + $0xb4] sm:$0xf]
    %v1667 = vld [vmem:[#allocation13 + $0xb8] sm:$0xf]
    %v1668 = vld [vmem:[#allocation13 + $0xbc] sm:$0xf]
    %v1669 = vld [vmem:[#allocation13 + $0xc0] sm:$0xf]
    %v1670 = vld [vmem:[#allocation13 + $0xc4] sm:$0xf]
    %v1671 = vld [vmem:[#allocation13 + $0xc8] sm:$0xf]
    %v1672 = vld [vmem:[#allocation13 + $0xcc] sm:$0xf]
    %v1673 = vld [vmem:[#allocation13 + $0xd0] sm:$0xf]
    %v1674 = vld [vmem:[#allocation13 + $0xd4] sm:$0xf]
    %v1675 = vld [vmem:[#allocation13 + $0xd8] sm:$0xf]
    %v1676 = vld [vmem:[#allocation13 + $0xdc] sm:$0xf]
    %v1677 = vld [vmem:[#allocation13 + $0xe0] sm:$0xf]
    %v1678 = vld [vmem:[#allocation13 + $0xe4] sm:$0xf]
    %v1679 = vld [vmem:[#allocation13 + $0xe8] sm:$0xf]
    %v1680 = vld [vmem:[#allocation13 + $0xec] sm:$0xf]
    %v1681 = vld [vmem:[#allocation13 + $0xf0] sm:$0xf]
    %v1682 = vld [vmem:[#allocation13 + $0xf4] sm:$0xf]
    %v1683 = vld [vmem:[#allocation13 + $0xf8] sm:$0xf]
    %v1684 = vld [vmem:[#allocation13 + $0xfc] sm:$0xf]
    %v1685 = vld [vmem:[%s7] sm:$0x1]
    %v1687 = vlaneseq
    %v1688 = vshrl.u32 %v1687, 7
    %v1689 = vsub.s32 0, %v1688
    %v1690 = vrot.slane %v1685, %v1689
    %v1756 = vunpack.c.l.b16 %v1621
    %v1757 = vunpack.c.l.b16 %v1622
    %v1758 = vunpack.c.l.b16 %v1623
    %v1759 = vunpack.c.l.b16 %v1624
    %v1760 = vunpack.c.l.b16 %v1625
    %v1761 = vunpack.c.l.b16 %v1626
    %v1762 = vunpack.c.l.b16 %v1627
    %v1763 = vunpack.c.l.b16 %v1628
    %v1764 = vunpack.c.l.b16 %v1629
    %v1765 = vunpack.c.l.b16 %v1630
    %v1766 = vunpack.c.l.b16 %v1631
    %v1767 = vunpack.c.l.b16 %v1632
    %v1768 = vunpack.c.l.b16 %v1633
    %v1769 = vunpack.c.l.b16 %v1634
    %v1770 = vunpack.c.l.b16 %v1635
    %v1771 = vunpack.c.l.b16 %v1636
    %v1772 = vunpack.c.l.b16 %v1637
    %v1773 = vunpack.c.l.b16 %v1638
    %v1774 = vunpack.c.l.b16 %v1639
    %v1775 = vunpack.c.l.b16 %v1640
    %v1776 = vunpack.c.l.b16 %v1641
    %v1777 = vunpack.c.l.b16 %v1642
    %v1778 = vunpack.c.l.b16 %v1643
    %v1779 = vunpack.c.l.b16 %v1644
    %v1780 = vunpack.c.l.b16 %v1645
    %v1781 = vunpack.c.l.b16 %v1646
    %v1782 = vunpack.c.l.b16 %v1647
    %v1783 = vunpack.c.l.b16 %v1648
    %v1784 = vunpack.c.l.b16 %v1649
    %v1785 = vunpack.c.l.b16 %v1650
    %v1786 = vunpack.c.l.b16 %v1651
    %v1787 = vunpack.c.l.b16 %v1652
    %v1788 = vunpack.c.l.b16 %v1653
    %v1789 = vunpack.c.l.b16 %v1654
    %v1790 = vunpack.c.l.b16 %v1655
    %v1791 = vunpack.c.l.b16 %v1656
    %v1792 = vunpack.c.l.b16 %v1657
    %v1793 = vunpack.c.l.b16 %v1658
    %v1794 = vunpack.c.l.b16 %v1659
    %v1795 = vunpack.c.l.b16 %v1660
    %v1796 = vunpack.c.l.b16 %v1661
    %v1797 = vunpack.c.l.b16 %v1662
    %v1798 = vunpack.c.l.b16 %v1663
    %v1799 = vunpack.c.l.b16 %v1664
    %v1800 = vunpack.c.l.b16 %v1665
    %v1801 = vunpack.c.l.b16 %v1666
    %v1802 = vunpack.c.l.b16 %v1667
    %v1803 = vunpack.c.l.b16 %v1668
    %v1804 = vunpack.c.l.b16 %v1669
    %v1805 = vunpack.c.l.b16 %v1670
    %v1806 = vunpack.c.l.b16 %v1671
    %v1807 = vunpack.c.l.b16 %v1672
    %v1808 = vunpack.c.l.b16 %v1673
    %v1809 = vunpack.c.l.b16 %v1674
    %v1810 = vunpack.c.l.b16 %v1675
    %v1811 = vunpack.c.l.b16 %v1676
    %v1812 = vunpack.c.l.b16 %v1677
    %v1813 = vunpack.c.l.b16 %v1678
    %v1814 = vunpack.c.l.b16 %v1679
    %v1815 = vunpack.c.l.b16 %v1680
    %v1816 = vunpack.c.l.b16 %v1681
    %v1817 = vunpack.c.l.b16 %v1682
    %v1818 = vunpack.c.l.b16 %v1683
    %v1819 = vunpack.c.l.b16 %v1684
    %v1820 = vpack.c.b16 %v1757, %v1756
    %v1821 = vpack.c.b16 %v1759, %v1758
    %v1822 = vpack.c.b16 %v1761, %v1760
    %v1823 = vpack.c.b16 %v1763, %v1762
    %v1824 = vpack.c.b16 %v1765, %v1764
    %v1825 = vpack.c.b16 %v1767, %v1766
    %v1826 = vpack.c.b16 %v1769, %v1768
    %v1827 = vpack.c.b16 %v1771, %v1770
    %v1828 = vpack.c.b16 %v1773, %v1772
    %v1829 = vpack.c.b16 %v1775, %v1774
    %v1830 = vpack.c.b16 %v1777, %v1776
    %v1831 = vpack.c.b16 %v1779, %v1778
    %v1832 = vpack.c.b16 %v1781, %v1780
    %v1833 = vpack.c.b16 %v1783, %v1782
    %v1834 = vpack.c.b16 %v1785, %v1784
    %v1835 = vpack.c.b16 %v1787, %v1786
    %v1836 = vpack.c.b16 %v1789, %v1788
    %v1837 = vpack.c.b16 %v1791, %v1790
    %v1838 = vpack.c.b16 %v1793, %v1792
    %v1839 = vpack.c.b16 %v1795, %v1794
    %v1840 = vpack.c.b16 %v1797, %v1796
    %v1841 = vpack.c.b16 %v1799, %v1798
    %v1842 = vpack.c.b16 %v1801, %v1800
    %v1843 = vpack.c.b16 %v1803, %v1802
    %v1844 = vpack.c.b16 %v1805, %v1804
    %v1845 = vpack.c.b16 %v1807, %v1806
    %v1846 = vpack.c.b16 %v1809, %v1808
    %v1847 = vpack.c.b16 %v1811, %v1810
    %v1848 = vpack.c.b16 %v1813, %v1812
    %v1849 = vpack.c.b16 %v1815, %v1814
    %v1850 = vpack.c.b16 %v1817, %v1816
    %v1851 = vpack.c.b16 %v1819, %v1818
    %1884 = vmatprep.subr.bf16.mxu0 0
    %1885 = vmatpush1.bf16.msra.mxu0 %v1820
    %1886 = vmatprep.subr.bf16.mxu0 0
    %1887 = vmatpush1.bf16.msra.mxu0 %v1821
    %1888 = vmatprep.subr.bf16.mxu0 0
    %1889 = vmatpush1.bf16.msra.mxu0 %v1822
    %1890 = vmatprep.subr.bf16.mxu0 0
    %1891 = vmatpush1.bf16.msra.mxu0 %v1823
    %1892 = vmatprep.subr.bf16.mxu0 0
    %1893 = vmatpush1.bf16.msra.mxu0 %v1824
    %1894 = vmatprep.subr.bf16.mxu0 0
    %1895 = vmatpush1.bf16.msra.mxu0 %v1825
    %1896 = vmatprep.subr.bf16.mxu0 0
    %1897 = vmatpush1.bf16.msra.mxu0 %v1826
    %1898 = vmatprep.subr.bf16.mxu0 0
    %1899 = vmatpush1.bf16.msra.mxu0 %v1827
    %1900 = vmatprep.subr.bf16.mxu0 0
    %1901 = vmatpush1.bf16.msra.mxu0 %v1828
    %1902 = vmatprep.subr.bf16.mxu0 0
    %1903 = vmatpush1.bf16.msra.mxu0 %v1829
    %1904 = vmatprep.subr.bf16.mxu0 0
    %1905 = vmatpush1.bf16.msra.mxu0 %v1830
    %1906 = vmatprep.subr.bf16.mxu0 0
    %1907 = vmatpush1.bf16.msra.mxu0 %v1831
    %1908 = vmatprep.subr.bf16.mxu0 0
    %1909 = vmatpush1.bf16.msra.mxu0 %v1832
    %1910 = vmatprep.subr.bf16.mxu0 0
    %1911 = vmatpush1.bf16.msra.mxu0 %v1833
    %1912 = vmatprep.subr.bf16.mxu0 0
    %1913 = vmatpush1.bf16.msra.mxu0 %v1834
    %1914 = vmatprep.subr.bf16.mxu0 0
    %1915 = vmatpush1.bf16.msra.mxu0 %v1835
    %1916 = vmatprep.mubr.bf16.mxu0 %v1618
    %1917 = vmatmul.mubr.bf16.gmra.mrb[0].mxu0 %v1617
    %v1918 = vpop.f32.mrb[0].mxu0
    %v1919 = vadd.f32 %v1690, %v1918
    %v1920 = vpop.f32.mrb[0].mxu0
    %v1921 = vpop.f32.mrb[0].mxu0
    %v1922 = vadd.f32 %v1690, %v1921
    %v1923 = vpop.f32.mrb[0].mxu0
    %1924 = vdwg.mxu0
    %1925 = vmatprep.subr.bf16.mxu0 0
    %1926 = vmatpush1.bf16.msra.mxu0 %v1836
    %1927 = vmatprep.subr.bf16.mxu0 0
    %1928 = vmatpush1.bf16.msra.mxu0 %v1837
    %1929 = vmatprep.subr.bf16.mxu0 0
    %1930 = vmatpush1.bf16.msra.mxu0 %v1838
    %1931 = vmatprep.subr.bf16.mxu0 0
    %1932 = vmatpush1.bf16.msra.mxu0 %v1839
    %1933 = vmatprep.subr.bf16.mxu0 0
    %1934 = vmatpush1.bf16.msra.mxu0 %v1840
    %1935 = vmatprep.subr.bf16.mxu0 0
    %1936 = vmatpush1.bf16.msra.mxu0 %v1841
    %1937 = vmatprep.subr.bf16.mxu0 0
    %1938 = vmatpush1.bf16.msra.mxu0 %v1842
    %1939 = vmatprep.subr.bf16.mxu0 0
    %1940 = vmatpush1.bf16.msra.mxu0 %v1843
    %1941 = vmatprep.subr.bf16.mxu0 0
    %1942 = vmatpush1.bf16.msra.mxu0 %v1844
    %1943 = vmatprep.subr.bf16.mxu0 0
    %1944 = vmatpush1.bf16.msra.mxu0 %v1845
    %1945 = vmatprep.subr.bf16.mxu0 0
    %1946 = vmatpush1.bf16.msra.mxu0 %v1846
    %1947 = vmatprep.subr.bf16.mxu0 0
    %1948 = vmatpush1.bf16.msra.mxu0 %v1847
    %1949 = vmatprep.subr.bf16.mxu0 0
    %1950 = vmatpush1.bf16.msra.mxu0 %v1848
    %1951 = vmatprep.subr.bf16.mxu0 0
    %1952 = vmatpush1.bf16.msra.mxu0 %v1849
    %1953 = vmatprep.subr.bf16.mxu0 0
    %1954 = vmatpush1.bf16.msra.mxu0 %v1850
    %1955 = vmatprep.subr.bf16.mxu0 0
    %1956 = vmatpush1.bf16.msra.mxu0 %v1851
    %1957 = vmatprep.mubr.bf16.mxu0 %v1620
    %1958 = vmatmul.mubr.bf16.gmra.mrb[0].mxu0 %v1619
    %v1959 = vpop.f32.mrb[0].mxu0
    %v1960 = vadd.f32 %v1919, %v1959
    %v1961 = vpop.f32.mrb[0].mxu0
    %v1962 = vpop.f32.mrb[0].mxu0
    %v1963 = vadd.f32 %v1922, %v1962
    %v1964 = vpop.f32.mrb[0].mxu0
    %1965 = vdwg.mxu0
    %v1966 = vadd.f32 %v1960, %v229
    %v1967 = vadd.f32 %v1963, %v230
    %v1968 = vld [vmem:[%s8] sm:$0x1]
    %v1969 = vld [vmem:[%s9] sm:$0x1]
    %1970 = vadd.xlane.f32.xlu0 %v1966
    %v1971 = vpop.xlane.xlu0 %1970
    %1972 = vadd.xlane.f32.xlu0 %v1967
    %v1973 = vpop.xlane.xlu0 %1972
    %v1974 = vmul.f32 %v1971, %v192
    %v1975 = vmul.f32 %v1973, %v192
    %v1976 = vsub.f32 %v1966, %v1974
    %v1977 = vsub.f32 %v1967, %v1975
    %v1978 = vsel %vm198, %v1976, 0.0
    %v1979 = vsel %vm198, %v1977, 0.0
    %v1980 = vmul.f32 %v1978, %v1978
    %v1981 = vmul.f32 %v1979, %v1979
    %1982 = vadd.xlane.f32.xlu0 %v1980
    %v1983 = vpop.xlane.xlu0 %1982
    %1984 = vadd.xlane.f32.xlu0 %v1981
    %v1985 = vpop.xlane.xlu0 %1984
    %v1986 = vmul.f32 %v1983, %v192
    %v1987 = vmul.f32 %v1985, %v192
    %v1988 = vadd.f32 %v1986, 1e-12
    %v1989 = vadd.f32 %v1987, 1e-12
    %v1990 = vrsqrt.pop %v1988
    %v1991 = vrsqrt.pop %v1989
    %v1992 = vmul.f32 %v1978, %v1990
    %v1993 = vmul.f32 %v1979, %v1991
    %v1995 = vlaneseq
    %v1996 = vshrl.u32 %v1995, 7
    %v1997 = vsub.s32 0, %v1996
    %v1998 = vrot.slane %v1968, %v1997
    %v2000 = vmul.f32 %v1992, %v1998
    %v2001 = vmul.f32 %v1993, %v1998
    %v2003 = vlaneseq
    %v2004 = vshrl.u32 %v2003, 7
    %v2005 = vsub.s32 0, %v2004
    %v2006 = vrot.slane %v1969, %v2005
    %v2008 = vadd.f32 %v2000, %v2006
    %v2009 = vadd.f32 %v2001, %v2006
    %v2010 = vld [vmem:[#allocation15] sm:$0xf]
    %v2011 = vld [vmem:[#allocation15 + $0x4] sm:$0xf]
    %v2012 = vld [vmem:[#allocation15 + $0x8] sm:$0xf]
    %v2013 = vld [vmem:[#allocation15 + $0xc] sm:$0xf]
    %v2014 = vld [vmem:[#allocation15 + $0x10] sm:$0xf]
    %v2015 = vld [vmem:[#allocation15 + $0x14] sm:$0xf]
    %v2016 = vld [vmem:[#allocation15 + $0x18] sm:$0xf]
    %v2017 = vld [vmem:[#allocation15 + $0x1c] sm:$0xf]
    %v2018 = vld [vmem:[#allocation15 + $0x20] sm:$0xf]
    %v2019 = vld [vmem:[#allocation15 + $0x24] sm:$0xf]
    %v2020 = vld [vmem:[#allocation15 + $0x28] sm:$0xf]
    %v2021 = vld [vmem:[#allocation15 + $0x2c] sm:$0xf]
    %v2022 = vld [vmem:[#allocation15 + $0x30] sm:$0xf]
    %v2023 = vld [vmem:[#allocation15 + $0x34] sm:$0xf]
    %v2024 = vld [vmem:[#allocation15 + $0x38] sm:$0xf]
    %v2025 = vld [vmem:[#allocation15 + $0x3c] sm:$0xf]
    %v2026 = vld [vmem:[%s11] sm:$0x1]
    %v2027 = vpack.c.bf16 %v2009, %v2008
    %v2029 = vlaneseq
    %v2030 = vshrl.u32 %v2029, 7
    %v2031 = vsub.s32 0, %v2030
    %v2032 = vrot.slane %v2026, %v2031
    %v2050 = vunpack.c.l.b16 %v2010
    %v2051 = vunpack.c.l.b16 %v2011
    %v2052 = vunpack.c.l.b16 %v2012
    %v2053 = vunpack.c.l.b16 %v2013
    %v2054 = vunpack.c.l.b16 %v2014
    %v2055 = vunpack.c.l.b16 %v2015
    %v2056 = vunpack.c.l.b16 %v2016
    %v2057 = vunpack.c.l.b16 %v2017
    %v2058 = vunpack.c.l.b16 %v2018
    %v2059 = vunpack.c.l.b16 %v2019
    %v2060 = vunpack.c.l.b16 %v2020
    %v2061 = vunpack.c.l.b16 %v2021
    %v2062 = vunpack.c.l.b16 %v2022
    %v2063 = vunpack.c.l.b16 %v2023
    %v2064 = vunpack.c.l.b16 %v2024
    %v2065 = vunpack.c.l.b16 %v2025
    %v2066 = vpack.c.b16 %v2051, %v2050
    %v2067 = vpack.c.b16 %v2053, %v2052
    %v2068 = vpack.c.b16 %v2055, %v2054
    %v2069 = vpack.c.b16 %v2057, %v2056
    %v2070 = vpack.c.b16 %v2059, %v2058
    %v2071 = vpack.c.b16 %v2061, %v2060
    %v2072 = vpack.c.b16 %v2063, %v2062
    %v2073 = vpack.c.b16 %v2065, %v2064
    %2082 = vmatprep.subr.bf16.mxu0 0
    %2083 = vmatpush1.bf16.msra.mxu0 %v2066
    %2084 = vmatprep.subr.bf16.mxu0 0
    %2085 = vmatpush1.bf16.msra.mxu0 %v2067
    %2086 = vmatprep.subr.bf16.mxu0 0
    %2087 = vmatpush1.bf16.msra.mxu0 %v2068
    %2088 = vmatprep.subr.bf16.mxu0 0
    %2089 = vmatpush1.bf16.msra.mxu0 %v2069
    %2090 = vmatprep.subr.bf16.mxu0 0
    %2091 = vmatpush1.bf16.msra.mxu0 %v2070
    %2092 = vmatprep.subr.bf16.mxu0 0
    %2093 = vmatpush1.bf16.msra.mxu0 %v2071
    %2094 = vmatprep.subr.bf16.mxu0 0
    %2095 = vmatpush1.bf16.msra.mxu0 %v2072
    %2096 = vmatprep.subr.bf16.mxu0 0
    %2097 = vmatpush1.bf16.msra.mxu0 %v2073
    %2098 = vmatprep.subr.bf16.mxu0 0
    %2099 = vmatpush1.bf16.msra.mxu0 0
    %2100 = vmatprep.subr.bf16.mxu0 0
    %2101 = vmatpush1.bf16.msra.mxu0 0
    %2102 = vmatprep.subr.bf16.mxu0 0
    %2103 = vmatpush1.bf16.msra.mxu0 0
    %2104 = vmatprep.subr.bf16.mxu0 0
    %2105 = vmatpush1.bf16.msra.mxu0 0
    %2106 = vmatprep.subr.bf16.mxu0 0
    %2107 = vmatpush1.bf16.msra.mxu0 0
    %2108 = vmatprep.subr.bf16.mxu0 0
    %2109 = vmatpush1.bf16.msra.mxu0 0
    %2110 = vmatprep.subr.bf16.mxu0 0
    %2111 = vmatpush1.bf16.msra.mxu0 0
    %2112 = vmatprep.subr.bf16.mxu0 0
    %2113 = vmatpush1.bf16.msra.mxu0 0
    %2114 = vmatprep.mubr.bf16.mxu0 0
    %2115 = vmatmul.mubr.bf16.gmra.mrb[0].mxu0 %v2027
    %v2116 = vpop.f32.mrb[0].mxu0
    %v2117 = vadd.f32 %v2032, %v2116
    %v2118 = vpop.f32.mrb[0].mxu0
    %v2119 = vpop.f32.mrb[0].mxu0
    %v2120 = vadd.f32 %v2032, %v2119
    %v2121 = vpop.f32.mrb[0].mxu0
    %2122 = vdwg.mxu0
    %v2123 = vmul.f32 %v2117, %v2117
    %v2124 = vmul.f32 %v2120, %v2120
    %v2125 = vmul.f32 %v2117, %v2123
    %v2126 = vmul.f32 %v2120, %v2124
    %v2127 = vmul.f32 %v2125, 0.044715
    %v2128 = vmul.f32 %v2126, 0.044715
    %v2129 = vadd.f32 %v2117, %v2127
    %v2130 = vadd.f32 %v2120, %v2128
    %v2131 = vmul.f32 %v2129, 0.7978846
    %v2132 = vmul.f32 %v2130, 0.7978846
    %v2133 = vtanh.pop %v2131
    %v2134 = vtanh.pop %v2132
    %v2135 = vadd.f32 %v2133, 1.0
    %v2136 = vadd.f32 %v2134, 1.0
    %v2137 = vmul.f32 %v2135, 0.5
    %v2138 = vmul.f32 %v2136, 0.5
    %v2139 = vmul.f32 %v2117, %v2137
    %v2140 = vmul.f32 %v2120, %v2138
    %v2141 = vld [vmem:[#allocation16] sm:$0xf]
    %v2142 = vld [vmem:[#allocation16 + $0x4] sm:$0xf]
    %v2143 = vld [vmem:[#allocation16 + $0x8] sm:$0xf]
    %v2144 = vld [vmem:[#allocation16 + $0xc] sm:$0xf]
    %v2145 = vld [vmem:[#allocation16 + $0x10] sm:$0xf]
    %v2146 = vld [vmem:[#allocation16 + $0x14] sm:$0xf]
    %v2147 = vld [vmem:[#allocation16 + $0x18] sm:$0xf]
    %v2148 = vld [vmem:[#allocation16 + $0x1c] sm:$0xf]
    %v2149 = vld [vmem:[#allocation16 + $0x20] sm:$0xf]
    %v2150 = vld [vmem:[#allocation16 + $0x24] sm:$0xf]
    %v2151 = vld [vmem:[#allocation16 + $0x28] sm:$0xf]
    %v2152 = vld [vmem:[#allocation16 + $0x2c] sm:$0xf]
    %v2153 = vld [vmem:[#allocation16 + $0x30] sm:$0xf]
    %v2154 = vld [vmem:[#allocation16 + $0x34] sm:$0xf]
    %v2155 = vld [vmem:[#allocation16 + $0x38] sm:$0xf]
    %v2156 = vld [vmem:[#allocation16 + $0x3c] sm:$0xf]
    %v2157 = vld [vmem:[%s13] sm:$0x1]
    %v2158 = vpack.c.bf16 %v2140, %v2139
    %v2160 = vlaneseq
    %v2161 = vshrl.u32 %v2160, 7
    %v2162 = vsub.s32 0, %v2161
    %v2163 = vrot.slane %v2157, %v2162
    %v2181 = vunpack.c.l.b16 %v2141
    %v2182 = vunpack.c.l.b16 %v2142
    %v2183 = vunpack.c.l.b16 %v2143
    %v2184 = vunpack.c.l.b16 %v2144
    %v2185 = vunpack.c.l.b16 %v2145
    %v2186 = vunpack.c.l.b16 %v2146
    %v2187 = vunpack.c.l.b16 %v2147
    %v2188 = vunpack.c.l.b16 %v2148
    %v2189 = vunpack.c.l.b16 %v2149
    %v2190 = vunpack.c.l.b16 %v2150
    %v2191 = vunpack.c.l.b16 %v2151
    %v2192 = vunpack.c.l.b16 %v2152
    %v2193 = vunpack.c.l.b16 %v2153
    %v2194 = vunpack.c.l.b16 %v2154
    %v2195 = vunpack.c.l.b16 %v2155
    %v2196 = vunpack.c.l.b16 %v2156
    %v2197 = vpack.c.b16 %v2182, %v2181
    %v2198 = vpack.c.b16 %v2184, %v2183
    %v2199 = vpack.c.b16 %v2186, %v2185
    %v2200 = vpack.c.b16 %v2188, %v2187
    %v2201 = vpack.c.b16 %v2190, %v2189
    %v2202 = vpack.c.b16 %v2192, %v2191
    %v2203 = vpack.c.b16 %v2194, %v2193
    %v2204 = vpack.c.b16 %v2196, %v2195
    %2213 = vmatprep.subr.bf16.mxu0 0
    %2214 = vmatpush1.bf16.msra.mxu0 %v2197
    %2215 = vmatprep.subr.bf16.mxu0 0
    %2216 = vmatpush1.bf16.msra.mxu0 %v2198
    %2217 = vmatprep.subr.bf16.mxu0 0
    %2218 = vmatpush1.bf16.msra.mxu0 %v2199
    %2219 = vmatprep.subr.bf16.mxu0 0
    %2220 = vmatpush1.bf16.msra.mxu0 %v2200
    %2221 = vmatprep.subr.bf16.mxu0 0
    %2222 = vmatpush1.bf16.msra.mxu0 %v2201
    %2223 = vmatprep.subr.bf16.mxu0 0
    %2224 = vmatpush1.bf16.msra.mxu0 %v2202
    %2225 = vmatprep.subr.bf16.mxu0 0
    %2226 = vmatpush1.bf16.msra.mxu0 %v2203
    %2227 = vmatprep.subr.bf16.mxu0 0
    %2228 = vmatpush1.bf16.msra.mxu0 %v2204
    %2229 = vmatprep.subr.bf16.mxu0 0
    %2230 = vmatpush1.bf16.msra.mxu0 0
    %2231 = vmatprep.subr.bf16.mxu0 0
    %2232 = vmatpush1.bf16.msra.mxu0 0
    %2233 = vmatprep.subr.bf16.mxu0 0
    %2234 = vmatpush1.bf16.msra.mxu0 0
    %2235 = vmatprep.subr.bf16.mxu0 0
    %2236 = vmatpush1.bf16.msra.mxu0 0
    %2237 = vmatprep.subr.bf16.mxu0 0
    %2238 = vmatpush1.bf16.msra.mxu0 0
    %2239 = vmatprep.subr.bf16.mxu0 0
    %2240 = vmatpush1.bf16.msra.mxu0 0
    %2241 = vmatprep.subr.bf16.mxu0 0
    %2242 = vmatpush1.bf16.msra.mxu0 0
    %2243 = vmatprep.subr.bf16.mxu0 0
    %2244 = vmatpush1.bf16.msra.mxu0 0
    %2245 = vmatprep.mubr.bf16.mxu0 0
    %2246 = vmatmul.mubr.bf16.gmra.mrb[0].mxu0 %v2158
    %v2247 = vpop.f32.mrb[0].mxu0
    %v2248 = vadd.f32 %v2163, %v2247
    %v2249 = vpop.f32.mrb[0].mxu0
    %v2250 = vpop.f32.mrb[0].mxu0
    %v2251 = vadd.f32 %v2163, %v2250
    %v2252 = vpop.f32.mrb[0].mxu0
    %2253 = vdwg.mxu0
    %v2254 = vadd.f32 %v2248, %v2008
    %v2255 = vadd.f32 %v2251, %v2009
    %v2256 = vld [vmem:[%s14] sm:$0x1]
    %v2257 = vld [vmem:[%s15] sm:$0x1]
    %2258 = vadd.xlane.f32.xlu0 %v2254
    %v2259 = vpop.xlane.xlu0 %2258
    %2260 = vadd.xlane.f32.xlu0 %v2255
    %v2261 = vpop.xlane.xlu0 %2260
    %v2262 = vmul.f32 %v2259, %v192
    %v2263 = vmul.f32 %v2261, %v192
    %v2264 = vsub.f32 %v2254, %v2262
    %v2265 = vsub.f32 %v2255, %v2263
    %v2266 = vsel %vm198, %v2264, 0.0
    %v2267 = vsel %vm198, %v2265, 0.0
    %v2268 = vmul.f32 %v2266, %v2266
    %v2269 = vmul.f32 %v2267, %v2267
    %2270 = vadd.xlane.f32.xlu0 %v2268
    %v2271 = vpop.xlane.xlu0 %2270
    %2272 = vadd.xlane.f32.xlu0 %v2269
    %v2273 = vpop.xlane.xlu0 %2272
    %v2274 = vmul.f32 %v2271, %v192
    %v2275 = vmul.f32 %v2273, %v192
    %v2276 = vadd.f32 %v2274, 1e-12
    %v2277 = vadd.f32 %v2275, 1e-12
    %v2278 = vrsqrt.pop %v2276
    %v2279 = vrsqrt.pop %v2277
    %v2280 = vmul.f32 %v2266, %v2278
    %v2281 = vmul.f32 %v2267, %v2279
    %v2283 = vlaneseq
    %v2284 = vshrl.u32 %v2283, 7
    %v2285 = vsub.s32 0, %v2284
    %v2286 = vrot.slane %v2256, %v2285
    %v2288 = vmul.f32 %v2280, %v2286
    %v2289 = vmul.f32 %v2281, %v2286
    %v2291 = vlaneseq
    %v2292 = vshrl.u32 %v2291, 7
    %v2293 = vsub.s32 0, %v2292
    %v2294 = vrot.slane %v2257, %v2293
    %v2296 = vadd.f32 %v2288, %v2294
    %v2297 = vadd.f32 %v2289, %v2294
    %s2298 = scalar_lea.vmem [#allocation10], 768
    %v2299 = vld [vmem:[%s2298] sm:$0xff]
    %v2300 = vld [vmem:[%s2298 + $0x8] sm:$0xff]
    %v2301 = vld [vmem:[%s2298 + $0x10] sm:$0xff]
    %v2302 = vld [vmem:[%s2298 + $0x18] sm:$0xff]
    %v2303 = vld [vmem:[%s2298 + $0x20] sm:$0xff]
    %v2304 = vld [vmem:[%s2298 + $0x28] sm:$0xff]
    %v2305 = vld [vmem:[%s2298 + $0x30] sm:$0xff]
    %v2306 = vld [vmem:[%s2298 + $0x38] sm:$0xff]
    %v2307 = vld [vmem:[%s2298 + $0x40] sm:$0xff]
    %v2308 = vld [vmem:[%s2298 + $0x48] sm:$0xff]
    %v2309 = vld [vmem:[%s2298 + $0x50] sm:$0xff]
    %v2310 = vld [vmem:[%s2298 + $0x58] sm:$0xff]
    %v2311 = vld [vmem:[%s2298 + $0x60] sm:$0xff]
    %v2312 = vld [vmem:[%s2298 + $0x68] sm:$0xff]
    %v2313 = vld [vmem:[%s2298 + $0x70] sm:$0xff]
    %v2314 = vld [vmem:[%s2298 + $0x78] sm:$0xff]
    %v2315 = vld [vmem:[%s2298 + $0x80] sm:$0xff]
    %v2316 = vld [vmem:[%s2298 + $0x88] sm:$0xff]
    %v2317 = vld [vmem:[%s2298 + $0x90] sm:$0xff]
    %v2318 = vld [vmem:[%s2298 + $0x98] sm:$0xff]
    %v2319 = vld [vmem:[%s2298 + $0xa0] sm:$0xff]
    %v2320 = vld [vmem:[%s2298 + $0xa8] sm:$0xff]
    %v2321 = vld [vmem:[%s2298 + $0xb0] sm:$0xff]
    %v2322 = vld [vmem:[%s2298 + $0xb8] sm:$0xff]
    %v2323 = vld [vmem:[%s2298 + $0xc0] sm:$0xff]
    %v2324 = vld [vmem:[%s2298 + $0xc8] sm:$0xff]
    %v2325 = vld [vmem:[%s2298 + $0xd0] sm:$0xff]
    %v2326 = vld [vmem:[%s2298 + $0xd8] sm:$0xff]
    %v2327 = vld [vmem:[%s2298 + $0xe0] sm:$0xff]
    %v2328 = vld [vmem:[%s2298 + $0xe8] sm:$0xff]
    %v2329 = vld [vmem:[%s2298 + $0xf0] sm:$0xff]
    %v2330 = vld [vmem:[%s2298 + $0xf8] sm:$0xff]
    %v2331 = vld [vmem:[%s2298 + $0x100] sm:$0xff]
    %v2332 = vld [vmem:[%s2298 + $0x108] sm:$0xff]
    %v2333 = vld [vmem:[%s2298 + $0x110] sm:$0xff]
    %v2334 = vld [vmem:[%s2298 + $0x118] sm:$0xff]
    %v2335 = vld [vmem:[%s2298 + $0x120] sm:$0xff]
    %v2336 = vld [vmem:[%s2298 + $0x128] sm:$0xff]
    %v2337 = vld [vmem:[%s2298 + $0x130] sm:$0xff]
    %v2338 = vld [vmem:[%s2298 + $0x138] sm:$0xff]
    %v2339 = vld [vmem:[%s2298 + $0x140] sm:$0xff]
    %v2340 = vld [vmem:[%s2298 + $0x148] sm:$0xff]
    %v2341 = vld [vmem:[%s2298 + $0x150] sm:$0xff]
    %v2342 = vld [vmem:[%s2298 + $0x158] sm:$0xff]
    %v2343 = vld [vmem:[%s2298 + $0x160] sm:$0xff]
    %v2344 = vld [vmem:[%s2298 + $0x168] sm:$0xff]
    %v2345 = vld [vmem:[%s2298 + $0x170] sm:$0xff]
    %v2346 = vld [vmem:[%s2298 + $0x178] sm:$0xff]
    %v2347 = vld [vmem:[%s2298 + $0x180] sm:$0xff]
    %v2348 = vld [vmem:[%s2298 + $0x188] sm:$0xff]
    %v2349 = vld [vmem:[%s2298 + $0x190] sm:$0xff]
    %v2350 = vld [vmem:[%s2298 + $0x198] sm:$0xff]
    %v2351 = vld [vmem:[%s2298 + $0x1a0] sm:$0xff]
    %v2352 = vld [vmem:[%s2298 + $0x1a8] sm:$0xff]
    %v2353 = vld [vmem:[%s2298 + $0x1b0] sm:$0xff]
    %v2354 = vld [vmem:[%s2298 + $0x1b8] sm:$0xff]
    %v2355 = vld [vmem:[%s2298 + $0x1c0] sm:$0xff]
    %v2356 = vld [vmem:[%s2298 + $0x1c8] sm:$0xff]
    %v2357 = vld [vmem:[%s2298 + $0x1d0] sm:$0xff]
    %v2358 = vld [vmem:[%s2298 + $0x1d8] sm:$0xff]
    %v2359 = vld [vmem:[%s2298 + $0x1e0] sm:$0xff]
    %v2360 = vld [vmem:[%s2298 + $0x1e8] sm:$0xff]
    %v2361 = vld [vmem:[%s2298 + $0x1f0] sm:$0xff]
    %v2362 = vld [vmem:[%s2298 + $0x1f8] sm:$0xff]
    %v2363 = vld [vmem:[%s2298 + $0x200] sm:$0xff]
    %v2364 = vld [vmem:[%s2298 + $0x208] sm:$0xff]
    %v2365 = vld [vmem:[%s2298 + $0x210] sm:$0xff]
    %v2366 = vld [vmem:[%s2298 + $0x218] sm:$0xff]
    %v2367 = vld [vmem:[%s2298 + $0x220] sm:$0xff]
    %v2368 = vld [vmem:[%s2298 + $0x228] sm:$0xff]
    %v2369 = vld [vmem:[%s2298 + $0x230] sm:$0xff]
    %v2370 = vld [vmem:[%s2298 + $0x238] sm:$0xff]
    %v2371 = vld [vmem:[%s2298 + $0x240] sm:$0xff]
    %v2372 = vld [vmem:[%s2298 + $0x248] sm:$0xff]
    %v2373 = vld [vmem:[%s2298 + $0x250] sm:$0xff]
    %v2374 = vld [vmem:[%s2298 + $0x258] sm:$0xff]
    %v2375 = vld [vmem:[%s2298 + $0x260] sm:$0xff]
    %v2376 = vld [vmem:[%s2298 + $0x268] sm:$0xff]
    %v2377 = vld [vmem:[%s2298 + $0x270] sm:$0xff]
    %v2378 = vld [vmem:[%s2298 + $0x278] sm:$0xff]
    %v2379 = vld [vmem:[%s2298 + $0x280] sm:$0xff]
    %v2380 = vld [vmem:[%s2298 + $0x288] sm:$0xff]
    %v2381 = vld [vmem:[%s2298 + $0x290] sm:$0xff]
    %v2382 = vld [vmem:[%s2298 + $0x298] sm:$0xff]
    %v2383 = vld [vmem:[%s2298 + $0x2a0] sm:$0xff]
    %v2384 = vld [vmem:[%s2298 + $0x2a8] sm:$0xff]
    %v2385 = vld [vmem:[%s2298 + $0x2b0] sm:$0xff]
    %v2386 = vld [vmem:[%s2298 + $0x2b8] sm:$0xff]
    %v2387 = vld [vmem:[%s2298 + $0x2c0] sm:$0xff]
    %v2388 = vld [vmem:[%s2298 + $0x2c8] sm:$0xff]
    %v2389 = vld [vmem:[%s2298 + $0x2d0] sm:$0xff]
    %v2390 = vld [vmem:[%s2298 + $0x2d8] sm:$0xff]
    %v2391 = vld [vmem:[%s2298 + $0x2e0] sm:$0xff]
    %v2392 = vld [vmem:[%s2298 + $0x2e8] sm:$0xff]
    %v2393 = vld [vmem:[%s2298 + $0x2f0] sm:$0xff]
    %v2394 = vld [vmem:[%s2298 + $0x2f8] sm:$0xff]
    %s2395 = scalar_lea.vmem [#allocation12], 12
    %v2396 = vld [vmem:[%s2395] sm:$0xff]
    %v2397 = vld [vmem:[%s2395 + $0x8] sm:$0xf]
    %v2398 = vpack.c.bf16 %v2297, %v2296
    %v2401 = vlaneseq
    %v2402 = vshrl.u32 %v2401, 7
    %v2403 = vsub.s32 0, %v2402
    %v2404 = vrot.slane %v2396, %v2403
    %v2405 = vlaneseq
    %v2406 = vshrl.u32 %v2405, 7
    %v2407 = vsub.s32 1, %v2406
    %v2408 = vrot.slane %v2396, %v2407
    %v2409 = vlaneseq
    %v2410 = vshrl.u32 %v2409, 7
    %v2411 = vsub.s32 2, %v2410
    %v2412 = vrot.slane %v2396, %v2411
    %v2413 = vlaneseq
    %v2414 = vshrl.u32 %v2413, 7
    %v2415 = vsub.s32 3, %v2414
    %v2416 = vrot.slane %v2396, %v2415
    %v2417 = vlaneseq
    %v2418 = vshrl.u32 %v2417, 7
    %v2419 = vsub.s32 4, %v2418
    %v2420 = vrot.slane %v2396, %v2419
    %v2421 = vlaneseq
    %v2422 = vshrl.u32 %v2421, 7
    %v2423 = vsub.s32 5, %v2422
    %v2424 = vrot.slane %v2396, %v2423
    %v2425 = vlaneseq
    %v2426 = vshrl.u32 %v2425, 7
    %v2427 = vsub.s32 6, %v2426
    %v2428 = vrot.slane %v2396, %v2427
    %v2429 = vlaneseq
    %v2430 = vshrl.u32 %v2429, 7
    %v2431 = vsub.s32 7, %v2430
    %v2432 = vrot.slane %v2396, %v2431
    %v2433 = vlaneseq
    %v2434 = vshrl.u32 %v2433, 7
    %v2435 = vsub.s32 0, %v2434
    %v2436 = vrot.slane %v2397, %v2435
    %v2437 = vlaneseq
    %v2438 = vshrl.u32 %v2437, 7
    %v2439 = vsub.s32 1, %v2438
    %v2440 = vrot.slane %v2397, %v2439
    %v2441 = vlaneseq
    %v2442 = vshrl.u32 %v2441, 7
    %v2443 = vsub.s32 2, %v2442
    %v2444 = vrot.slane %v2397, %v2443
    %v2445 = vlaneseq
    %v2446 = vshrl.u32 %v2445, 7
    %v2447 = vsub.s32 3, %v2446
    %v2448 = vrot.slane %v2397, %v2447
    %v2557 = vunpack.c.l.b16 %v2299
    %v2558 = vunpack.c.h.b16 %v2299
    %v2559 = vunpack.c.l.b16 %v2300
    %v2560 = vunpack.c.h.b16 %v2300
    %v2561 = vunpack.c.l.b16 %v2301
    %v2562 = vunpack.c.h.b16 %v2301
    %v2563 = vunpack.c.l.b16 %v2302
    %v2564 = vunpack.c.h.b16 %v2302
    %v2565 = vunpack.c.l.b16 %v2303
    %v2566 = vunpack.c.h.b16 %v2303
    %v2567 = vunpack.c.l.b16 %v2304
    %v2568 = vunpack.c.h.b16 %v2304
    %v2569 = vunpack.c.l.b16 %v2305
    %v2570 = vunpack.c.h.b16 %v2305
    %v2571 = vunpack.c.l.b16 %v2306
    %v2572 = vunpack.c.h.b16 %v2306
    %v2573 = vunpack.c.l.b16 %v2307
    %v2574 = vunpack.c.h.b16 %v2307
    %v2575 = vunpack.c.l.b16 %v2308
    %v2576 = vunpack.c.h.b16 %v2308
    %v2577 = vunpack.c.l.b16 %v2309
    %v2578 = vunpack.c.h.b16 %v2309
    %v2579 = vunpack.c.l.b16 %v2310
    %v2580 = vunpack.c.h.b16 %v2310
    %v2581 = vunpack.c.l.b16 %v2311
    %v2582 = vunpack.c.h.b16 %v2311
    %v2583 = vunpack.c.l.b16 %v2312
    %v2584 = vunpack.c.h.b16 %v2312
    %v2585 = vunpack.c.l.b16 %v2313
    %v2586 = vunpack.c.h.b16 %v2313
    %v2587 = vunpack.c.l.b16 %v2314
    %v2588 = vunpack.c.h.b16 %v2314
    %v2589 = vunpack.c.l.b16 %v2315
    %v2590 = vunpack.c.h.b16 %v2315
    %v2591 = vunpack.c.l.b16 %v2316
    %v2592 = vunpack.c.h.b16 %v2316
    %v2593 = vunpack.c.l.b16 %v2317
    %v2594 = vunpack.c.h.b16 %v2317
    %v2595 = vunpack.c.l.b16 %v2318
    %v2596 = vunpack.c.h.b16 %v2318
    %v2597 = vunpack.c.l.b16 %v2319
    %v2598 = vunpack.c.h.b16 %v2319
    %v2599 = vunpack.c.l.b16 %v2320
    %v2600 = vunpack.c.h.b16 %v2320
    %v2601 = vunpack.c.l.b16 %v2321
    %v2602 = vunpack.c.h.b16 %v2321
    %v2603 = vunpack.c.l.b16 %v2322
    %v2604 = vunpack.c.h.b16 %v2322
    %v2605 = vunpack.c.l.b16 %v2323
    %v2606 = vunpack.c.h.b16 %v2323
    %v2607 = vunpack.c.l.b16 %v2324
    %v2608 = vunpack.c.h.b16 %v2324
    %v2609 = vunpack.c.l.b16 %v2325
    %v2610 = vunpack.c.h.b16 %v2325
    %v2611 = vunpack.c.l.b16 %v2326
    %v2612 = vunpack.c.h.b16 %v2326
    %v2613 = vunpack.c.l.b16 %v2327
    %v2614 = vunpack.c.h.b16 %v2327
    %v2615 = vunpack.c.l.b16 %v2328
    %v2616 = vunpack.c.h.b16 %v2328
    %v2617 = vunpack.c.l.b16 %v2329
    %v2618 = vunpack.c.h.b16 %v2329
    %v2619 = vunpack.c.l.b16 %v2330
    %v2620 = vunpack.c.h.b16 %v2330
    %v2621 = vunpack.c.l.b16 %v2331
    %v2622 = vunpack.c.h.b16 %v2331
    %v2623 = vunpack.c.l.b16 %v2332
    %v2624 = vunpack.c.h.b16 %v2332
    %v2625 = vunpack.c.l.b16 %v2333
    %v2626 = vunpack.c.h.b16 %v2333
    %v2627 = vunpack.c.l.b16 %v2334
    %v2628 = vunpack.c.h.b16 %v2334
    %v2629 = vunpack.c.l.b16 %v2335
    %v2630 = vunpack.c.h.b16 %v2335
    %v2631 = vunpack.c.l.b16 %v2336
    %v2632 = vunpack.c.h.b16 %v2336
    %v2633 = vunpack.c.l.b16 %v2337
    %v2634 = vunpack.c.h.b16 %v2337
    %v2635 = vunpack.c.l.b16 %v2338
    %v2636 = vunpack.c.h.b16 %v2338
    %v2637 = vunpack.c.l.b16 %v2339
    %v2638 = vunpack.c.h.b16 %v2339
    %v2639 = vunpack.c.l.b16 %v2340
    %v2640 = vunpack.c.h.b16 %v2340
    %v2641 = vunpack.c.l.b16 %v2341
    %v2642 = vunpack.c.h.b16 %v2341
    %v2643 = vunpack.c.l.b16 %v2342
    %v2644 = vunpack.c.h.b16 %v2342
    %v2645 = vunpack.c.l.b16 %v2343
    %v2646 = vunpack.c.h.b16 %v2343
    %v2647 = vunpack.c.l.b16 %v2344
    %v2648 = vunpack.c.h.b16 %v2344
    %v2649 = vunpack.c.l.b16 %v2345
    %v2650 = vunpack.c.h.b16 %v2345
    %v2651 = vunpack.c.l.b16 %v2346
    %v2652 = vunpack.c.h.b16 %v2346
    %v2653 = vunpack.c.l.b16 %v2347
    %v2654 = vunpack.c.h.b16 %v2347
    %v2655 = vunpack.c.l.b16 %v2348
    %v2656 = vunpack.c.h.b16 %v2348
    %v2657 = vunpack.c.l.b16 %v2349
    %v2658 = vunpack.c.h.b16 %v2349
    %v2659 = vunpack.c.l.b16 %v2350
    %v2660 = vunpack.c.h.b16 %v2350
    %v2661 = vunpack.c.l.b16 %v2351
    %v2662 = vunpack.c.h.b16 %v2351
    %v2663 = vunpack.c.l.b16 %v2352
    %v2664 = vunpack.c.h.b16 %v2352
    %v2665 = vunpack.c.l.b16 %v2353
    %v2666 = vunpack.c.h.b16 %v2353
    %v2667 = vunpack.c.l.b16 %v2354
    %v2668 = vunpack.c.h.b16 %v2354
    %v2669 = vunpack.c.l.b16 %v2355
    %v2670 = vunpack.c.h.b16 %v2355
    %v2671 = vunpack.c.l.b16 %v2356
    %v2672 = vunpack.c.h.b16 %v2356
    %v2673 = vunpack.c.l.b16 %v2357
    %v2674 = vunpack.c.h.b16 %v2357
    %v2675 = vunpack.c.l.b16 %v2358
    %v2676 = vunpack.c.h.b16 %v2358
    %v2677 = vunpack.c.l.b16 %v2359
    %v2678 = vunpack.c.h.b16 %v2359
    %v2679 = vunpack.c.l.b16 %v2360
    %v2680 = vunpack.c.h.b16 %v2360
    %v2681 = vunpack.c.l.b16 %v2361
    %v2682 = vunpack.c.h.b16 %v2361
    %v2683 = vunpack.c.l.b16 %v2362
    %v2684 = vunpack.c.h.b16 %v2362
    %v2685 = vunpack.c.l.b16 %v2363
    %v2686 = vunpack.c.h.b16 %v2363
    %v2687 = vunpack.c.l.b16 %v2364
    %v2688 = vunpack.c.h.b16 %v2364
    %v2689 = vunpack.c.l.b16 %v2365
    %v2690 = vunpack.c.h.b16 %v2365
    %v2691 = vunpack.c.l.b16 %v2366
    %v2692 = vunpack.c.h.b16 %v2366
    %v2693 = vunpack.c.l.b16 %v2367
    %v2694 = vunpack.c.h.b16 %v2367
    %v2695 = vunpack.c.l.b16 %v2368
    %v2696 = vunpack.c.h.b16 %v2368
    %v2697 = vunpack.c.l.b16 %v2369
    %v2698 = vunpack.c.h.b16 %v2369
    %v2699 = vunpack.c.l.b16 %v2370
    %v2700 = vunpack.c.h.b16 %v2370
    %v2701 = vunpack.c.l.b16 %v2371
    %v2702 = vunpack.c.h.b16 %v2371
    %v2703 = vunpack.c.l.b16 %v2372
    %v2704 = vunpack.c.h.b16 %v2372
    %v2705 = vunpack.c.l.b16 %v2373
    %v2706 = vunpack.c.h.b16 %v2373
    %v2707 = vunpack.c.l.b16 %v2374
    %v2708 = vunpack.c.h.b16 %v2374
    %v2709 = vunpack.c.l.b16 %v2375
    %v2710 = vunpack.c.h.b16 %v2375
    %v2711 = vunpack.c.l.b16 %v2376
    %v2712 = vunpack.c.h.b16 %v2376
    %v2713 = vunpack.c.l.b16 %v2377
    %v2714 = vunpack.c.h.b16 %v2377
    %v2715 = vunpack.c.l.b16 %v2378
    %v2716 = vunpack.c.h.b16 %v2378
    %v2717 = vunpack.c.l.b16 %v2379
    %v2718 = vunpack.c.h.b16 %v2379
    %v2719 = vunpack.c.l.b16 %v2380
    %v2720 = vunpack.c.h.b16 %v2380
    %v2721 = vunpack.c.l.b16 %v2381
    %v2722 = vunpack.c.h.b16 %v2381
    %v2723 = vunpack.c.l.b16 %v2382
    %v2724 = vunpack.c.h.b16 %v2382
    %v2725 = vunpack.c.l.b16 %v2383
    %v2726 = vunpack.c.h.b16 %v2383
    %v2727 = vunpack.c.l.b16 %v2384
    %v2728 = vunpack.c.h.b16 %v2384
    %v2729 = vunpack.c.l.b16 %v2385
    %v2730 = vunpack.c.h.b16 %v2385
    %v2731 = vunpack.c.l.b16 %v2386
    %v2732 = vunpack.c.h.b16 %v2386
    %v2733 = vunpack.c.l.b16 %v2387
    %v2734 = vunpack.c.h.b16 %v2387
    %v2735 = vunpack.c.l.b16 %v2388
    %v2736 = vunpack.c.h.b16 %v2388
    %v2737 = vunpack.c.l.b16 %v2389
    %v2738 = vunpack.c.h.b16 %v2389
    %v2739 = vunpack.c.l.b16 %v2390
    %v2740 = vunpack.c.h.b16 %v2390
    %v2741 = vunpack.c.l.b16 %v2391
    %v2742 = vunpack.c.h.b16 %v2391
    %v2743 = vunpack.c.l.b16 %v2392
    %v2744 = vunpack.c.h.b16 %v2392
    %v2745 = vunpack.c.l.b16 %v2393
    %v2746 = vunpack.c.h.b16 %v2393
    %v2747 = vunpack.c.l.b16 %v2394
    %v2748 = vunpack.c.h.b16 %v2394
    %v2749 = vpack.c.b16 %v2569, %v2557
    %v2750 = vpack.c.b16 %v2570, %v2558
    %v2751 = vpack.c.b16 %v2571, %v2559
    %v2752 = vpack.c.b16 %v2572, %v2560
    %v2753 = vpack.c.b16 %v2573, %v2561
    %v2754 = vpack.c.b16 %v2574, %v2562
    %v2755 = vpack.c.b16 %v2575, %v2563
    %v2756 = vpack.c.b16 %v2576, %v2564
    %v2757 = vpack.c.b16 %v2577, %v2565
    %v2758 = vpack.c.b16 %v2578, %v2566
    %v2759 = vpack.c.b16 %v2579, %v2567
    %v2760 = vpack.c.b16 %v2580, %v2568
    %v2761 = vpack.c.b16 %v2593, %v2581
    %v2762 = vpack.c.b16 %v2594, %v2582
    %v2763 = vpack.c.b16 %v2595, %v2583
    %v2764 = vpack.c.b16 %v2596, %v2584
    %v2765 = vpack.c.b16 %v2597, %v2585
    %v2766 = vpack.c.b16 %v2598, %v2586
    %v2767 = vpack.c.b16 %v2599, %v2587
    %v2768 = vpack.c.b16 %v2600, %v2588
    %v2769 = vpack.c.b16 %v2601, %v2589
    %v2770 = vpack.c.b16 %v2602, %v2590
    %v2771 = vpack.c.b16 %v2603, %v2591
    %v2772 = vpack.c.b16 %v2604, %v2592
    %v2773 = vpack.c.b16 %v2617, %v2605
    %v2774 = vpack.c.b16 %v2618, %v2606
    %v2775 = vpack.c.b16 %v2619, %v2607
    %v2776 = vpack.c.b16 %v2620, %v2608
    %v2777 = vpack.c.b16 %v2621, %v2609
    %v2778 = vpack.c.b16 %v2622, %v2610
    %v2779 = vpack.c.b16 %v2623, %v2611
    %v2780 = vpack.c.b16 %v2624, %v2612
    %v2781 = vpack.c.b16 %v2625, %v2613
    %v2782 = vpack.c.b16 %v2626, %v2614
    %v2783 = vpack.c.b16 %v2627, %v2615
    %v2784 = vpack.c.b16 %v2628, %v2616
    %v2785 = vpack.c.b16 %v2641, %v2629
    %v2786 = vpack.c.b16 %v2642, %v2630
    %v2787 = vpack.c.b16 %v2643, %v2631
    %v2788 = vpack.c.b16 %v2644, %v2632
    %v2789 = vpack.c.b16 %v2645, %v2633
    %v2790 = vpack.c.b16 %v2646, %v2634
    %v2791 = vpack.c.b16 %v2647, %v2635
    %v2792 = vpack.c.b16 %v2648, %v2636
    %v2793 = vpack.c.b16 %v2649, %v2637
    %v2794 = vpack.c.b16 %v2650, %v2638
    %v2795 = vpack.c.b16 %v2651, %v2639
    %v2796 = vpack.c.b16 %v2652, %v2640
    %v2797 = vpack.c.b16 %v2665, %v2653
    %v2798 = vpack.c.b16 %v2666, %v2654
    %v2799 = vpack.c.b16 %v2667, %v2655
    %v2800 = vpack.c.b16 %v2668, %v2656
    %v2801 = vpack.c.b16 %v2669, %v2657
    %v2802 = vpack.c.b16 %v2670, %v2658
    %v2803 = vpack.c.b16 %v2671, %v2659
    %v2804 = vpack.c.b16 %v2672, %v2660
    %v2805 = vpack.c.b16 %v2673, %v2661
    %v2806 = vpack.c.b16 %v2674, %v2662
    %v2807 = vpack.c.b16 %v2675, %v2663
    %v2808 = vpack.c.b16 %v2676, %v2664
    %v2809 = vpack.c.b16 %v2689, %v2677
    %v2810 = vpack.c.b16 %v2690, %v2678
    %v2811 = vpack.c.b16 %v2691, %v2679
    %v2812 = vpack.c.b16 %v2692, %v2680
    %v2813 = vpack.c.b16 %v2693, %v2681
    %v2814 = vpack.c.b16 %v2694, %v2682
    %v2815 = vpack.c.b16 %v2695, %v2683
    %v2816 = vpack.c.b16 %v2696, %v2684
    %v2817 = vpack.c.b16 %v2697, %v2685
    %v2818 = vpack.c.b16 %v2698, %v2686
    %v2819 = vpack.c.b16 %v2699, %v2687
    %v2820 = vpack.c.b16 %v2700, %v2688
    %v2821 = vpack.c.b16 %v2713, %v2701
    %v2822 = vpack.c.b16 %v2714, %v2702
    %v2823 = vpack.c.b16 %v2715, %v2703
    %v2824 = vpack.c.b16 %v2716, %v2704
    %v2825 = vpack.c.b16 %v2717, %v2705
    %v2826 = vpack.c.b16 %v2718, %v2706
    %v2827 = vpack.c.b16 %v2719, %v2707
    %v2828 = vpack.c.b16 %v2720, %v2708
    %v2829 = vpack.c.b16 %v2721, %v2709
    %v2830 = vpack.c.b16 %v2722, %v2710
    %v2831 = vpack.c.b16 %v2723, %v2711
    %v2832 = vpack.c.b16 %v2724, %v2712
    %v2833 = vpack.c.b16 %v2737, %v2725
    %v2834 = vpack.c.b16 %v2738, %v2726
    %v2835 = vpack.c.b16 %v2739, %v2727
    %v2836 = vpack.c.b16 %v2740, %v2728
    %v2837 = vpack.c.b16 %v2741, %v2729
    %v2838 = vpack.c.b16 %v2742, %v2730
    %v2839 = vpack.c.b16 %v2743, %v2731
    %v2840 = vpack.c.b16 %v2744, %v2732
    %v2841 = vpack.c.b16 %v2745, %v2733
    %v2842 = vpack.c.b16 %v2746, %v2734
    %v2843 = vpack.c.b16 %v2747, %v2735
    %v2844 = vpack.c.b16 %v2748, %v2736
    %2941 = vmatprep.subr.bf16.mxu0 %v2750
    %2942 = vmatpush1.bf16.msra.mxu0 %v2749
    %2943 = vmatprep.subr.bf16.mxu0 %v2762
    %2944 = vmatpush1.bf16.msra.mxu0 %v2761
    %2945 = vmatprep.subr.bf16.mxu0 %v2774
    %2946 = vmatpush1.bf16.msra.mxu0 %v2773
    %2947 = vmatprep.subr.bf16.mxu0 %v2786
    %2948 = vmatpush1.bf16.msra.mxu0 %v2785
    %2949 = vmatprep.subr.bf16.mxu0 %v2798
    %2950 = vmatpush1.bf16.msra.mxu0 %v2797
    %2951 = vmatprep.subr.bf16.mxu0 %v2810
    %2952 = vmatpush1.bf16.msra.mxu0 %v2809
    %2953 = vmatprep.subr.bf16.mxu0 %v2822
    %2954 = vmatpush1.bf16.msra.mxu0 %v2821
    %2955 = vmatprep.subr.bf16.mxu0 %v2834
    %2956 = vmatpush1.bf16.msra.mxu0 %v2833
    %2957 = vmatprep.subr.bf16.mxu0 0
    %2958 = vmatpush1.bf16.msra.mxu0 0
    %2959 = vmatprep.subr.bf16.mxu0 0
    %2960 = vmatpush1.bf16.msra.mxu0 0
    %2961 = vmatprep.subr.bf16.mxu0 0
    %2962 = vmatpush1.bf16.msra.mxu0 0
    %2963 = vmatprep.subr.bf16.mxu0 0
    %2964 = vmatpush1.bf16.msra.mxu0 0
    %2965 = vmatprep.subr.bf16.mxu0 0
    %2966 = vmatpush1.bf16.msra.mxu0 0
    %2967 = vmatprep.subr.bf16.mxu0 0
    %2968 = vmatpush1.bf16.msra.mxu0 0
    %2969 = vmatprep.subr.bf16.mxu0 0
    %2970 = vmatpush1.bf16.msra.mxu0 0
    %2971 = vmatprep.subr.bf16.mxu0 0
    %2972 = vmatpush1.bf16.msra.mxu0 0
    %2973 = vmatprep.mubr.bf16.mxu0 0
    %2974 = vmatmul.mubr.bf16.gmra.mrb[0].mxu0 %v2398
    %v2975 = vpop.f32.mrb[0].mxu0
    %v2976 = vadd.f32 %v2404, %v2975
    %v2977 = vpop.f32.mrb[0].mxu0
    %v2978 = vadd.f32 %v2408, %v2977
    %v2979 = vpop.f32.mrb[0].mxu0
    %v2980 = vadd.f32 %v2404, %v2979
    %v2981 = vpop.f32.mrb[0].mxu0
    %v2982 = vadd.f32 %v2408, %v2981
    %2983 = vdwg.mxu0
    %2984 = vmatprep.subr.bf16.mxu0 %v2752
    %2985 = vmatpush1.bf16.msra.mxu0 %v2751
    %2986 = vmatprep.subr.bf16.mxu0 %v2764
    %2987 = vmatpush1.bf16.msra.mxu0 %v2763
    %2988 = vmatprep.subr.bf16.mxu0 %v2776
    %2989 = vmatpush1.bf16.msra.mxu0 %v2775
    %2990 = vmatprep.subr.bf16.mxu0 %v2788
    %2991 = vmatpush1.bf16.msra.mxu0 %v2787
    %2992 = vmatprep.subr.bf16.mxu0 %v2800
    %2993 = vmatpush1.bf16.msra.mxu0 %v2799
    %2994 = vmatprep.subr.bf16.mxu0 %v2812
    %2995 = vmatpush1.bf16.msra.mxu0 %v2811
    %2996 = vmatprep.subr.bf16.mxu0 %v2824
    %2997 = vmatpush1.bf16.msra.mxu0 %v2823
    %2998 = vmatprep.subr.bf16.mxu0 %v2836
    %2999 = vmatpush1.bf16.msra.mxu0 %v2835
    %3000 = vmatprep.subr.bf16.mxu0 0
    %3001 = vmatpush1.bf16.msra.mxu0 0
    %3002 = vmatprep.subr.bf16.mxu0 0
    %3003 = vmatpush1.bf16.msra.mxu0 0
    %3004 = vmatprep.subr.bf16.mxu0 0
    %3005 = vmatpush1.bf16.msra.mxu0 0
    %3006 = vmatprep.subr.bf16.mxu0 0
    %3007 = vmatpush1.bf16.msra.mxu0 0
    %3008 = vmatprep.subr.bf16.mxu0 0
    %3009 = vmatpush1.bf16.msra.mxu0 0
    %3010 = vmatprep.subr.bf16.mxu0 0
    %3011 = vmatpush1.bf16.msra.mxu0 0
    %3012 = vmatprep.subr.bf16.mxu0 0
    %3013 = vmatpush1.bf16.msra.mxu0 0
    %3014 = vmatprep.subr.bf16.mxu0 0
    %3015 = vmatpush1.bf16.msra.mxu0 0
    %3016 = vmatprep.mubr.bf16.mxu0 0
    %3017 = vmatmul.mubr.bf16.gmra.mrb[0].mxu0 %v2398
    %v3018 = vpop.f32.mrb[0].mxu0
    %v3019 = vadd.f32 %v2412, %v3018
    %v3020 = vpop.f32.mrb[0].mxu0
    %v3021 = vadd.f32 %v2416, %v3020
    %v3022 = vpop.f32.mrb[0].mxu0
    %v3023 = vadd.f32 %v2412, %v3022
    %v3024 = vpop.f32.mrb[0].mxu0
    %v3025 = vadd.f32 %v2416, %v3024
    %3026 = vdwg.mxu0
    %3027 = vmatprep.subr.bf16.mxu0 %v2754
    %3028 = vmatpush1.bf16.msra.mxu0 %v2753
    %3029 = vmatprep.subr.bf16.mxu0 %v2766
    %3030 = vmatpush1.bf16.msra.mxu0 %v2765
    %3031 = vmatprep.subr.bf16.mxu0 %v2778
    %3032 = vmatpush1.bf16.msra.mxu0 %v2777
    %3033 = vmatprep.subr.bf16.mxu0 %v2790
    %3034 = vmatpush1.bf16.msra.mxu0 %v2789
    %3035 = vmatprep.subr.bf16.mxu0 %v2802
    %3036 = vmatpush1.bf16.msra.mxu0 %v2801
    %3037 = vmatprep.subr.bf16.mxu0 %v2814
    %3038 = vmatpush1.bf16.msra.mxu0 %v2813
    %3039 = vmatprep.subr.bf16.mxu0 %v2826
    %3040 = vmatpush1.bf16.msra.mxu0 %v2825
    %3041 = vmatprep.subr.bf16.mxu0 %v2838
    %3042 = vmatpush1.bf16.msra.mxu0 %v2837
    %3043 = vmatprep.subr.bf16.mxu0 0
    %3044 = vmatpush1.bf16.msra.mxu0 0
    %3045 = vmatprep.subr.bf16.mxu0 0
    %3046 = vmatpush1.bf16.msra.mxu0 0
    %3047 = vmatprep.subr.bf16.mxu0 0
    %3048 = vmatpush1.bf16.msra.mxu0 0
    %3049 = vmatprep.subr.bf16.mxu0 0
    %3050 = vmatpush1.bf16.msra.mxu0 0
    %3051 = vmatprep.subr.bf16.mxu0 0
    %3052 = vmatpush1.bf16.msra.mxu0 0
    %3053 = vmatprep.subr.bf16.mxu0 0
    %3054 = vmatpush1.bf16.msra.mxu0 0
    %3055 = vmatprep.subr.bf16.mxu0 0
    %3056 = vmatpush1.bf16.msra.mxu0 0
    %3057 = vmatprep.subr.bf16.mxu0 0
    %3058 = vmatpush1.bf16.msra.mxu0 0
    %3059 = vmatprep.mubr.bf16.mxu0 0
    %3060 = vmatmul.mubr.bf16.gmra.mrb[0].mxu0 %v2398
    %v3061 = vpop.f32.mrb[0].mxu0
    %v3062 = vadd.f32 %v2420, %v3061
    %v3063 = vpop.f32.mrb[0].mxu0
    %v3064 = vadd.f32 %v2424, %v3063
    %v3065 = vpop.f32.mrb[0].mxu0
    %v3066 = vadd.f32 %v2420, %v3065
    %v3067 = vpop.f32.mrb[0].mxu0
    %v3068 = vadd.f32 %v2424, %v3067
    %3069 = vdwg.mxu0
    %3070 = vmatprep.subr.bf16.mxu0 %v2756
    %3071 = vmatpush1.bf16.msra.mxu0 %v2755
    %3072 = vmatprep.subr.bf16.mxu0 %v2768
    %3073 = vmatpush1.bf16.msra.mxu0 %v2767
    %3074 = vmatprep.subr.bf16.mxu0 %v2780
    %3075 = vmatpush1.bf16.msra.mxu0 %v2779
    %3076 = vmatprep.subr.bf16.mxu0 %v2792
    %3077 = vmatpush1.bf16.msra.mxu0 %v2791
    %3078 = vmatprep.subr.bf16.mxu0 %v2804
    %3079 = vmatpush1.bf16.msra.mxu0 %v2803
    %3080 = vmatprep.subr.bf16.mxu0 %v2816
    %3081 = vmatpush1.bf16.msra.mxu0 %v2815
    %3082 = vmatprep.subr.bf16.mxu0 %v2828
    %3083 = vmatpush1.bf16.msra.mxu0 %v2827
    %3084 = vmatprep.subr.bf16.mxu0 %v2840
    %3085 = vmatpush1.bf16.msra.mxu0 %v2839
    %3086 = vmatprep.subr.bf16.mxu0 0
    %3087 = vmatpush1.bf16.msra.mxu0 0
    %3088 = vmatprep.subr.bf16.mxu0 0
    %3089 = vmatpush1.bf16.msra.mxu0 0
    %3090 = vmatprep.subr.bf16.mxu0 0
    %3091 = vmatpush1.bf16.msra.mxu0 0
    %3092 = vmatprep.subr.bf16.mxu0 0
    %3093 = vmatpush1.bf16.msra.mxu0 0
    %3094 = vmatprep.subr.bf16.mxu0 0
    %3095 = vmatpush1.bf16.msra.mxu0 0
    %3096 = vmatprep.subr.bf16.mxu0 0
    %3097 = vmatpush1.bf16.msra.mxu0 0
    %3098 = vmatprep.subr.bf16.mxu0 0
    %3099 = vmatpush1.bf16.msra.mxu0 0
    %3100 = vmatprep.subr.bf16.mxu0 0
    %3101 = vmatpush1.bf16.msra.mxu0 0
    %3102 = vmatprep.mubr.bf16.mxu0 0
    %3103 = vmatmul.mubr.bf16.gmra.mrb[0].mxu0 %v2398
    %v3104 = vpop.f32.mrb[0].mxu0
    %v3105 = vadd.f32 %v2428, %v3104
    %v3106 = vpop.f32.mrb[0].mxu0
    %v3107 = vadd.f32 %v2432, %v3106
    %v3108 = vpop.f32.mrb[0].mxu0
    %v3109 = vadd.f32 %v2428, %v3108
    %v3110 = vpop.f32.mrb[0].mxu0
    %v3111 = vadd.f32 %v2432, %v3110
    %3112 = vdwg.mxu0
    %3113 = vmatprep.subr.bf16.mxu0 %v2758
    %3114 = vmatpush1.bf16.msra.mxu0 %v2757
    %3115 = vmatprep.subr.bf16.mxu0 %v2770
    %3116 = vmatpush1.bf16.msra.mxu0 %v2769
    %3117 = vmatprep.subr.bf16.mxu0 %v2782
    %3118 = vmatpush1.bf16.msra.mxu0 %v2781
    %3119 = vmatprep.subr.bf16.mxu0 %v2794
    %3120 = vmatpush1.bf16.msra.mxu0 %v2793
    %3121 = vmatprep.subr.bf16.mxu0 %v2806
    %3122 = vmatpush1.bf16.msra.mxu0 %v2805
    %3123 = vmatprep.subr.bf16.mxu0 %v2818
    %3124 = vmatpush1.bf16.msra.mxu0 %v2817
    %3125 = vmatprep.subr.bf16.mxu0 %v2830
    %3126 = vmatpush1.bf16.msra.mxu0 %v2829
    %3127 = vmatprep.subr.bf16.mxu0 %v2842
    %3128 = vmatpush1.bf16.msra.mxu0 %v2841
    %3129 = vmatprep.subr.bf16.mxu0 0
    %3130 = vmatpush1.bf16.msra.mxu0 0
    %3131 = vmatprep.subr.bf16.mxu0 0
    %3132 = vmatpush1.bf16.msra.mxu0 0
    %3133 = vmatprep.subr.bf16.mxu0 0
    %3134 = vmatpush1.bf16.msra.mxu0 0
    %3135 = vmatprep.subr.bf16.mxu0 0
    %3136 = vmatpush1.bf16.msra.mxu0 0
    %3137 = vmatprep.subr.bf16.mxu0 0
    %3138 = vmatpush1.bf16.msra.mxu0 0
    %3139 = vmatprep.subr.bf16.mxu0 0
    %3140 = vmatpush1.bf16.msra.mxu0 0
    %3141 = vmatprep.subr.bf16.mxu0 0
    %3142 = vmatpush1.bf16.msra.mxu0 0
    %3143 = vmatprep.subr.bf16.mxu0 0
    %3144 = vmatpush1.bf16.msra.mxu0 0
    %3145 = vmatprep.mubr.bf16.mxu0 0
    %3146 = vmatmul.mubr.bf16.gmra.mrb[0].mxu0 %v2398
    %v3147 = vpop.f32.mrb[0].mxu0
    %v3148 = vadd.f32 %v2436, %v3147
    %v3149 = vpop.f32.mrb[0].mxu0
    %v3150 = vadd.f32 %v2440, %v3149
    %v3151 = vpop.f32.mrb[0].mxu0
    %v3152 = vadd.f32 %v2436, %v3151
    %v3153 = vpop.f32.mrb[0].mxu0
    %v3154 = vadd.f32 %v2440, %v3153
    %3155 = vdwg.mxu0
    %3156 = vmatprep.subr.bf16.mxu0 %v2760
    %3157 = vmatpush1.bf16.msra.mxu0 %v2759
    %3158 = vmatprep.subr.bf16.mxu0 %v2772
    %3159 = vmatpush1.bf16.msra.mxu0 %v2771
    %3160 = vmatprep.subr.bf16.mxu0 %v2784
    %3161 = vmatpush1.bf16.msra.mxu0 %v2783
    %3162 = vmatprep.subr.bf16.mxu0 %v2796
    %3163 = vmatpush1.bf16.msra.mxu0 %v2795
    %3164 = vmatprep.subr.bf16.mxu0 %v2808
    %3165 = vmatpush1.bf16.msra.mxu0 %v2807
    %3166 = vmatprep.subr.bf16.mxu0 %v2820
    %3167 = vmatpush1.bf16.msra.mxu0 %v2819
    %3168 = vmatprep.subr.bf16.mxu0 %v2832
    %3169 = vmatpush1.bf16.msra.mxu0 %v2831
    %3170 = vmatprep.subr.bf16.mxu0 %v2844
    %3171 = vmatpush1.bf16.msra.mxu0 %v2843
    %3172 = vmatprep.subr.bf16.mxu0 0
    %3173 = vmatpush1.bf16.msra.mxu0 0
    %3174 = vmatprep.subr.bf16.mxu0 0
    %3175 = vmatpush1.bf16.msra.mxu0 0
    %3176 = vmatprep.subr.bf16.mxu0 0
    %3177 = vmatpush1.bf16.msra.mxu0 0
    %3178 = vmatprep.subr.bf16.mxu0 0
    %3179 = vmatpush1.bf16.msra.mxu0 0
    %3180 = vmatprep.subr.bf16.mxu0 0
    %3181 = vmatpush1.bf16.msra.mxu0 0
    %3182 = vmatprep.subr.bf16.mxu0 0
    %3183 = vmatpush1.bf16.msra.mxu0 0
    %3184 = vmatprep.subr.bf16.mxu0 0
    %3185 = vmatpush1.bf16.msra.mxu0 0
    %3186 = vmatprep.subr.bf16.mxu0 0
    %3187 = vmatpush1.bf16.msra.mxu0 0
    %3188 = vmatprep.mubr.bf16.mxu0 0
    %3189 = vmatmul.mubr.bf16.gmra.mrb[0].mxu0 %v2398
    %v3190 = vpop.f32.mrb[0].mxu0
    %v3191 = vadd.f32 %v2444, %v3190
    %v3192 = vpop.f32.mrb[0].mxu0
    %v3193 = vadd.f32 %v2448, %v3192
    %v3194 = vpop.f32.mrb[0].mxu0
    %v3195 = vadd.f32 %v2444, %v3194
    %v3196 = vpop.f32.mrb[0].mxu0
    %v3197 = vadd.f32 %v2448, %v3196
    %3198 = vdwg.mxu0
    %v3199 = vpack.c.bf16 %v2980, %v2976
    %v3200 = vpack.c.bf16 %v2982, %v2978
    %v3201 = vpack.c.bf16 %v3023, %v3019
    %v3202 = vpack.c.bf16 %v3025, %v3021
    %v3203 = vpack.c.bf16 %v3066, %v3062
    %v3204 = vpack.c.bf16 %v3068, %v3064
    %v3205 = vpack.c.bf16 %v3109, %v3105
    %v3206 = vpack.c.bf16 %v3111, %v3107
    %v3207 = vpack.c.bf16 %v3152, %v3148
    %v3208 = vpack.c.bf16 %v3154, %v3150
    %v3209 = vpack.c.bf16 %v3195, %v3191
    %v3210 = vpack.c.bf16 %v3197, %v3193
    %3211 = vst [vmem:[#allocation2] sm:$0xff] %v3199
    %3212 = vst [vmem:[#allocation2 + $0x8] sm:$0xff] %v3200
    %3213 = vst [vmem:[#allocation2 + $0x10] sm:$0xff] %v3201
    %3214 = vst [vmem:[#allocation2 + $0x18] sm:$0xff] %v3202
    %3215 = vst [vmem:[#allocation2 + $0x20] sm:$0xff] %v3203
    %3216 = vst [vmem:[#allocation2 + $0x28] sm:$0xff] %v3204
    %3217 = vst [vmem:[#allocation2 + $0x30] sm:$0xff] %v3205
    %3218 = vst [vmem:[#allocation2 + $0x38] sm:$0xff] %v3206
    %3219 = vst [vmem:[#allocation2 + $0x40] sm:$0xff] %v3207
    %3220 = vst [vmem:[#allocation2 + $0x48] sm:$0xff] %v3208
    %3221 = vst [vmem:[#allocation2 + $0x50] sm:$0xff] %v3209
    %3222 = vst [vmem:[#allocation2 + $0x58] sm:$0xff] %v3210
    %v3223 = vld [vmem:[#allocation2] sm:$0xff]
    %v3224 = vld [vmem:[#allocation2 + $0x20] sm:$0xff]
    %3225 = vmatprep.subr.bf16.mxu0 0
    %3226 = vmatpush1.bf16.xpose.msra.mxu0 %v3224
    %3227 = vmatprep.subr.bf16.mxu0 0
    %3228 = vmatpush1.bf16.xpose.msra.mxu0 0
    %3229 = vmatprep.subr.bf16.mxu0 0
    %3230 = vmatpush1.bf16.xpose.msra.mxu0 0
    %3231 = vmatprep.subr.bf16.mxu0 0
    %3232 = vmatpush1.bf16.xpose.msra.mxu0 0
    %3233 = vmatprep.subr.bf16.mxu0 0
    %3234 = vmatpush1.bf16.xpose.msra.mxu0 0
    %3235 = vmatprep.subr.bf16.mxu0 0
    %3236 = vmatpush1.bf16.xpose.msra.mxu0 0
    %3237 = vmatprep.subr.bf16.mxu0 0
    %3238 = vmatpush1.bf16.xpose.msra.mxu0 0
    %3239 = vmatprep.subr.bf16.mxu0 0
    %3240 = vmatpush1.bf16.xpose.msra.mxu0 0
    %3241 = vmatprep.subr.bf16.mxu0 0
    %3242 = vmatpush1.bf16.xpose.msra.mxu0 0
    %3243 = vmatprep.subr.bf16.mxu0 0
    %3244 = vmatpush1.bf16.xpose.msra.mxu0 0
    %3245 = vmatprep.subr.bf16.mxu0 0
    %3246 = vmatpush1.bf16.xpose.msra.mxu0 0
    %3247 = vmatprep.subr.bf16.mxu0 0
    %3248 = vmatpush1.bf16.xpose.msra.mxu0 0
    %3249 = vmatprep.subr.bf16.mxu0 0
    %3250 = vmatpush1.bf16.xpose.msra.mxu0 0
    %3251 = vmatprep.subr.bf16.mxu0 0
    %3252 = vmatpush1.bf16.xpose.msra.mxu0 0
    %3253 = vmatprep.subr.bf16.mxu0 0
    %3254 = vmatpush1.bf16.xpose.msra.mxu0 0
    %3255 = vmatprep.subr.bf16.mxu0 0
    %3256 = vmatpush1.bf16.xpose.msra.mxu0 0
    %3257 = vmatprep.mubr.bf16.mxu0 0
    %3258 = vmatmul.mubr.bf16.gmra.mrb[0].mxu0 %v3223
    %v3259 = vpop.f32.mrb[0].mxu0
    %v3260 = vadd.f32 0.0, %v3259
    %v3261 = vpop.f32.mrb[0].mxu0
    %v3262 = vpop.f32.mrb[0].mxu0
    %v3263 = vadd.f32 0.0, %v3262
    %v3264 = vpop.f32.mrb[0].mxu0
    %3265 = vdwg.mxu0
    %v3266 = vld [vmem:[#allocation2 + $0x8] sm:$0xff]
    %v3267 = vld [vmem:[#allocation2 + $0x28] sm:$0xff]
    %3268 = vmatprep.subr.bf16.mxu0 0
    %3269 = vmatpush1.bf16.xpose.msra.mxu0 %v3267
    %3270 = vmatprep.subr.bf16.mxu0 0
    %3271 = vmatpush1.bf16.xpose.msra.mxu0 0
    %3272 = vmatprep.subr.bf16.mxu0 0
    %3273 = vmatpush1.bf16.xpose.msra.mxu0 0
    %3274 = vmatprep.subr.bf16.mxu0 0
    %3275 = vmatpush1.bf16.xpose.msra.mxu0 0
    %3276 = vmatprep.subr.bf16.mxu0 0
    %3277 = vmatpush1.bf16.xpose.msra.mxu0 0
    %3278 = vmatprep.subr.bf16.mxu0 0
    %3279 = vmatpush1.bf16.xpose.msra.mxu0 0
    %3280 = vmatprep.subr.bf16.mxu0 0
    %3281 = vmatpush1.bf16.xpose.msra.mxu0 0
    %3282 = vmatprep.subr.bf16.mxu0 0
    %3283 = vmatpush1.bf16.xpose.msra.mxu0 0
    %3284 = vmatprep.subr.bf16.mxu0 0
    %3285 = vmatpush1.bf16.xpose.msra.mxu0 0
    %3286 = vmatprep.subr.bf16.mxu0 0
    %3287 = vmatpush1.bf16.xpose.msra.mxu0 0
    %3288 = vmatprep.subr.bf16.mxu0 0
    %3289 = vmatpush1.bf16.xpose.msra.mxu0 0
    %3290 = vmatprep.subr.bf16.mxu0 0
    %3291 = vmatpush1.bf16.xpose.msra.mxu0 0
    %3292 = vmatprep.subr.bf16.mxu0 0
    %3293 = vmatpush1.bf16.xpose.msra.mxu0 0
    %3294 = vmatprep.subr.bf16.mxu0 0
    %3295 = vmatpush1.bf16.xpose.msra.mxu0 0
    %3296 = vmatprep.subr.bf16.mxu0 0
    %3297 = vmatpush1.bf16.xpose.msra.mxu0 0
    %3298 = vmatprep.subr.bf16.mxu0 0
    %3299 = vmatpush1.bf16.xpose.msra.mxu0 0
    %3300 = vmatprep.mubr.bf16.mxu0 0
    %3301 = vmatmul.mubr.bf16.gmra.mrb[0].mxu0 %v3266
    %v3302 = vpop.f32.mrb[0].mxu0
    %v3303 = vadd.f32 0.0, %v3302
    %v3304 = vpop.f32.mrb[0].mxu0
    %v3305 = vpop.f32.mrb[0].mxu0
    %v3306 = vadd.f32 0.0, %v3305
    %v3307 = vpop.f32.mrb[0].mxu0
    %3308 = vdwg.mxu0
    %v3309 = vld [vmem:[#allocation2 + $0x10] sm:$0xff]
    %v3310 = vld [vmem:[#allocation2 + $0x30] sm:$0xff]
    %3311 = vmatprep.subr.bf16.mxu0 0
    %3312 = vmatpush1.bf16.xpose.msra.mxu0 %v3310
    %3313 = vmatprep.subr.bf16.mxu0 0
    %3314 = vmatpush1.bf16.xpose.msra.mxu0 0
    %3315 = vmatprep.subr.bf16.mxu0 0
    %3316 = vmatpush1.bf16.xpose.msra.mxu0 0
    %3317 = vmatprep.subr.bf16.mxu0 0
    %3318 = vmatpush1.bf16.xpose.msra.mxu0 0
    %3319 = vmatprep.subr.bf16.mxu0 0
    %3320 = vmatpush1.bf16.xpose.msra.mxu0 0
    %3321 = vmatprep.subr.bf16.mxu0 0
    %3322 = vmatpush1.bf16.xpose.msra.mxu0 0
    %3323 = vmatprep.subr.bf16.mxu0 0
    %3324 = vmatpush1.bf16.xpose.msra.mxu0 0
    %3325 = vmatprep.subr.bf16.mxu0 0
    %3326 = vmatpush1.bf16.xpose.msra.mxu0 0
    %3327 = vmatprep.subr.bf16.mxu0 0
    %3328 = vmatpush1.bf16.xpose.msra.mxu0 0
    %3329 = vmatprep.subr.bf16.mxu0 0
    %3330 = vmatpush1.bf16.xpose.msra.mxu0 0
    %3331 = vmatprep.subr.bf16.mxu0 0
    %3332 = vmatpush1.bf16.xpose.msra.mxu0 0
    %3333 = vmatprep.subr.bf16.mxu0 0
    %3334 = vmatpush1.bf16.xpose.msra.mxu0 0
    %3335 = vmatprep.subr.bf16.mxu0 0
    %3336 = vmatpush1.bf16.xpose.msra.mxu0 0
    %3337 = vmatprep.subr.bf16.mxu0 0
    %3338 = vmatpush1.bf16.xpose.msra.mxu0 0
    %3339 = vmatprep.subr.bf16.mxu0 0
    %3340 = vmatpush1.bf16.xpose.msra.mxu0 0
    %3341 = vmatprep.subr.bf16.mxu0 0
    %3342 = vmatpush1.bf16.xpose.msra.mxu0 0
    %3343 = vmatprep.mubr.bf16.mxu0 0
    %3344 = vmatmul.mubr.bf16.gmra.mrb[0].mxu0 %v3309
    %v3345 = vpop.f32.mrb[0].mxu0
    %v3346 = vadd.f32 0.0, %v3345
    %v3347 = vpop.f32.mrb[0].mxu0
    %v3348 = vpop.f32.mrb[0].mxu0
    %v3349 = vadd.f32 0.0, %v3348
    %v3350 = vpop.f32.mrb[0].mxu0
    %3351 = vdwg.mxu0
    %v3352 = vld [vmem:[#allocation2 + $0x18] sm:$0xff]
    %v3353 = vld [vmem:[#allocation2 + $0x38] sm:$0xff]
    %3354 = vmatprep.subr.bf16.mxu0 0
    %3355 = vmatpush1.bf16.xpose.msra.mxu0 %v3353
    %3356 = vmatprep.subr.bf16.mxu0 0
    %3357 = vmatpush1.bf16.xpose.msra.mxu0 0
    %3358 = vmatprep.subr.bf16.mxu0 0
    %3359 = vmatpush1.bf16.xpose.msra.mxu0 0
    %3360 = vmatprep.subr.bf16.mxu0 0
    %3361 = vmatpush1.bf16.xpose.msra.mxu0 0
    %3362 = vmatprep.subr.bf16.mxu0 0
    %3363 = vmatpush1.bf16.xpose.msra.mxu0 0
    %3364 = vmatprep.subr.bf16.mxu0 0
    %3365 = vmatpush1.bf16.xpose.msra.mxu0 0
    %3366 = vmatprep.subr.bf16.mxu0 0
    %3367 = vmatpush1.bf16.xpose.msra.mxu0 0
    %3368 = vmatprep.subr.bf16.mxu0 0
    %3369 = vmatpush1.bf16.xpose.msra.mxu0 0
    %3370 = vmatprep.subr.bf16.mxu0 0
    %3371 = vmatpush1.bf16.xpose.msra.mxu0 0
    %3372 = vmatprep.subr.bf16.mxu0 0
    %3373 = vmatpush1.bf16.xpose.msra.mxu0 0
    %3374 = vmatprep.subr.bf16.mxu0 0
    %3375 = vmatpush1.bf16.xpose.msra.mxu0 0
    %3376 = vmatprep.subr.bf16.mxu0 0
    %3377 = vmatpush1.bf16.xpose.msra.mxu0 0
    %3378 = vmatprep.subr.bf16.mxu0 0
    %3379 = vmatpush1.bf16.xpose.msra.mxu0 0
    %3380 = vmatprep.subr.bf16.mxu0 0
    %3381 = vmatpush1.bf16.xpose.msra.mxu0 0
    %3382 = vmatprep.subr.bf16.mxu0 0
    %3383 = vmatpush1.bf16.xpose.msra.mxu0 0
    %3384 = vmatprep.subr.bf16.mxu0 0
    %3385 = vmatpush1.bf16.xpose.msra.mxu0 0
    %3386 = vmatprep.mubr.bf16.mxu0 0
    %3387 = vmatmul.mubr.bf16.gmra.mrb[0].mxu0 %v3352
    %v3388 = vpop.f32.mrb[0].mxu0
    %v3389 = vadd.f32 0.0, %v3388
    %v3390 = vpop.f32.mrb[0].mxu0
    %v3391 = vpop.f32.mrb[0].mxu0
    %v3392 = vadd.f32 0.0, %v3391
    %v3393 = vpop.f32.mrb[0].mxu0
    %3394 = vdwg.mxu0
    %v3395 = vadd.f32 %v3260, %v231
    %v3396 = vadd.f32 %v3263, %v232
    %v3397 = vadd.f32 %v3303, %v231
    %v3398 = vadd.f32 %v3306, %v232
    %v3399 = vadd.f32 %v3346, %v231
    %v3400 = vadd.f32 %v3349, %v232
    %v3401 = vadd.f32 %v3389, %v231
    %v3402 = vadd.f32 %v3392, %v232
    %v3403 = vsel %vm1336, %v3395, -inf
    %3404 = vmax.xlane.f32.xlu0 %v3403
    %v3405 = vpop.xlane.xlu0 %3404
    %v3406 = vsel %vm1336, %v3396, -inf
    %3407 = vmax.xlane.f32.xlu0 %v3406
    %v3408 = vpop.xlane.xlu0 %3407
    %v3409 = vsel %vm1336, %v3397, -inf
    %3410 = vmax.xlane.f32.xlu0 %v3409
    %v3411 = vpop.xlane.xlu0 %3410
    %v3412 = vsel %vm1336, %v3398, -inf
    %3413 = vmax.xlane.f32.xlu0 %v3412
    %v3414 = vpop.xlane.xlu0 %3413
    %v3415 = vsel %vm1336, %v3399, -inf
    %3416 = vmax.xlane.f32.xlu0 %v3415
    %v3417 = vpop.xlane.xlu0 %3416
    %v3418 = vsel %vm1336, %v3400, -inf
    %3419 = vmax.xlane.f32.xlu0 %v3418
    %v3420 = vpop.xlane.xlu0 %3419
    %v3421 = vsel %vm1336, %v3401, -inf
    %3422 = vmax.xlane.f32.xlu0 %v3421
    %v3423 = vpop.xlane.xlu0 %3422
    %v3424 = vsel %vm1336, %v3402, -inf
    %3425 = vmax.xlane.f32.xlu0 %v3424
    %v3426 = vpop.xlane.xlu0 %3425
    %v3427 = vsub.f32 %v3395, %v3405
    %v3428 = vsub.f32 %v3396, %v3408
    %v3429 = vsub.f32 %v3397, %v3411
    %v3430 = vsub.f32 %v3398, %v3414
    %v3431 = vsub.f32 %v3399, %v3417
    %v3432 = vsub.f32 %v3400, %v3420
    %v3433 = vsub.f32 %v3401, %v3423
    %v3434 = vsub.f32 %v3402, %v3426
    %v3435 = vmul.f32 %v3427, 1.442695
    %v3436 = vpow.pop %v3435
    %v3437 = vmul.f32 %v3428, 1.442695
    %v3438 = vpow.pop %v3437
    %v3439 = vmul.f32 %v3429, 1.442695
    %v3440 = vpow.pop %v3439
    %v3441 = vmul.f32 %v3430, 1.442695
    %v3442 = vpow.pop %v3441
    %v3443 = vmul.f32 %v3431, 1.442695
    %v3444 = vpow.pop %v3443
    %v3445 = vmul.f32 %v3432, 1.442695
    %v3446 = vpow.pop %v3445
    %v3447 = vmul.f32 %v3433, 1.442695
    %v3448 = vpow.pop %v3447
    %v3449 = vmul.f32 %v3434, 1.442695
    %v3450 = vpow.pop %v3449
    %v3451 = vsel %vm1336, %v3436, 0.0
    %3452 = vadd.xlane.f32.xlu0 %v3451
    %v3453 = vpop.xlane.xlu0 %3452
    %v3454 = vsel %vm1336, %v3438, 0.0
    %3455 = vadd.xlane.f32.xlu0 %v3454
    %v3456 = vpop.xlane.xlu0 %3455
    %v3457 = vsel %vm1336, %v3440, 0.0
    %3458 = vadd.xlane.f32.xlu0 %v3457
    %v3459 = vpop.xlane.xlu0 %3458
    %v3460 = vsel %vm1336, %v3442, 0.0
    %3461 = vadd.xlane.f32.xlu0 %v3460
    %v3462 = vpop.xlane.xlu0 %3461
    %v3463 = vsel %vm1336, %v3444, 0.0
    %3464 = vadd.xlane.f32.xlu0 %v3463
    %v3465 = vpop.xlane.xlu0 %3464
    %v3466 = vsel %vm1336, %v3446, 0.0
    %3467 = vadd.xlane.f32.xlu0 %v3466
    %v3468 = vpop.xlane.xlu0 %3467
    %v3469 = vsel %vm1336, %v3448, 0.0
    %3470 = vadd.xlane.f32.xlu0 %v3469
    %v3471 = vpop.xlane.xlu0 %3470
    %v3472 = vsel %vm1336, %v3450, 0.0
    %3473 = vadd.xlane.f32.xlu0 %v3472
    %v3474 = vpop.xlane.xlu0 %3473
    %v3475 = vrcp.pop %v3453
    %v3476 = vmul.f32 %v3436, %v3475
    %v3477 = vrcp.pop %v3456
    %v3478 = vmul.f32 %v3438, %v3477
    %v3479 = vrcp.pop %v3459
    %v3480 = vmul.f32 %v3440, %v3479
    %v3481 = vrcp.pop %v3462
    %v3482 = vmul.f32 %v3442, %v3481
    %v3483 = vrcp.pop %v3465
    %v3484 = vmul.f32 %v3444, %v3483
    %v3485 = vrcp.pop %v3468
    %v3486 = vmul.f32 %v3446, %v3485
    %v3487 = vrcp.pop %v3471
    %v3488 = vmul.f32 %v3448, %v3487
    %v3489 = vrcp.pop %v3474
    %v3490 = vmul.f32 %v3450, %v3489
    %v3491 = vpack.c.bf16 %v3478, %v3476
    %v3492 = vpack.c.bf16 %v3482, %v3480
    %v3493 = vpack.c.bf16 %v3486, %v3484
    %v3494 = vpack.c.bf16 %v3490, %v3488
    %v3495 = vld [vmem:[#allocation2 + $0x40] sm:$0xff]
    %v3497 = vsel %vm1336, %v3491, 0
    %3499 = vmatprep.subr.bf16.mxu0 0
    %3500 = vmatpush1.bf16.msra.mxu0 %v3495
    %3501 = vmatprep.subr.bf16.mxu0 0
    %3502 = vmatpush1.bf16.msra.mxu0 0
    %3503 = vmatprep.subr.bf16.mxu0 0
    %3504 = vmatpush1.bf16.msra.mxu0 0
    %3505 = vmatprep.subr.bf16.mxu0 0
    %3506 = vmatpush1.bf16.msra.mxu0 0
    %3507 = vmatprep.subr.bf16.mxu0 0
    %3508 = vmatpush1.bf16.msra.mxu0 0
    %3509 = vmatprep.subr.bf16.mxu0 0
    %3510 = vmatpush1.bf16.msra.mxu0 0
    %3511 = vmatprep.subr.bf16.mxu0 0
    %3512 = vmatpush1.bf16.msra.mxu0 0
    %3513 = vmatprep.subr.bf16.mxu0 0
    %3514 = vmatpush1.bf16.msra.mxu0 0
    %3515 = vmatprep.subr.bf16.mxu0 0
    %3516 = vmatpush1.bf16.msra.mxu0 0
    %3517 = vmatprep.subr.bf16.mxu0 0
    %3518 = vmatpush1.bf16.msra.mxu0 0
    %3519 = vmatprep.subr.bf16.mxu0 0
    %3520 = vmatpush1.bf16.msra.mxu0 0
    %3521 = vmatprep.subr.bf16.mxu0 0
    %3522 = vmatpush1.bf16.msra.mxu0 0
    %3523 = vmatprep.subr.bf16.mxu0 0
    %3524 = vmatpush1.bf16.msra.mxu0 0
    %3525 = vmatprep.subr.bf16.mxu0 0
    %3526 = vmatpush1.bf16.msra.mxu0 0
    %3527 = vmatprep.subr.bf16.mxu0 0
    %3528 = vmatpush1.bf16.msra.mxu0 0
    %3529 = vmatprep.subr.bf16.mxu0 0
    %3530 = vmatpush1.bf16.msra.mxu0 0
    %3531 = vmatprep.mubr.bf16.mxu0 0
    %3532 = vmatmul.mubr.bf16.gmra.mrb[0].mxu0 %v3497
    %v3533 = vpop.f32.mrb[0].mxu0
    %v3534 = vadd.f32 0.0, %v3533
    %v3535 = vpop.f32.mrb[0].mxu0
    %v3536 = vpop.f32.mrb[0].mxu0
    %v3537 = vadd.f32 0.0, %v3536
    %v3538 = vpop.f32.mrb[0].mxu0
    %3539 = vdwg.mxu0
    %v3540 = vpack.c.bf16 %v3537, %v3534
    %3541 = vst [vmem:[#allocation3] sm:$0xff] %v3540
    %v3542 = vld [vmem:[#allocation2 + $0x48] sm:$0xff]
    %v3544 = vsel %vm1336, %v3492, 0
    %3546 = vmatprep.subr.bf16.mxu0 0
    %3547 = vmatpush1.bf16.msra.mxu0 %v3542
    %3548 = vmatprep.subr.bf16.mxu0 0
    %3549 = vmatpush1.bf16.msra.mxu0 0
    %3550 = vmatprep.subr.bf16.mxu0 0
    %3551 = vmatpush1.bf16.msra.mxu0 0
    %3552 = vmatprep.subr.bf16.mxu0 0
    %3553 = vmatpush1.bf16.msra.mxu0 0
    %3554 = vmatprep.subr.bf16.mxu0 0
    %3555 = vmatpush1.bf16.msra.mxu0 0
    %3556 = vmatprep.subr.bf16.mxu0 0
    %3557 = vmatpush1.bf16.msra.mxu0 0
    %3558 = vmatprep.subr.bf16.mxu0 0
    %3559 = vmatpush1.bf16.msra.mxu0 0
    %3560 = vmatprep.subr.bf16.mxu0 0
    %3561 = vmatpush1.bf16.msra.mxu0 0
    %3562 = vmatprep.subr.bf16.mxu0 0
    %3563 = vmatpush1.bf16.msra.mxu0 0
    %3564 = vmatprep.subr.bf16.mxu0 0
    %3565 = vmatpush1.bf16.msra.mxu0 0
    %3566 = vmatprep.subr.bf16.mxu0 0
    %3567 = vmatpush1.bf16.msra.mxu0 0
    %3568 = vmatprep.subr.bf16.mxu0 0
    %3569 = vmatpush1.bf16.msra.mxu0 0
    %3570 = vmatprep.subr.bf16.mxu0 0
    %3571 = vmatpush1.bf16.msra.mxu0 0
    %3572 = vmatprep.subr.bf16.mxu0 0
    %3573 = vmatpush1.bf16.msra.mxu0 0
    %3574 = vmatprep.subr.bf16.mxu0 0
    %3575 = vmatpush1.bf16.msra.mxu0 0
    %3576 = vmatprep.subr.bf16.mxu0 0
    %3577 = vmatpush1.bf16.msra.mxu0 0
    %3578 = vmatprep.mubr.bf16.mxu0 0
    %3579 = vmatmul.mubr.bf16.gmra.mrb[0].mxu0 %v3544
    %v3580 = vpop.f32.mrb[0].mxu0
    %v3581 = vadd.f32 0.0, %v3580
    %v3582 = vpop.f32.mrb[0].mxu0
    %v3583 = vpop.f32.mrb[0].mxu0
    %v3584 = vadd.f32 0.0, %v3583
    %v3585 = vpop.f32.mrb[0].mxu0
    %3586 = vdwg.mxu0
    %v3587 = vpack.c.bf16 %v3584, %v3581
    %3588 = vst [vmem:[#allocation3 + $0x8] sm:$0xff] %v3587
    %v3589 = vld [vmem:[#allocation2 + $0x50] sm:$0xff]
    %v3591 = vsel %vm1336, %v3493, 0
    %3593 = vmatprep.subr.bf16.mxu0 0
    %3594 = vmatpush1.bf16.msra.mxu0 %v3589
    %3595 = vmatprep.subr.bf16.mxu0 0
    %3596 = vmatpush1.bf16.msra.mxu0 0
    %3597 = vmatprep.subr.bf16.mxu0 0
    %3598 = vmatpush1.bf16.msra.mxu0 0
    %3599 = vmatprep.subr.bf16.mxu0 0
    %3600 = vmatpush1.bf16.msra.mxu0 0
    %3601 = vmatprep.subr.bf16.mxu0 0
    %3602 = vmatpush1.bf16.msra.mxu0 0
    %3603 = vmatprep.subr.bf16.mxu0 0
    %3604 = vmatpush1.bf16.msra.mxu0 0
    %3605 = vmatprep.subr.bf16.mxu0 0
    %3606 = vmatpush1.bf16.msra.mxu0 0
    %3607 = vmatprep.subr.bf16.mxu0 0
    %3608 = vmatpush1.bf16.msra.mxu0 0
    %3609 = vmatprep.subr.bf16.mxu0 0
    %3610 = vmatpush1.bf16.msra.mxu0 0
    %3611 = vmatprep.subr.bf16.mxu0 0
    %3612 = vmatpush1.bf16.msra.mxu0 0
    %3613 = vmatprep.subr.bf16.mxu0 0
    %3614 = vmatpush1.bf16.msra.mxu0 0
    %3615 = vmatprep.subr.bf16.mxu0 0
    %3616 = vmatpush1.bf16.msra.mxu0 0
    %3617 = vmatprep.subr.bf16.mxu0 0
    %3618 = vmatpush1.bf16.msra.mxu0 0
    %3619 = vmatprep.subr.bf16.mxu0 0
    %3620 = vmatpush1.bf16.msra.mxu0 0
    %3621 = vmatprep.subr.bf16.mxu0 0
    %3622 = vmatpush1.bf16.msra.mxu0 0
    %3623 = vmatprep.subr.bf16.mxu0 0
    %3624 = vmatpush1.bf16.msra.mxu0 0
    %3625 = vmatprep.mubr.bf16.mxu0 0
    %3626 = vmatmul.mubr.bf16.gmra.mrb[0].mxu0 %v3591
    %v3627 = vpop.f32.mrb[0].mxu0
    %v3628 = vadd.f32 0.0, %v3627
    %v3629 = vpop.f32.mrb[0].mxu0
    %v3630 = vpop.f32.mrb[0].mxu0
    %v3631 = vadd.f32 0.0, %v3630
    %v3632 = vpop.f32.mrb[0].mxu0
    %3633 = vdwg.mxu0
    %v3634 = vpack.c.bf16 %v3631, %v3628
    %3635 = vst [vmem:[#allocation3 + $0x10] sm:$0xff] %v3634
    %v3636 = vld [vmem:[#allocation2 + $0x58] sm:$0xff]
    %v3638 = vsel %vm1336, %v3494, 0
    %3640 = vmatprep.subr.bf16.mxu0 0
    %3641 = vmatpush1.bf16.msra.mxu0 %v3636
    %3642 = vmatprep.subr.bf16.mxu0 0
    %3643 = vmatpush1.bf16.msra.mxu0 0
    %3644 = vmatprep.subr.bf16.mxu0 0
    %3645 = vmatpush1.bf16.msra.mxu0 0
    %3646 = vmatprep.subr.bf16.mxu0 0
    %3647 = vmatpush1.bf16.msra.mxu0 0
    %3648 = vmatprep.subr.bf16.mxu0 0
    %3649 = vmatpush1.bf16.msra.mxu0 0
    %3650 = vmatprep.subr.bf16.mxu0 0
    %3651 = vmatpush1.bf16.msra.mxu0 0
    %3652 = vmatprep.subr.bf16.mxu0 0
    %3653 = vmatpush1.bf16.msra.mxu0 0
    %3654 = vmatprep.subr.bf16.mxu0 0
    %3655 = vmatpush1.bf16.msra.mxu0 0
    %3656 = vmatprep.subr.bf16.mxu0 0
    %3657 = vmatpush1.bf16.msra.mxu0 0
    %3658 = vmatprep.subr.bf16.mxu0 0
    %3659 = vmatpush1.bf16.msra.mxu0 0
    %3660 = vmatprep.subr.bf16.mxu0 0
    %3661 = vmatpush1.bf16.msra.mxu0 0
    %3662 = vmatprep.subr.bf16.mxu0 0
    %3663 = vmatpush1.bf16.msra.mxu0 0
    %3664 = vmatprep.subr.bf16.mxu0 0
    %3665 = vmatpush1.bf16.msra.mxu0 0
    %3666 = vmatprep.subr.bf16.mxu0 0
    %3667 = vmatpush1.bf16.msra.mxu0 0
    %3668 = vmatprep.subr.bf16.mxu0 0
    %3669 = vmatpush1.bf16.msra.mxu0 0
    %3670 = vmatprep.subr.bf16.mxu0 0
    %3671 = vmatpush1.bf16.msra.mxu0 0
    %3672 = vmatprep.mubr.bf16.mxu0 0
    %3673 = vmatmul.mubr.bf16.gmra.mrb[0].mxu0 %v3638
    %v3674 = vpop.f32.mrb[0].mxu0
    %v3675 = vadd.f32 0.0, %v3674
    %v3676 = vpop.f32.mrb[0].mxu0
    %v3677 = vpop.f32.mrb[0].mxu0
    %v3678 = vadd.f32 0.0, %v3677
    %v3679 = vpop.f32.mrb[0].mxu0
    %3680 = vdwg.mxu0
    %v3681 = vpack.c.bf16 %v3678, %v3675
    %3682 = vst [vmem:[#allocation3 + $0x18] sm:$0xff] %v3681
    %v3683 = vld [vmem:[#allocation3] sm:$0xff]
    %v3684 = vld [vmem:[#allocation3 + $0x8] sm:$0xff]
    %v3685 = vld [vmem:[#allocation3 + $0x10] sm:$0xff]
    %v3686 = vld [vmem:[#allocation3 + $0x18] sm:$0xff]
    %s3687 = scalar_lea.vmem [#allocation13], 256
    %v3688 = vld [vmem:[%s3687] sm:$0xf]
    %v3689 = vld [vmem:[%s3687 + $0x4] sm:$0xf]
    %v3690 = vld [vmem:[%s3687 + $0x8] sm:$0xf]
    %v3691 = vld [vmem:[%s3687 + $0xc] sm:$0xf]
    %v3692 = vld [vmem:[%s3687 + $0x10] sm:$0xf]
    %v3693 = vld [vmem:[%s3687 + $0x14] sm:$0xf]
    %v3694 = vld [vmem:[%s3687 + $0x18] sm:$0xf]
    %v3695 = vld [vmem:[%s3687 + $0x1c] sm:$0xf]
    %v3696 = vld [vmem:[%s3687 + $0x20] sm:$0xf]
    %v3697 = vld [vmem:[%s3687 + $0x24] sm:$0xf]
    %v3698 = vld [vmem:[%s3687 + $0x28] sm:$0xf]
    %v3699 = vld [vmem:[%s3687 + $0x2c] sm:$0xf]
    %v3700 = vld [vmem:[%s3687 + $0x30] sm:$0xf]
    %v3701 = vld [vmem:[%s3687 + $0x34] sm:$0xf]
    %v3702 = vld [vmem:[%s3687 + $0x38] sm:$0xf]
    %v3703 = vld [vmem:[%s3687 + $0x3c] sm:$0xf]
    %v3704 = vld [vmem:[%s3687 + $0x40] sm:$0xf]
    %v3705 = vld [vmem:[%s3687 + $0x44] sm:$0xf]
    %v3706 = vld [vmem:[%s3687 + $0x48] sm:$0xf]
    %v3707 = vld [vmem:[%s3687 + $0x4c] sm:$0xf]
    %v3708 = vld [vmem:[%s3687 + $0x50] sm:$0xf]
    %v3709 = vld [vmem:[%s3687 + $0x54] sm:$0xf]
    %v3710 = vld [vmem:[%s3687 + $0x58] sm:$0xf]
    %v3711 = vld [vmem:[%s3687 + $0x5c] sm:$0xf]
    %v3712 = vld [vmem:[%s3687 + $0x60] sm:$0xf]
    %v3713 = vld [vmem:[%s3687 + $0x64] sm:$0xf]
    %v3714 = vld [vmem:[%s3687 + $0x68] sm:$0xf]
    %v3715 = vld [vmem:[%s3687 + $0x6c] sm:$0xf]
    %v3716 = vld [vmem:[%s3687 + $0x70] sm:$0xf]
    %v3717 = vld [vmem:[%s3687 + $0x74] sm:$0xf]
    %v3718 = vld [vmem:[%s3687 + $0x78] sm:$0xf]
    %v3719 = vld [vmem:[%s3687 + $0x7c] sm:$0xf]
    %v3720 = vld [vmem:[%s3687 + $0x80] sm:$0xf]
    %v3721 = vld [vmem:[%s3687 + $0x84] sm:$0xf]
    %v3722 = vld [vmem:[%s3687 + $0x88] sm:$0xf]
    %v3723 = vld [vmem:[%s3687 + $0x8c] sm:$0xf]
    %v3724 = vld [vmem:[%s3687 + $0x90] sm:$0xf]
    %v3725 = vld [vmem:[%s3687 + $0x94] sm:$0xf]
    %v3726 = vld [vmem:[%s3687 + $0x98] sm:$0xf]
    %v3727 = vld [vmem:[%s3687 + $0x9c] sm:$0xf]
    %v3728 = vld [vmem:[%s3687 + $0xa0] sm:$0xf]
    %v3729 = vld [vmem:[%s3687 + $0xa4] sm:$0xf]
    %v3730 = vld [vmem:[%s3687 + $0xa8] sm:$0xf]
    %v3731 = vld [vmem:[%s3687 + $0xac] sm:$0xf]
    %v3732 = vld [vmem:[%s3687 + $0xb0] sm:$0xf]
    %v3733 = vld [vmem:[%s3687 + $0xb4] sm:$0xf]
    %v3734 = vld [vmem:[%s3687 + $0xb8] sm:$0xf]
    %v3735 = vld [vmem:[%s3687 + $0xbc] sm:$0xf]
    %v3736 = vld [vmem:[%s3687 + $0xc0] sm:$0xf]
    %v3737 = vld [vmem:[%s3687 + $0xc4] sm:$0xf]
    %v3738 = vld [vmem:[%s3687 + $0xc8] sm:$0xf]
    %v3739 = vld [vmem:[%s3687 + $0xcc] sm:$0xf]
    %v3740 = vld [vmem:[%s3687 + $0xd0] sm:$0xf]
    %v3741 = vld [vmem:[%s3687 + $0xd4] sm:$0xf]
    %v3742 = vld [vmem:[%s3687 + $0xd8] sm:$0xf]
    %v3743 = vld [vmem:[%s3687 + $0xdc] sm:$0xf]
    %v3744 = vld [vmem:[%s3687 + $0xe0] sm:$0xf]
    %v3745 = vld [vmem:[%s3687 + $0xe4] sm:$0xf]
    %v3746 = vld [vmem:[%s3687 + $0xe8] sm:$0xf]
    %v3747 = vld [vmem:[%s3687 + $0xec] sm:$0xf]
    %v3748 = vld [vmem:[%s3687 + $0xf0] sm:$0xf]
    %v3749 = vld [vmem:[%s3687 + $0xf4] sm:$0xf]
    %v3750 = vld [vmem:[%s3687 + $0xf8] sm:$0xf]
    %v3751 = vld [vmem:[%s3687 + $0xfc] sm:$0xf]
    %s3752 = scalar_lea.vmem %s7, 1
    %v3753 = vld [vmem:[%s3752] sm:$0x1]
    %v3755 = vlaneseq
    %v3756 = vshrl.u32 %v3755, 7
    %v3757 = vsub.s32 0, %v3756
    %v3758 = vrot.slane %v3753, %v3757
    %v3824 = vunpack.c.l.b16 %v3688
    %v3825 = vunpack.c.l.b16 %v3689
    %v3826 = vunpack.c.l.b16 %v3690
    %v3827 = vunpack.c.l.b16 %v3691
    %v3828 = vunpack.c.l.b16 %v3692
    %v3829 = vunpack.c.l.b16 %v3693
    %v3830 = vunpack.c.l.b16 %v3694
    %v3831 = vunpack.c.l.b16 %v3695
    %v3832 = vunpack.c.l.b16 %v3696
    %v3833 = vunpack.c.l.b16 %v3697
    %v3834 = vunpack.c.l.b16 %v3698
    %v3835 = vunpack.c.l.b16 %v3699
    %v3836 = vunpack.c.l.b16 %v3700
    %v3837 = vunpack.c.l.b16 %v3701
    %v3838 = vunpack.c.l.b16 %v3702
    %v3839 = vunpack.c.l.b16 %v3703
    %v3840 = vunpack.c.l.b16 %v3704
    %v3841 = vunpack.c.l.b16 %v3705
    %v3842 = vunpack.c.l.b16 %v3706
    %v3843 = vunpack.c.l.b16 %v3707
    %v3844 = vunpack.c.l.b16 %v3708
    %v3845 = vunpack.c.l.b16 %v3709
    %v3846 = vunpack.c.l.b16 %v3710
    %v3847 = vunpack.c.l.b16 %v3711
    %v3848 = vunpack.c.l.b16 %v3712
    %v3849 = vunpack.c.l.b16 %v3713
    %v3850 = vunpack.c.l.b16 %v3714
    %v3851 = vunpack.c.l.b16 %v3715
    %v3852 = vunpack.c.l.b16 %v3716
    %v3853 = vunpack.c.l.b16 %v3717
    %v3854 = vunpack.c.l.b16 %v3718
    %v3855 = vunpack.c.l.b16 %v3719
    %v3856 = vunpack.c.l.b16 %v3720
    %v3857 = vunpack.c.l.b16 %v3721
    %v3858 = vunpack.c.l.b16 %v3722
    %v3859 = vunpack.c.l.b16 %v3723
    %v3860 = vunpack.c.l.b16 %v3724
    %v3861 = vunpack.c.l.b16 %v3725
    %v3862 = vunpack.c.l.b16 %v3726
    %v3863 = vunpack.c.l.b16 %v3727
    %v3864 = vunpack.c.l.b16 %v3728
    %v3865 = vunpack.c.l.b16 %v3729
    %v3866 = vunpack.c.l.b16 %v3730
    %v3867 = vunpack.c.l.b16 %v3731
    %v3868 = vunpack.c.l.b16 %v3732
    %v3869 = vunpack.c.l.b16 %v3733
    %v3870 = vunpack.c.l.b16 %v3734
    %v3871 = vunpack.c.l.b16 %v3735
    %v3872 = vunpack.c.l.b16 %v3736
    %v3873 = vunpack.c.l.b16 %v3737
    %v3874 = vunpack.c.l.b16 %v3738
    %v3875 = vunpack.c.l.b16 %v3739
    %v3876 = vunpack.c.l.b16 %v3740
    %v3877 = vunpack.c.l.b16 %v3741
    %v3878 = vunpack.c.l.b16 %v3742
    %v3879 = vunpack.c.l.b16 %v3743
    %v3880 = vunpack.c.l.b16 %v3744
    %v3881 = vunpack.c.l.b16 %v3745
    %v3882 = vunpack.c.l.b16 %v3746
    %v3883 = vunpack.c.l.b16 %v3747
    %v3884 = vunpack.c.l.b16 %v3748
    %v3885 = vunpack.c.l.b16 %v3749
    %v3886 = vunpack.c.l.b16 %v3750
    %v3887 = vunpack.c.l.b16 %v3751
    %v3888 = vpack.c.b16 %v3825, %v3824
    %v3889 = vpack.c.b16 %v3827, %v3826
    %v3890 = vpack.c.b16 %v3829, %v3828
    %v3891 = vpack.c.b16 %v3831, %v3830
    %v3892 = vpack.c.b16 %v3833, %v3832
    %v3893 = vpack.c.b16 %v3835, %v3834
    %v3894 = vpack.c.b16 %v3837, %v3836
    %v3895 = vpack.c.b16 %v3839, %v3838
    %v3896 = vpack.c.b16 %v3841, %v3840
    %v3897 = vpack.c.b16 %v3843, %v3842
    %v3898 = vpack.c.b16 %v3845, %v3844
    %v3899 = vpack.c.b16 %v3847, %v3846
    %v3900 = vpack.c.b16 %v3849, %v3848
    %v3901 = vpack.c.b16 %v3851, %v3850
    %v3902 = vpack.c.b16 %v3853, %v3852
    %v3903 = vpack.c.b16 %v3855, %v3854
    %v3904 = vpack.c.b16 %v3857, %v3856
    %v3905 = vpack.c.b16 %v3859, %v3858
    %v3906 = vpack.c.b16 %v3861, %v3860
    %v3907 = vpack.c.b16 %v3863, %v3862
    %v3908 = vpack.c.b16 %v3865, %v3864
    %v3909 = vpack.c.b16 %v3867, %v3866
    %v3910 = vpack.c.b16 %v3869, %v3868
    %v3911 = vpack.c.b16 %v3871, %v3870
    %v3912 = vpack.c.b16 %v3873, %v3872
    %v3913 = vpack.c.b16 %v3875, %v3874
    %v3914 = vpack.c.b16 %v3877, %v3876
    %v3915 = vpack.c.b16 %v3879, %v3878
    %v3916 = vpack.c.b16 %v3881, %v3880
    %v3917 = vpack.c.b16 %v3883, %v3882
    %v3918 = vpack.c.b16 %v3885, %v3884
    %v3919 = vpack.c.b16 %v3887, %v3886
    %3952 = vmatprep.subr.bf16.mxu0 0
    %3953 = vmatpush1.bf16.msra.mxu0 %v3888
    %3954 = vmatprep.subr.bf16.mxu0 0
    %3955 = vmatpush1.bf16.msra.mxu0 %v3889
    %3956 = vmatprep.subr.bf16.mxu0 0
    %3957 = vmatpush1.bf16.msra.mxu0 %v3890
    %3958 = vmatprep.subr.bf16.mxu0 0
    %3959 = vmatpush1.bf16.msra.mxu0 %v3891
    %3960 = vmatprep.subr.bf16.mxu0 0
    %3961 = vmatpush1.bf16.msra.mxu0 %v3892
    %3962 = vmatprep.subr.bf16.mxu0 0
    %3963 = vmatpush1.bf16.msra.mxu0 %v3893
    %3964 = vmatprep.subr.bf16.mxu0 0
    %3965 = vmatpush1.bf16.msra.mxu0 %v3894
    %3966 = vmatprep.subr.bf16.mxu0 0
    %3967 = vmatpush1.bf16.msra.mxu0 %v3895
    %3968 = vmatprep.subr.bf16.mxu0 0
    %3969 = vmatpush1.bf16.msra.mxu0 %v3896
    %3970 = vmatprep.subr.bf16.mxu0 0
    %3971 = vmatpush1.bf16.msra.mxu0 %v3897
    %3972 = vmatprep.subr.bf16.mxu0 0
    %3973 = vmatpush1.bf16.msra.mxu0 %v3898
    %3974 = vmatprep.subr.bf16.mxu0 0
    %3975 = vmatpush1.bf16.msra.mxu0 %v3899
    %3976 = vmatprep.subr.bf16.mxu0 0
    %3977 = vmatpush1.bf16.msra.mxu0 %v3900
    %3978 = vmatprep.subr.bf16.mxu0 0
    %3979 = vmatpush1.bf16.msra.mxu0 %v3901
    %3980 = vmatprep.subr.bf16.mxu0 0
    %3981 = vmatpush1.bf16.msra.mxu0 %v3902
    %3982 = vmatprep.subr.bf16.mxu0 0
    %3983 = vmatpush1.bf16.msra.mxu0 %v3903
    %3984 = vmatprep.mubr.bf16.mxu0 %v3684
    %3985 = vmatmul.mubr.bf16.gmra.mrb[0].mxu0 %v3683
    %v3986 = vpop.f32.mrb[0].mxu0
    %v3987 = vadd.f32 %v3758, %v3986
    %v3988 = vpop.f32.mrb[0].mxu0
    %v3989 = vpop.f32.mrb[0].mxu0
    %v3990 = vadd.f32 %v3758, %v3989
    %v3991 = vpop.f32.mrb[0].mxu0
    %3992 = vdwg.mxu0
    %3993 = vmatprep.subr.bf16.mxu0 0
    %3994 = vmatpush1.bf16.msra.mxu0 %v3904
    %3995 = vmatprep.subr.bf16.mxu0 0
    %3996 = vmatpush1.bf16.msra.mxu0 %v3905
    %3997 = vmatprep.subr.bf16.mxu0 0
    %3998 = vmatpush1.bf16.msra.mxu0 %v3906
    %3999 = vmatprep.subr.bf16.mxu0 0
    %4000 = vmatpush1.bf16.msra.mxu0 %v3907
    %4001 = vmatprep.subr.bf16.mxu0 0
    %4002 = vmatpush1.bf16.msra.mxu0 %v3908
    %4003 = vmatprep.subr.bf16.mxu0 0
    %4004 = vmatpush1.bf16.msra.mxu0 %v3909
    %4005 = vmatprep.subr.bf16.mxu0 0
    %4006 = vmatpush1.bf16.msra.mxu0 %v3910
    %4007 = vmatprep.subr.bf16.mxu0 0
    %4008 = vmatpush1.bf16.msra.mxu0 %v3911
    %4009 = vmatprep.subr.bf16.mxu0 0
    %4010 = vmatpush1.bf16.msra.mxu0 %v3912
    %4011 = vmatprep.subr.bf16.mxu0 0
    %4012 = vmatpush1.bf16.msra.mxu0 %v3913
    %4013 = vmatprep.subr.bf16.mxu0 0
    %4014 = vmatpush1.bf16.msra.mxu0 %v3914
    %4015 = vmatprep.subr.bf16.mxu0 0
    %4016 = vmatpush1.bf16.msra.mxu0 %v3915
    %4017 = vmatprep.subr.bf16.mxu0 0
    %4018 = vmatpush1.bf16.msra.mxu0 %v3916
    %4019 = vmatprep.subr.bf16.mxu0 0
    %4020 = vmatpush1.bf16.msra.mxu0 %v3917
    %4021 = vmatprep.subr.bf16.mxu0 0
    %4022 = vmatpush1.bf16.msra.mxu0 %v3918
    %4023 = vmatprep.subr.bf16.mxu0 0
    %4024 = vmatpush1.bf16.msra.mxu0 %v3919
    %4025 = vmatprep.mubr.bf16.mxu0 %v3686
    %4026 = vmatmul.mubr.bf16.gmra.mrb[0].mxu0 %v3685
    %v4027 = vpop.f32.mrb[0].mxu0
    %v4028 = vadd.f32 %v3987, %v4027
    %v4029 = vpop.f32.mrb[0].mxu0
    %v4030 = vpop.f32.mrb[0].mxu0
    %v4031 = vadd.f32 %v3990, %v4030
    %v4032 = vpop.f32.mrb[0].mxu0
    %4033 = vdwg.mxu0
    %v4034 = vadd.f32 %v4028, %v2296
    %v4035 = vadd.f32 %v4031, %v2297
    %s4036 = scalar_lea.vmem %s8, 1
    %v4037 = vld [vmem:[%s4036] sm:$0x1]
    %s4038 = scalar_lea.vmem %s9, 1
    %v4039 = vld [vmem:[%s4038] sm:$0x1]
    %4040 = vadd.xlane.f32.xlu0 %v4034
    %v4041 = vpop.xlane.xlu0 %4040
    %4042 = vadd.xlane.f32.xlu0 %v4035
    %v4043 = vpop.xlane.xlu0 %4042
    %v4044 = vmul.f32 %v4041, %v192
    %v4045 = vmul.f32 %v4043, %v192
    %v4046 = vsub.f32 %v4034, %v4044
    %v4047 = vsub.f32 %v4035, %v4045
    %v4048 = vsel %vm198, %v4046, 0.0
    %v4049 = vsel %vm198, %v4047, 0.0
    %v4050 = vmul.f32 %v4048, %v4048
    %v4051 = vmul.f32 %v4049, %v4049
    %4052 = vadd.xlane.f32.xlu0 %v4050
    %v4053 = vpop.xlane.xlu0 %4052
    %4054 = vadd.xlane.f32.xlu0 %v4051
    %v4055 = vpop.xlane.xlu0 %4054
    %v4056 = vmul.f32 %v4053, %v192
    %v4057 = vmul.f32 %v4055, %v192
    %v4058 = vadd.f32 %v4056, 1e-12
    %v4059 = vadd.f32 %v4057, 1e-12
    %v4060 = vrsqrt.pop %v4058
    %v4061 = vrsqrt.pop %v4059
    %v4062 = vmul.f32 %v4048, %v4060
    %v4063 = vmul.f32 %v4049, %v4061
    %v4065 = vlaneseq
    %v4066 = vshrl.u32 %v4065, 7
    %v4067 = vsub.s32 0, %v4066
    %v4068 = vrot.slane %v4037, %v4067
    %v4070 = vmul.f32 %v4062, %v4068
    %v4071 = vmul.f32 %v4063, %v4068
    %v4073 = vlaneseq
    %v4074 = vshrl.u32 %v4073, 7
    %v4075 = vsub.s32 0, %v4074
    %v4076 = vrot.slane %v4039, %v4075
    %v4078 = vadd.f32 %v4070, %v4076
    %v4079 = vadd.f32 %v4071, %v4076
    %s4080 = scalar_lea.vmem [#allocation15], 64
    %v4081 = vld [vmem:[%s4080] sm:$0xf]
    %v4082 = vld [vmem:[%s4080 + $0x4] sm:$0xf]
    %v4083 = vld [vmem:[%s4080 + $0x8] sm:$0xf]
    %v4084 = vld [vmem:[%s4080 + $0xc] sm:$0xf]
    %v4085 = vld [vmem:[%s4080 + $0x10] sm:$0xf]
    %v4086 = vld [vmem:[%s4080 + $0x14] sm:$0xf]
    %v4087 = vld [vmem:[%s4080 + $0x18] sm:$0xf]
    %v4088 = vld [vmem:[%s4080 + $0x1c] sm:$0xf]
    %v4089 = vld [vmem:[%s4080 + $0x20] sm:$0xf]
    %v4090 = vld [vmem:[%s4080 + $0x24] sm:$0xf]
    %v4091 = vld [vmem:[%s4080 + $0x28] sm:$0xf]
    %v4092 = vld [vmem:[%s4080 + $0x2c] sm:$0xf]
    %v4093 = vld [vmem:[%s4080 + $0x30] sm:$0xf]
    %v4094 = vld [vmem:[%s4080 + $0x34] sm:$0xf]
    %v4095 = vld [vmem:[%s4080 + $0x38] sm:$0xf]
    %v4096 = vld [vmem:[%s4080 + $0x3c] sm:$0xf]
    %s4097 = scalar_lea.vmem %s11, 1
    %v4098 = vld [vmem:[%s4097] sm:$0x1]
    %v4099 = vpack.c.bf16 %v4079, %v4078
    %v4101 = vlaneseq
    %v4102 = vshrl.u32 %v4101, 7
    %v4103 = vsub.s32 0, %v4102
    %v4104 = vrot.slane %v4098, %v4103
    %v4122 = vunpack.c.l.b16 %v4081
    %v4123 = vunpack.c.l.b16 %v4082
    %v4124 = vunpack.c.l.b16 %v4083
    %v4125 = vunpack.c.l.b16 %v4084
    %v4126 = vunpack.c.l.b16 %v4085
    %v4127 = vunpack.c.l.b16 %v4086
    %v4128 = vunpack.c.l.b16 %v4087
    %v4129 = vunpack.c.l.b16 %v4088
    %v4130 = vunpack.c.l.b16 %v4089
    %v4131 = vunpack.c.l.b16 %v4090
    %v4132 = vunpack.c.l.b16 %v4091
    %v4133 = vunpack.c.l.b16 %v4092
    %v4134 = vunpack.c.l.b16 %v4093
    %v4135 = vunpack.c.l.b16 %v4094
    %v4136 = vunpack.c.l.b16 %v4095
    %v4137 = vunpack.c.l.b16 %v4096
    %v4138 = vpack.c.b16 %v4123, %v4122
    %v4139 = vpack.c.b16 %v4125, %v4124
    %v4140 = vpack.c.b16 %v4127, %v4126
    %v4141 = vpack.c.b16 %v4129, %v4128
    %v4142 = vpack.c.b16 %v4131, %v4130
    %v4143 = vpack.c.b16 %v4133, %v4132
    %v4144 = vpack.c.b16 %v4135, %v4134
    %v4145 = vpack.c.b16 %v4137, %v4136
    %4154 = vmatprep.subr.bf16.mxu0 0
    %4155 = vmatpush1.bf16.msra.mxu0 %v4138
    %4156 = vmatprep.subr.bf16.mxu0 0
    %4157 = vmatpush1.bf16.msra.mxu0 %v4139
    %4158 = vmatprep.subr.bf16.mxu0 0
    %4159 = vmatpush1.bf16.msra.mxu0 %v4140
    %4160 = vmatprep.subr.bf16.mxu0 0
    %4161 = vmatpush1.bf16.msra.mxu0 %v4141
    %4162 = vmatprep.subr.bf16.mxu0 0
    %4163 = vmatpush1.bf16.msra.mxu0 %v4142
    %4164 = vmatprep.subr.bf16.mxu0 0
    %4165 = vmatpush1.bf16.msra.mxu0 %v4143
    %4166 = vmatprep.subr.bf16.mxu0 0
    %4167 = vmatpush1.bf16.msra.mxu0 %v4144
    %4168 = vmatprep.subr.bf16.mxu0 0
    %4169 = vmatpush1.bf16.msra.mxu0 %v4145
    %4170 = vmatprep.subr.bf16.mxu0 0
    %4171 = vmatpush1.bf16.msra.mxu0 0
    %4172 = vmatprep.subr.bf16.mxu0 0
    %4173 = vmatpush1.bf16.msra.mxu0 0
    %4174 = vmatprep.subr.bf16.mxu0 0
    %4175 = vmatpush1.bf16.msra.mxu0 0
    %4176 = vmatprep.subr.bf16.mxu0 0
    %4177 = vmatpush1.bf16.msra.mxu0 0
    %4178 = vmatprep.subr.bf16.mxu0 0
    %4179 = vmatpush1.bf16.msra.mxu0 0
    %4180 = vmatprep.subr.bf16.mxu0 0
    %4181 = vmatpush1.bf16.msra.mxu0 0
    %4182 = vmatprep.subr.bf16.mxu0 0
    %4183 = vmatpush1.bf16.msra.mxu0 0
    %4184 = vmatprep.subr.bf16.mxu0 0
    %4185 = vmatpush1.bf16.msra.mxu0 0
    %4186 = vmatprep.mubr.bf16.mxu0 0
    %4187 = vmatmul.mubr.bf16.gmra.mrb[0].mxu0 %v4099
    %v4188 = vpop.f32.mrb[0].mxu0
    %v4189 = vadd.f32 %v4104, %v4188
    %v4190 = vpop.f32.mrb[0].mxu0
    %v4191 = vpop.f32.mrb[0].mxu0
    %v4192 = vadd.f32 %v4104, %v4191
    %v4193 = vpop.f32.mrb[0].mxu0
    %4194 = vdwg.mxu0
    %v4195 = vmul.f32 %v4189, %v4189
    %v4196 = vmul.f32 %v4192, %v4192
    %v4197 = vmul.f32 %v4189, %v4195
    %v4198 = vmul.f32 %v4192, %v4196
    %v4199 = vmul.f32 %v4197, 0.044715
    %v4200 = vmul.f32 %v4198, 0.044715
    %v4201 = vadd.f32 %v4189, %v4199
    %v4202 = vadd.f32 %v4192, %v4200
    %v4203 = vmul.f32 %v4201, 0.7978846
    %v4204 = vmul.f32 %v4202, 0.7978846
    %v4205 = vtanh.pop %v4203
    %v4206 = vtanh.pop %v4204
    %v4207 = vadd.f32 %v4205, 1.0
    %v4208 = vadd.f32 %v4206, 1.0
    %v4209 = vmul.f32 %v4207, 0.5
    %v4210 = vmul.f32 %v4208, 0.5
    %v4211 = vmul.f32 %v4189, %v4209
    %v4212 = vmul.f32 %v4192, %v4210
    %s4213 = scalar_lea.vmem [#allocation16], 64
    %v4214 = vld [vmem:[%s4213] sm:$0xf]
    %v4215 = vld [vmem:[%s4213 + $0x4] sm:$0xf]
    %v4216 = vld [vmem:[%s4213 + $0x8] sm:$0xf]
    %v4217 = vld [vmem:[%s4213 + $0xc] sm:$0xf]
    %v4218 = vld [vmem:[%s4213 + $0x10] sm:$0xf]
    %v4219 = vld [vmem:[%s4213 + $0x14] sm:$0xf]
    %v4220 = vld [vmem:[%s4213 + $0x18] sm:$0xf]
    %v4221 = vld [vmem:[%s4213 + $0x1c] sm:$0xf]
    %v4222 = vld [vmem:[%s4213 + $0x20] sm:$0xf]
    %v4223 = vld [vmem:[%s4213 + $0x24] sm:$0xf]
    %v4224 = vld [vmem:[%s4213 + $0x28] sm:$0xf]
    %v4225 = vld [vmem:[%s4213 + $0x2c] sm:$0xf]
    %v4226 = vld [vmem:[%s4213 + $0x30] sm:$0xf]
    %v4227 = vld [vmem:[%s4213 + $0x34] sm:$0xf]
    %v4228 = vld [vmem:[%s4213 + $0x38] sm:$0xf]
    %v4229 = vld [vmem:[%s4213 + $0x3c] sm:$0xf]
    %s4230 = scalar_lea.vmem %s13, 1
    %v4231 = vld [vmem:[%s4230] sm:$0x1]
    %v4232 = vpack.c.bf16 %v4212, %v4211
    %v4234 = vlaneseq
    %v4235 = vshrl.u32 %v4234, 7
    %v4236 = vsub.s32 0, %v4235
    %v4237 = vrot.slane %v4231, %v4236
    %v4255 = vunpack.c.l.b16 %v4214
    %v4256 = vunpack.c.l.b16 %v4215
    %v4257 = vunpack.c.l.b16 %v4216
    %v4258 = vunpack.c.l.b16 %v4217
    %v4259 = vunpack.c.l.b16 %v4218
    %v4260 = vunpack.c.l.b16 %v4219
    %v4261 = vunpack.c.l.b16 %v4220
    %v4262 = vunpack.c.l.b16 %v4221
    %v4263 = vunpack.c.l.b16 %v4222
    %v4264 = vunpack.c.l.b16 %v4223
    %v4265 = vunpack.c.l.b16 %v4224
    %v4266 = vunpack.c.l.b16 %v4225
    %v4267 = vunpack.c.l.b16 %v4226
    %v4268 = vunpack.c.l.b16 %v4227
    %v4269 = vunpack.c.l.b16 %v4228
    %v4270 = vunpack.c.l.b16 %v4229
    %v4271 = vpack.c.b16 %v4256, %v4255
    %v4272 = vpack.c.b16 %v4258, %v4257
    %v4273 = vpack.c.b16 %v4260, %v4259
    %v4274 = vpack.c.b16 %v4262, %v4261
    %v4275 = vpack.c.b16 %v4264, %v4263
    %v4276 = vpack.c.b16 %v4266, %v4265
    %v4277 = vpack.c.b16 %v4268, %v4267
    %v4278 = vpack.c.b16 %v4270, %v4269
    %4287 = vmatprep.subr.bf16.mxu0 0
    %4288 = vmatpush1.bf16.msra.mxu0 %v4271
    %4289 = vmatprep.subr.bf16.mxu0 0
    %4290 = vmatpush1.bf16.msra.mxu0 %v4272
    %4291 = vmatprep.subr.bf16.mxu0 0
    %4292 = vmatpush1.bf16.msra.mxu0 %v4273
    %4293 = vmatprep.subr.bf16.mxu0 0
    %4294 = vmatpush1.bf16.msra.mxu0 %v4274
    %4295 = vmatprep.subr.bf16.mxu0 0
    %4296 = vmatpush1.bf16.msra.mxu0 %v4275
    %4297 = vmatprep.subr.bf16.mxu0 0
    %4298 = vmatpush1.bf16.msra.mxu0 %v4276
    %4299 = vmatprep.subr.bf16.mxu0 0
    %4300 = vmatpush1.bf16.msra.mxu0 %v4277
    %4301 = vmatprep.subr.bf16.mxu0 0
    %4302 = vmatpush1.bf16.msra.mxu0 %v4278
    %4303 = vmatprep.subr.bf16.mxu0 0
    %4304 = vmatpush1.bf16.msra.mxu0 0
    %4305 = vmatprep.subr.bf16.mxu0 0
    %4306 = vmatpush1.bf16.msra.mxu0 0
    %4307 = vmatprep.subr.bf16.mxu0 0
    %4308 = vmatpush1.bf16.msra.mxu0 0
    %4309 = vmatprep.subr.bf16.mxu0 0
    %4310 = vmatpush1.bf16.msra.mxu0 0
    %4311 = vmatprep.subr.bf16.mxu0 0
    %4312 = vmatpush1.bf16.msra.mxu0 0
    %4313 = vmatprep.subr.bf16.mxu0 0
    %4314 = vmatpush1.bf16.msra.mxu0 0
    %4315 = vmatprep.subr.bf16.mxu0 0
    %4316 = vmatpush1.bf16.msra.mxu0 0
    %4317 = vmatprep.subr.bf16.mxu0 0
    %4318 = vmatpush1.bf16.msra.mxu0 0
    %4319 = vmatprep.mubr.bf16.mxu0 0
    %4320 = vmatmul.mubr.bf16.gmra.mrb[0].mxu0 %v4232
    %v4321 = vpop.f32.mrb[0].mxu0
    %v4322 = vadd.f32 %v4237, %v4321
    %v4323 = vpop.f32.mrb[0].mxu0
    %v4324 = vpop.f32.mrb[0].mxu0
    %v4325 = vadd.f32 %v4237, %v4324
    %v4326 = vpop.f32.mrb[0].mxu0
    %4327 = vdwg.mxu0
    %v4328 = vadd.f32 %v4322, %v4078
    %v4329 = vadd.f32 %v4325, %v4079
    %s4330 = scalar_lea.vmem %s14, 1
    %v4331 = vld [vmem:[%s4330] sm:$0x1]
    %s4332 = scalar_lea.vmem %s15, 1
    %v4333 = vld [vmem:[%s4332] sm:$0x1]
    %4334 = vadd.xlane.f32.xlu0 %v4328
    %v4335 = vpop.xlane.xlu0 %4334
    %4336 = vadd.xlane.f32.xlu0 %v4329
    %v4337 = vpop.xlane.xlu0 %4336
    %v4338 = vmul.f32 %v4335, %v192
    %v4339 = vmul.f32 %v4337, %v192
    %v4340 = vsub.f32 %v4328, %v4338
    %v4341 = vsub.f32 %v4329, %v4339
    %v4342 = vsel %vm198, %v4340, 0.0
    %v4343 = vsel %vm198, %v4341, 0.0
    %v4344 = vmul.f32 %v4342, %v4342
    %v4345 = vmul.f32 %v4343, %v4343
    %4346 = vadd.xlane.f32.xlu0 %v4344
    %v4347 = vpop.xlane.xlu0 %4346
    %4348 = vadd.xlane.f32.xlu0 %v4345
    %v4349 = vpop.xlane.xlu0 %4348
    %v4350 = vmul.f32 %v4347, %v192
    %v4351 = vmul.f32 %v4349, %v192
    %v4352 = vadd.f32 %v4350, 1e-12
    %v4353 = vadd.f32 %v4351, 1e-12
    %v4354 = vrsqrt.pop %v4352
    %v4355 = vrsqrt.pop %v4353
    %v4356 = vmul.f32 %v4342, %v4354
    %v4357 = vmul.f32 %v4343, %v4355
    %v4359 = vlaneseq
    %v4360 = vshrl.u32 %v4359, 7
    %v4361 = vsub.s32 0, %v4360
    %v4362 = vrot.slane %v4331, %v4361
    %v4364 = vmul.f32 %v4356, %v4362
    %v4365 = vmul.f32 %v4357, %v4362
    %v4367 = vlaneseq
    %v4368 = vshrl.u32 %v4367, 7
    %v4369 = vsub.s32 0, %v4368
    %v4370 = vrot.slane %v4333, %v4369
    %v4372 = vadd.f32 %v4364, %v4370
    %v4373 = vadd.f32 %v4365, %v4370
    %v4374 = vld [vmem:[#allocation18] sm:$0xf]
    %v4375 = vld [vmem:[#allocation18 + $0x4] sm:$0xf]
    %v4376 = vld [vmem:[#allocation18 + $0x8] sm:$0xf]
    %v4377 = vld [vmem:[#allocation18 + $0xc] sm:$0xf]
    %v4378 = vld [vmem:[#allocation18 + $0x10] sm:$0xf]
    %v4379 = vld [vmem:[#allocation18 + $0x14] sm:$0xf]
    %v4380 = vld [vmem:[#allocation18 + $0x18] sm:$0xf]
    %v4381 = vld [vmem:[#allocation18 + $0x1c] sm:$0xf]
    %v4382 = vld [vmem:[#allocation18 + $0x20] sm:$0xf]
    %v4383 = vld [vmem:[#allocation18 + $0x24] sm:$0xf]
    %v4384 = vld [vmem:[#allocation18 + $0x28] sm:$0xf]
    %v4385 = vld [vmem:[#allocation18 + $0x2c] sm:$0xf]
    %v4386 = vld [vmem:[#allocation18 + $0x30] sm:$0xf]
    %v4387 = vld [vmem:[#allocation18 + $0x34] sm:$0xf]
    %v4388 = vld [vmem:[#allocation18 + $0x38] sm:$0xf]
    %v4389 = vld [vmem:[#allocation18 + $0x3c] sm:$0xf]
    %v4390 = vld [vmem:[%s17] sm:$0x1]
    %v4391 = vpack.c.bf16 %v4373, %v4372
    %v4393 = vlaneseq
    %v4394 = vshrl.u32 %v4393, 7
    %v4395 = vsub.s32 0, %v4394
    %v4396 = vrot.slane %v4390, %v4395
    %v4414 = vunpack.c.l.b16 %v4374
    %v4415 = vunpack.c.l.b16 %v4375
    %v4416 = vunpack.c.l.b16 %v4376
    %v4417 = vunpack.c.l.b16 %v4377
    %v4418 = vunpack.c.l.b16 %v4378
    %v4419 = vunpack.c.l.b16 %v4379
    %v4420 = vunpack.c.l.b16 %v4380
    %v4421 = vunpack.c.l.b16 %v4381
    %v4422 = vunpack.c.l.b16 %v4382
    %v4423 = vunpack.c.l.b16 %v4383
    %v4424 = vunpack.c.l.b16 %v4384
    %v4425 = vunpack.c.l.b16 %v4385
    %v4426 = vunpack.c.l.b16 %v4386
    %v4427 = vunpack.c.l.b16 %v4387
    %v4428 = vunpack.c.l.b16 %v4388
    %v4429 = vunpack.c.l.b16 %v4389
    %v4430 = vpack.c.b16 %v4415, %v4414
    %v4431 = vpack.c.b16 %v4417, %v4416
    %v4432 = vpack.c.b16 %v4419, %v4418
    %v4433 = vpack.c.b16 %v4421, %v4420
    %v4434 = vpack.c.b16 %v4423, %v4422
    %v4435 = vpack.c.b16 %v4425, %v4424
    %v4436 = vpack.c.b16 %v4427, %v4426
    %v4437 = vpack.c.b16 %v4429, %v4428
    %4446 = vmatprep.subr.bf16.mxu0 0
    %4447 = vmatpush1.bf16.msra.mxu0 %v4430
    %4448 = vmatprep.subr.bf16.mxu0 0
    %4449 = vmatpush1.bf16.msra.mxu0 %v4431
    %4450 = vmatprep.subr.bf16.mxu0 0
    %4451 = vmatpush1.bf16.msra.mxu0 %v4432
    %4452 = vmatprep.subr.bf16.mxu0 0
    %4453 = vmatpush1.bf16.msra.mxu0 %v4433
    %4454 = vmatprep.subr.bf16.mxu0 0
    %4455 = vmatpush1.bf16.msra.mxu0 %v4434
    %4456 = vmatprep.subr.bf16.mxu0 0
    %4457 = vmatpush1.bf16.msra.mxu0 %v4435
    %4458 = vmatprep.subr.bf16.mxu0 0
    %4459 = vmatpush1.bf16.msra.mxu0 %v4436
    %4460 = vmatprep.subr.bf16.mxu0 0
    %4461 = vmatpush1.bf16.msra.mxu0 %v4437
    %4462 = vmatprep.subr.bf16.mxu0 0
    %4463 = vmatpush1.bf16.msra.mxu0 0
    %4464 = vmatprep.subr.bf16.mxu0 0
    %4465 = vmatpush1.bf16.msra.mxu0 0
    %4466 = vmatprep.subr.bf16.mxu0 0
    %4467 = vmatpush1.bf16.msra.mxu0 0
    %4468 = vmatprep.subr.bf16.mxu0 0
    %4469 = vmatpush1.bf16.msra.mxu0 0
    %4470 = vmatprep.subr.bf16.mxu0 0
    %4471 = vmatpush1.bf16.msra.mxu0 0
    %4472 = vmatprep.subr.bf16.mxu0 0
    %4473 = vmatpush1.bf16.msra.mxu0 0
    %4474 = vmatprep.subr.bf16.mxu0 0
    %4475 = vmatpush1.bf16.msra.mxu0 0
    %4476 = vmatprep.subr.bf16.mxu0 0
    %4477 = vmatpush1.bf16.msra.mxu0 0
    %4478 = vmatprep.mubr.bf16.mxu0 0
    %4479 = vmatmul.mubr.bf16.gmra.mrb[0].mxu0 %v4391
    %v4480 = vpop.f32.mrb[0].mxu0
    %v4481 = vadd.f32 %v4396, %v4480
    %v4482 = vpop.f32.mrb[0].mxu0
    %v4483 = vpop.f32.mrb[0].mxu0
    %v4484 = vadd.f32 %v4396, %v4483
    %v4485 = vpop.f32.mrb[0].mxu0
    %4486 = vdwg.mxu0
    %4487 = vst [vmem:[#allocation19] sm:$0xff] %v4481
    %4488 = vst [vmem:[#allocation19 + $0x8] sm:$0xff] %v4484
    // Predicated region
    $region110: #{tpu_custom_call.1} parent=1 // pred_check
      _
    $region111: #{tpu_custom_call.1} parent=1 // pred_check_branch
      %4490 = sbr.rel (0) target = $region113
    $region112: #{tpu_custom_call.1} parent=1 // pred_region
      %s4492 = ssub.s32 256, 256
      %4493 = vsyncadd [#allocation6], %s4492
      %s4494 = sshll.u32 [#allocation19], 4
      %s4495 = int_to_ptr.vmem [resolvable:$true] %s4494
      %4500 = dma.vmem_to_hbm [thread:$0]  %s4495, 256, %s18, [#allocation6], 128, 128, 8
    $region113: #{tpu_custom_call.1} parent=1 // pred_fallthru
      _
    // Predicated region
    $region114: #{tpu_custom_call.1} parent=1 // pred_check
      _
    $region115: #{tpu_custom_call.1} parent=1 // pred_check_branch
      %4502 = sbr.rel (0) target = $region117
    $region116: #{tpu_custom_call.1} parent=1 // pred_region
      %4503 = dma.done [#allocation6], 256
    $region117: #{tpu_custom_call.1} parent=1 // pred_fallthru
      _
    %4504 = vsyncpa [#allocation5], 1
    %4505 = vsyncpa [#allocation8], 1
    %4506 = vsyncpa [#allocation11], 1
    %4507 = vsyncpa [#allocation14], 1
    %4508 = vsyncpa [#allocation17], 1
    %4509 = vsyncpa [#allocation6], 1

</llo_original>
